<compile_context>
chip_gen: v7x
topology: tpu7x:2x2x1
jax: 0.10.0
libtpu: 0.0.40
codegen_flags: <defaults>
</compile_context>

<pallas_src>
import math

import jax
import jax.numpy as jnp
from jax.experimental import pallas as pl
from jax.experimental.pallas import tpu as pltpu

# ---- model hyper-parameters (small, consistent with the module) -------------
VOCAB = 32            # vocab_size
EMBED = 32            # embedding_dim (divisible by num_heads=8)
HEADS = 8
HEAD_DIM = EMBED // HEADS
N_CAT = 8             # num_category_classes
N_SUB = 16            # num_sub_category_classes
N_OUT = N_CAT + N_SUB
BATCH = 2
SEQ = 8

W_COLS = 3 * EMBED + EMBED + N_OUT    # [Wq | Wk | Wv | Wo | Wcat | Wsub] -> 152 columns


def attention_mlp_kernel(x_ref, w_ref, b_ref, out_ref):
    """Single grid step: full batch. x_ref: (B*S, E); w_ref: (E, 152); b_ref: (1, 152);
    out_ref: (B, N_CAT + N_SUB)."""
    x = x_ref[...]        # (B*S, E)
    w = w_ref[...]        # (E, W_COLS)
    bias = b_ref[...]     # (1, W_COLS)

    E = EMBED

    # Fused QKV projection: one MXU matmul with 96 output lanes.
    w_qkv = w[:, : 3 * E]
    b_qkv = bias[:, : 3 * E]
    qkv = jnp.dot(x, w_qkv, preferred_element_type=jnp.float32) + b_qkv   # (B*S, 3E)

    w_o = w[:, 3 * E:4 * E]          # (E, E)   attention output projection
    b_o = bias[:, 3 * E:4 * E]       # (1, E)
    w_heads = w[:, 4 * E:]           # (E, N_OUT)  fused cat+sub classifier weights
    b_heads = bias[:, 4 * E:]        # (1, N_OUT)

    scale = 1.0 / math.sqrt(HEAD_DIM)

    logit_rows = []
    for bi in range(BATCH):                       # static loop, B=2
        r0 = bi * SEQ
        qb = qkv[r0:r0 + SEQ, 0:E]                # (S, E)
        kb = qkv[r0:r0 + SEQ, E:2 * E]            # (S, E)
        vb = qkv[r0:r0 + SEQ, 2 * E:3 * E]        # (S, E)

        # Accumulate attn @ Wo directly (no per-head concatenate).
        out_b = jnp.zeros((SEQ, E), jnp.float32)
        for h in range(HEADS):                    # static loop, 8 heads
            lo = h * HEAD_DIM
            hi = lo + HEAD_DIM
            qh = qb[:, lo:hi]                     # (S, d)
            kh = kb[:, lo:hi]                     # (S, d)
            vh = vb[:, lo:hi]                     # (S, d)

            s = jnp.dot(qh, kh.T, preferred_element_type=jnp.float32) * scale  # (S, S)
            s = s - jnp.max(s, axis=-1, keepdims=True)
            p = jnp.exp(s)
            denom = jnp.sum(p, axis=-1, keepdims=True)
            # one reciprocal + multiply instead of a broadcast divide
            p = p * pl.reciprocal(denom, approx=False)

            oh = jnp.dot(p, vh, preferred_element_type=jnp.float32)            # (S, d)
            # Fold the output projection: rows [lo:hi] of Wo correspond to head h.
            out_b = out_b + jnp.dot(oh, w_o[lo:hi, :],
                                    preferred_element_type=jnp.float32)        # (S, E)

        out_b = out_b + b_o                                  # attention-layer bias
        pooled = jnp.mean(out_b, axis=0, keepdims=True)      # (1, E) mean over sequence
        logits = jnp.dot(pooled, w_heads,
                         preferred_element_type=jnp.float32) + b_heads         # (1, N_OUT)
        logit_rows.append(logits)

    # Single lane-dense store of the fused (cat | sub) logits for the whole batch.
    out_ref[...] = jnp.concatenate(logit_rows, axis=0)       # (B, N_OUT)


def attention_mlp_forward(embedded, params):
    """embedded: (B, S, E) float32.  params: 12 unpacked weight/bias arrays."""
    wq, wk, wv, bq, bk, bv, wo, bo, wc, bc, ws, bs = params
    B, S, E = embedded.shape

    # Pack all weights/biases into one weight slab and one bias slab (3 operands total).
    w_all = jnp.concatenate([wq, wk, wv, wo, wc, ws], axis=1)     # (E, 152)
    b_all = jnp.concatenate([bq, bk, bv, bo, bc, bs], axis=1)     # (1, 152)

    x2d = embedded.reshape(B * S, E)                              # flatten batch into rows

    logits = pl.pallas_call(
        attention_mlp_kernel,
        grid=(1,),                                                # single step: no per-batch
        in_specs=[                                                # pipeline overhead
            pl.BlockSpec((B * S, E), lambda i: (0, 0)),
            pl.BlockSpec((E, W_COLS), lambda i: (0, 0)),
            pl.BlockSpec((1, W_COLS), lambda i: (0, 0)),
        ],
        out_specs=pl.BlockSpec((B, N_OUT), lambda i: (0, 0)),
        out_shape=jax.ShapeDtypeStruct((B, N_OUT), jnp.float32),
        compiler_params=pltpu.CompilerParams(
            dimension_semantics=("arbitrary",)),
    )(x2d, w_all, b_all)

    return logits[:, :N_CAT], logits[:, N_CAT:]


def reference_forward(embedded, params):
    """Pure-JAX reference replicating PyTorch MultiheadAttention semantics."""
    wq, wk, wv, bq, bk, bv, wo, bo, wc, bc, ws, bs = params
    B, S, E = embedded.shape
    q = embedded @ wq + bq
    k = embedded @ wk + bk
    v = embedded @ wv + bv
    qh = q.reshape(B, S, HEADS, HEAD_DIM).transpose(0, 2, 1, 3)
    kh = k.reshape(B, S, HEADS, HEAD_DIM).transpose(0, 2, 1, 3)
    vh = v.reshape(B, S, HEADS, HEAD_DIM).transpose(0, 2, 1, 3)
    s = jnp.einsum("bhqd,bhkd->bhqk", qh, kh) / math.sqrt(HEAD_DIM)
    p = jax.nn.softmax(s, axis=-1)
    o = jnp.einsum("bhqk,bhkd->bhqd", p, vh)
    o = o.transpose(0, 2, 1, 3).reshape(B, S, E)
    out = o @ wo + bo
    pooled = out.mean(axis=1)
    return pooled @ wc + bc, pooled @ ws + bs


def init_params(key):
    ks = jax.random.split(key, 13)
    scale = 0.1
    emb = jax.random.normal(ks[0], (VOCAB, EMBED), jnp.float32) * scale
    wq = jax.random.normal(ks[1], (EMBED, EMBED), jnp.float32) * scale
    wk = jax.random.normal(ks[2], (EMBED, EMBED), jnp.float32) * scale
    wv = jax.random.normal(ks[3], (EMBED, EMBED), jnp.float32) * scale
    bq = jax.random.normal(ks[4], (1, EMBED), jnp.float32) * scale
    bk = jax.random.normal(ks[5], (1, EMBED), jnp.float32) * scale
    bv = jax.random.normal(ks[6], (1, EMBED), jnp.float32) * scale
    wo = jax.random.normal(ks[7], (EMBED, EMBED), jnp.float32) * scale
    bo = jax.random.normal(ks[8], (1, EMBED), jnp.float32) * scale
    wc = jax.random.normal(ks[9], (EMBED, N_CAT), jnp.float32) * scale
    bc = jax.random.normal(ks[10], (1, N_CAT), jnp.float32) * scale
    ws = jax.random.normal(ks[11], (EMBED, N_SUB), jnp.float32) * scale
    bs = jax.random.normal(ks[12], (1, N_SUB), jnp.float32) * scale
    params = (wq, wk, wv, bq, bk, bv, wo, bo, wc, bc, ws, bs)
    return emb, params


if __name__ == "__main__":
    root = jax.random.PRNGKey(0)
    k_param, k_ids = jax.random.split(root)

    emb_table, params = init_params(k_param)
    input_ids = jax.random.randint(k_ids, (BATCH, SEQ), 0, VOCAB, dtype=jnp.int32)

    # Embedding lookup (glue, plain JAX gather; not worth a Pallas gather at this size).
    embedded = jnp.take(emb_table, input_ids, axis=0)   # (B, S, E) float32

    cat_out, sub_out = attention_mlp_forward(embedded, params)
    cat_out = jax.block_until_ready(cat_out)
    sub_out = jax.block_until_ready(sub_out)

    cat_ref, sub_ref = reference_forward(embedded, params)
    assert cat_out.shape == (BATCH, N_CAT) and sub_out.shape == (BATCH, N_SUB)
    assert jnp.allclose(cat_out, cat_ref, atol=1e-4, rtol=1e-4)
    assert jnp.allclose(sub_out, sub_ref, atol=1e-4, rtol=1e-4)

    print("KERNEL_OK")
</pallas_src>

<mosaic_0001>
module attributes {stable_mosaic.version = 11 : i64} {
  func.func @attention_mlp_kernel(%arg0: i32, %arg1: memref<16x32xf32, #tpu.memory_space<vmem>>, %arg2: memref<32x152xf32, #tpu.memory_space<vmem>>, %arg3: memref<1x152xf32, #tpu.memory_space<vmem>>, %arg4: memref<2x24xf32, #tpu.memory_space<vmem>>) attributes {dimension_semantics = [#tpu.dimension_semantics<arbitrary>], iteration_bounds = array<i64: 1>, scalar_prefetch = 0 : i64, scratch_operands = 0 : i64, tpu.core_type = #tpu.core_type<tc>, window_params = [{pipeline_mode = #tpu.pipeline_mode<synchronous>, transform_indices = @transform_0, window_bounds = array<i64: 16, 32>}, {pipeline_mode = #tpu.pipeline_mode<synchronous>, transform_indices = @transform_1, window_bounds = array<i64: 32, 152>}, {pipeline_mode = #tpu.pipeline_mode<synchronous>, transform_indices = @transform_2, window_bounds = array<i64: 1, 152>}, {pipeline_mode = #tpu.pipeline_mode<synchronous>, transform_indices = @transform_3, window_bounds = array<i64: 2, 24>}]} {
    %c0 = arith.constant 0 : index
    %c0_0 = arith.constant 0 : index
    %0 = vector.load %arg1[%c0, %c0_0] : memref<16x32xf32, #tpu.memory_space<vmem>>, vector<16x32xf32>
    %c0_1 = arith.constant 0 : index
    %c0_2 = arith.constant 0 : index
    %1 = vector.load %arg2[%c0_1, %c0_2] : memref<32x152xf32, #tpu.memory_space<vmem>>, vector<32x152xf32>
    %c0_3 = arith.constant 0 : index
    %c0_4 = arith.constant 0 : index
    %2 = vector.load %arg3[%c0_3, %c0_4] : memref<1x152xf32, #tpu.memory_space<vmem>>, vector<1x152xf32>
    %3 = vector.extract_strided_slice %1 {offsets = [0, 0], sizes = [32, 96], strides = [1, 1]} : vector<32x152xf32> to vector<32x96xf32>
    %4 = vector.extract_strided_slice %2 {offsets = [0, 0], sizes = [1, 96], strides = [1, 1]} : vector<1x152xf32> to vector<1x96xf32>
    %cst = arith.constant dense<0.000000e+00> : vector<16x96xf32>
    %5 = tpu.matmul %0, %3, %cst {dimension_numbers = #tpu.dot_dimension_numbers<[1], [0], [0], [1], [0, 0, 1, 1], [], []>} : vector<16x32xf32>, vector<32x96xf32>, vector<16x96xf32> -> vector<16x96xf32>
    %6 = vector.broadcast %4 : vector<1x96xf32> to vector<16x96xf32>
    %7 = arith.addf %5, %6 : vector<16x96xf32>
    %8 = vector.extract_strided_slice %1 {offsets = [0, 96], sizes = [32, 32], strides = [1, 1]} : vector<32x152xf32> to vector<32x32xf32>
    %9 = vector.extract_strided_slice %2 {offsets = [0, 96], sizes = [1, 32], strides = [1, 1]} : vector<1x152xf32> to vector<1x32xf32>
    %10 = vector.extract_strided_slice %1 {offsets = [0, 128], sizes = [32, 24], strides = [1, 1]} : vector<32x152xf32> to vector<32x24xf32>
    %11 = vector.extract_strided_slice %2 {offsets = [0, 128], sizes = [1, 24], strides = [1, 1]} : vector<1x152xf32> to vector<1x24xf32>
    %12 = vector.extract_strided_slice %7 {offsets = [0, 0], sizes = [8, 32], strides = [1, 1]} : vector<16x96xf32> to vector<8x32xf32>
    %13 = vector.extract_strided_slice %7 {offsets = [0, 32], sizes = [8, 32], strides = [1, 1]} : vector<16x96xf32> to vector<8x32xf32>
    %14 = vector.extract_strided_slice %7 {offsets = [0, 64], sizes = [8, 32], strides = [1, 1]} : vector<16x96xf32> to vector<8x32xf32>
    %cst_5 = arith.constant 0.000000e+00 : f32
    %15 = vector.broadcast %cst_5 : f32 to vector<8x32xf32>
    %16 = vector.extract_strided_slice %12 {offsets = [0, 0], sizes = [8, 4], strides = [1, 1]} : vector<8x32xf32> to vector<8x4xf32>
    %17 = vector.extract_strided_slice %13 {offsets = [0, 0], sizes = [8, 4], strides = [1, 1]} : vector<8x32xf32> to vector<8x4xf32>
    %18 = vector.extract_strided_slice %14 {offsets = [0, 0], sizes = [8, 4], strides = [1, 1]} : vector<8x32xf32> to vector<8x4xf32>
    %19 = tpu.transpose %17, [1, 0] : vector<8x4xf32> -> vector<4x8xf32>
    %cst_6 = arith.constant dense<0.000000e+00> : vector<8x8xf32>
    %20 = tpu.matmul %16, %19, %cst_6 {dimension_numbers = #tpu.dot_dimension_numbers<[1], [0], [0], [1], [0, 0, 1, 1], [], []>} : vector<8x4xf32>, vector<4x8xf32>, vector<8x8xf32> -> vector<8x8xf32>
    %cst_7 = arith.constant 5.000000e-01 : f32
    %21 = vector.broadcast %cst_7 : f32 to vector<8x8xf32>
    %22 = arith.mulf %20, %21 : vector<8x8xf32>
    %cst_8 = arith.constant dense<0xFF800000> : vector<8xf32>
    %23 = vector.multi_reduction <maximumf>, %22, %cst_8 [1] : vector<8x8xf32> to vector<8xf32>
    %24 = vector.shape_cast %23 : vector<8xf32> to vector<8x1xf32>
    %25 = vector.broadcast %24 : vector<8x1xf32> to vector<8x8xf32>
    %26 = arith.subf %22, %25 : vector<8x8xf32>
    %27 = math.exp %26 : vector<8x8xf32>
    %cst_9 = arith.constant dense<0.000000e+00> : vector<8xf32>
    %28 = vector.multi_reduction <add>, %27, %cst_9 [1] : vector<8x8xf32> to vector<8xf32>
    %29 = vector.shape_cast %28 : vector<8xf32> to vector<8x1xf32>
    %30 = tpu.reciprocal %29 : vector<8x1xf32> -> vector<8x1xf32>
    %31 = vector.broadcast %30 : vector<8x1xf32> to vector<8x8xf32>
    %32 = arith.mulf %27, %31 : vector<8x8xf32>
    %cst_10 = arith.constant dense<0.000000e+00> : vector<8x4xf32>
    %33 = tpu.matmul %32, %18, %cst_10 {dimension_numbers = #tpu.dot_dimension_numbers<[1], [0], [0], [1], [0, 0, 1, 1], [], []>} : vector<8x8xf32>, vector<8x4xf32>, vector<8x4xf32> -> vector<8x4xf32>
    %34 = vector.extract_strided_slice %8 {offsets = [0, 0], sizes = [4, 32], strides = [1, 1]} : vector<32x32xf32> to vector<4x32xf32>
    %cst_11 = arith.constant dense<0.000000e+00> : vector<8x32xf32>
    %35 = tpu.matmul %33, %34, %cst_11 {dimension_numbers = #tpu.dot_dimension_numbers<[1], [0], [0], [1], [0, 0, 1, 1], [], []>} : vector<8x4xf32>, vector<4x32xf32>, vector<8x32xf32> -> vector<8x32xf32>
    %36 = arith.addf %15, %35 : vector<8x32xf32>
    %37 = vector.extract_strided_slice %12 {offsets = [0, 4], sizes = [8, 4], strides = [1, 1]} : vector<8x32xf32> to vector<8x4xf32>
    %38 = vector.extract_strided_slice %13 {offsets = [0, 4], sizes = [8, 4], strides = [1, 1]} : vector<8x32xf32> to vector<8x4xf32>
    %39 = vector.extract_strided_slice %14 {offsets = [0, 4], sizes = [8, 4], strides = [1, 1]} : vector<8x32xf32> to vector<8x4xf32>
    %40 = tpu.transpose %38, [1, 0] : vector<8x4xf32> -> vector<4x8xf32>
    %cst_12 = arith.constant dense<0.000000e+00> : vector<8x8xf32>
    %41 = tpu.matmul %37, %40, %cst_12 {dimension_numbers = #tpu.dot_dimension_numbers<[1], [0], [0], [1], [0, 0, 1, 1], [], []>} : vector<8x4xf32>, vector<4x8xf32>, vector<8x8xf32> -> vector<8x8xf32>
    %cst_13 = arith.constant 5.000000e-01 : f32
    %42 = vector.broadcast %cst_13 : f32 to vector<8x8xf32>
    %43 = arith.mulf %41, %42 : vector<8x8xf32>
    %cst_14 = arith.constant dense<0xFF800000> : vector<8xf32>
    %44 = vector.multi_reduction <maximumf>, %43, %cst_14 [1] : vector<8x8xf32> to vector<8xf32>
    %45 = vector.shape_cast %44 : vector<8xf32> to vector<8x1xf32>
    %46 = vector.broadcast %45 : vector<8x1xf32> to vector<8x8xf32>
    %47 = arith.subf %43, %46 : vector<8x8xf32>
    %48 = math.exp %47 : vector<8x8xf32>
    %cst_15 = arith.constant dense<0.000000e+00> : vector<8xf32>
    %49 = vector.multi_reduction <add>, %48, %cst_15 [1] : vector<8x8xf32> to vector<8xf32>
    %50 = vector.shape_cast %49 : vector<8xf32> to vector<8x1xf32>
    %51 = tpu.reciprocal %50 : vector<8x1xf32> -> vector<8x1xf32>
    %52 = vector.broadcast %51 : vector<8x1xf32> to vector<8x8xf32>
    %53 = arith.mulf %48, %52 : vector<8x8xf32>
    %cst_16 = arith.constant dense<0.000000e+00> : vector<8x4xf32>
    %54 = tpu.matmul %53, %39, %cst_16 {dimension_numbers = #tpu.dot_dimension_numbers<[1], [0], [0], [1], [0, 0, 1, 1], [], []>} : vector<8x8xf32>, vector<8x4xf32>, vector<8x4xf32> -> vector<8x4xf32>
    %55 = vector.extract_strided_slice %8 {offsets = [4, 0], sizes = [4, 32], strides = [1, 1]} : vector<32x32xf32> to vector<4x32xf32>
    %cst_17 = arith.constant dense<0.000000e+00> : vector<8x32xf32>
    %56 = tpu.matmul %54, %55, %cst_17 {dimension_numbers = #tpu.dot_dimension_numbers<[1], [0], [0], [1], [0, 0, 1, 1], [], []>} : vector<8x4xf32>, vector<4x32xf32>, vector<8x32xf32> -> vector<8x32xf32>
    %57 = arith.addf %36, %56 : vector<8x32xf32>
    %58 = vector.extract_strided_slice %12 {offsets = [0, 8], sizes = [8, 4], strides = [1, 1]} : vector<8x32xf32> to vector<8x4xf32>
    %59 = vector.extract_strided_slice %13 {offsets = [0, 8], sizes = [8, 4], strides = [1, 1]} : vector<8x32xf32> to vector<8x4xf32>
    %60 = vector.extract_strided_slice %14 {offsets = [0, 8], sizes = [8, 4], strides = [1, 1]} : vector<8x32xf32> to vector<8x4xf32>
    %61 = tpu.transpose %59, [1, 0] : vector<8x4xf32> -> vector<4x8xf32>
    %cst_18 = arith.constant dense<0.000000e+00> : vector<8x8xf32>
    %62 = tpu.matmul %58, %61, %cst_18 {dimension_numbers = #tpu.dot_dimension_numbers<[1], [0], [0], [1], [0, 0, 1, 1], [], []>} : vector<8x4xf32>, vector<4x8xf32>, vector<8x8xf32> -> vector<8x8xf32>
    %cst_19 = arith.constant 5.000000e-01 : f32
    %63 = vector.broadcast %cst_19 : f32 to vector<8x8xf32>
    %64 = arith.mulf %62, %63 : vector<8x8xf32>
    %cst_20 = arith.constant dense<0xFF800000> : vector<8xf32>
    %65 = vector.multi_reduction <maximumf>, %64, %cst_20 [1] : vector<8x8xf32> to vector<8xf32>
    %66 = vector.shape_cast %65 : vector<8xf32> to vector<8x1xf32>
    %67 = vector.broadcast %66 : vector<8x1xf32> to vector<8x8xf32>
    %68 = arith.subf %64, %67 : vector<8x8xf32>
    %69 = math.exp %68 : vector<8x8xf32>
    %cst_21 = arith.constant dense<0.000000e+00> : vector<8xf32>
    %70 = vector.multi_reduction <add>, %69, %cst_21 [1] : vector<8x8xf32> to vector<8xf32>
    %71 = vector.shape_cast %70 : vector<8xf32> to vector<8x1xf32>
    %72 = tpu.reciprocal %71 : vector<8x1xf32> -> vector<8x1xf32>
    %73 = vector.broadcast %72 : vector<8x1xf32> to vector<8x8xf32>
    %74 = arith.mulf %69, %73 : vector<8x8xf32>
    %cst_22 = arith.constant dense<0.000000e+00> : vector<8x4xf32>
    %75 = tpu.matmul %74, %60, %cst_22 {dimension_numbers = #tpu.dot_dimension_numbers<[1], [0], [0], [1], [0, 0, 1, 1], [], []>} : vector<8x8xf32>, vector<8x4xf32>, vector<8x4xf32> -> vector<8x4xf32>
    %76 = vector.extract_strided_slice %8 {offsets = [8, 0], sizes = [4, 32], strides = [1, 1]} : vector<32x32xf32> to vector<4x32xf32>
    %cst_23 = arith.constant dense<0.000000e+00> : vector<8x32xf32>
    %77 = tpu.matmul %75, %76, %cst_23 {dimension_numbers = #tpu.dot_dimension_numbers<[1], [0], [0], [1], [0, 0, 1, 1], [], []>} : vector<8x4xf32>, vector<4x32xf32>, vector<8x32xf32> -> vector<8x32xf32>
    %78 = arith.addf %57, %77 : vector<8x32xf32>
    %79 = vector.extract_strided_slice %12 {offsets = [0, 12], sizes = [8, 4], strides = [1, 1]} : vector<8x32xf32> to vector<8x4xf32>
    %80 = vector.extract_strided_slice %13 {offsets = [0, 12], sizes = [8, 4], strides = [1, 1]} : vector<8x32xf32> to vector<8x4xf32>
    %81 = vector.extract_strided_slice %14 {offsets = [0, 12], sizes = [8, 4], strides = [1, 1]} : vector<8x32xf32> to vector<8x4xf32>
    %82 = tpu.transpose %80, [1, 0] : vector<8x4xf32> -> vector<4x8xf32>
    %cst_24 = arith.constant dense<0.000000e+00> : vector<8x8xf32>
    %83 = tpu.matmul %79, %82, %cst_24 {dimension_numbers = #tpu.dot_dimension_numbers<[1], [0], [0], [1], [0, 0, 1, 1], [], []>} : vector<8x4xf32>, vector<4x8xf32>, vector<8x8xf32> -> vector<8x8xf32>
    %cst_25 = arith.constant 5.000000e-01 : f32
    %84 = vector.broadcast %cst_25 : f32 to vector<8x8xf32>
    %85 = arith.mulf %83, %84 : vector<8x8xf32>
    %cst_26 = arith.constant dense<0xFF800000> : vector<8xf32>
    %86 = vector.multi_reduction <maximumf>, %85, %cst_26 [1] : vector<8x8xf32> to vector<8xf32>
    %87 = vector.shape_cast %86 : vector<8xf32> to vector<8x1xf32>
    %88 = vector.broadcast %87 : vector<8x1xf32> to vector<8x8xf32>
    %89 = arith.subf %85, %88 : vector<8x8xf32>
    %90 = math.exp %89 : vector<8x8xf32>
    %cst_27 = arith.constant dense<0.000000e+00> : vector<8xf32>
    %91 = vector.multi_reduction <add>, %90, %cst_27 [1] : vector<8x8xf32> to vector<8xf32>
    %92 = vector.shape_cast %91 : vector<8xf32> to vector<8x1xf32>
    %93 = tpu.reciprocal %92 : vector<8x1xf32> -> vector<8x1xf32>
    %94 = vector.broadcast %93 : vector<8x1xf32> to vector<8x8xf32>
    %95 = arith.mulf %90, %94 : vector<8x8xf32>
    %cst_28 = arith.constant dense<0.000000e+00> : vector<8x4xf32>
    %96 = tpu.matmul %95, %81, %cst_28 {dimension_numbers = #tpu.dot_dimension_numbers<[1], [0], [0], [1], [0, 0, 1, 1], [], []>} : vector<8x8xf32>, vector<8x4xf32>, vector<8x4xf32> -> vector<8x4xf32>
    %97 = vector.extract_strided_slice %8 {offsets = [12, 0], sizes = [4, 32], strides = [1, 1]} : vector<32x32xf32> to vector<4x32xf32>
    %cst_29 = arith.constant dense<0.000000e+00> : vector<8x32xf32>
    %98 = tpu.matmul %96, %97, %cst_29 {dimension_numbers = #tpu.dot_dimension_numbers<[1], [0], [0], [1], [0, 0, 1, 1], [], []>} : vector<8x4xf32>, vector<4x32xf32>, vector<8x32xf32> -> vector<8x32xf32>
    %99 = arith.addf %78, %98 : vector<8x32xf32>
    %100 = vector.extract_strided_slice %12 {offsets = [0, 16], sizes = [8, 4], strides = [1, 1]} : vector<8x32xf32> to vector<8x4xf32>
    %101 = vector.extract_strided_slice %13 {offsets = [0, 16], sizes = [8, 4], strides = [1, 1]} : vector<8x32xf32> to vector<8x4xf32>
    %102 = vector.extract_strided_slice %14 {offsets = [0, 16], sizes = [8, 4], strides = [1, 1]} : vector<8x32xf32> to vector<8x4xf32>
    %103 = tpu.transpose %101, [1, 0] : vector<8x4xf32> -> vector<4x8xf32>
    %cst_30 = arith.constant dense<0.000000e+00> : vector<8x8xf32>
    %104 = tpu.matmul %100, %103, %cst_30 {dimension_numbers = #tpu.dot_dimension_numbers<[1], [0], [0], [1], [0, 0, 1, 1], [], []>} : vector<8x4xf32>, vector<4x8xf32>, vector<8x8xf32> -> vector<8x8xf32>
    %cst_31 = arith.constant 5.000000e-01 : f32
    %105 = vector.broadcast %cst_31 : f32 to vector<8x8xf32>
    %106 = arith.mulf %104, %105 : vector<8x8xf32>
    %cst_32 = arith.constant dense<0xFF800000> : vector<8xf32>
    %107 = vector.multi_reduction <maximumf>, %106, %cst_32 [1] : vector<8x8xf32> to vector<8xf32>
    %108 = vector.shape_cast %107 : vector<8xf32> to vector<8x1xf32>
    %109 = vector.broadcast %108 : vector<8x1xf32> to vector<8x8xf32>
    %110 = arith.subf %106, %109 : vector<8x8xf32>
    %111 = math.exp %110 : vector<8x8xf32>
    %cst_33 = arith.constant dense<0.000000e+00> : vector<8xf32>
    %112 = vector.multi_reduction <add>, %111, %cst_33 [1] : vector<8x8xf32> to vector<8xf32>
    %113 = vector.shape_cast %112 : vector<8xf32> to vector<8x1xf32>
    %114 = tpu.reciprocal %113 : vector<8x1xf32> -> vector<8x1xf32>
    %115 = vector.broadcast %114 : vector<8x1xf32> to vector<8x8xf32>
    %116 = arith.mulf %111, %115 : vector<8x8xf32>
    %cst_34 = arith.constant dense<0.000000e+00> : vector<8x4xf32>
    %117 = tpu.matmul %116, %102, %cst_34 {dimension_numbers = #tpu.dot_dimension_numbers<[1], [0], [0], [1], [0, 0, 1, 1], [], []>} : vector<8x8xf32>, vector<8x4xf32>, vector<8x4xf32> -> vector<8x4xf32>
    %118 = vector.extract_strided_slice %8 {offsets = [16, 0], sizes = [4, 32], strides = [1, 1]} : vector<32x32xf32> to vector<4x32xf32>
    %cst_35 = arith.constant dense<0.000000e+00> : vector<8x32xf32>
    %119 = tpu.matmul %117, %118, %cst_35 {dimension_numbers = #tpu.dot_dimension_numbers<[1], [0], [0], [1], [0, 0, 1, 1], [], []>} : vector<8x4xf32>, vector<4x32xf32>, vector<8x32xf32> -> vector<8x32xf32>
    %120 = arith.addf %99, %119 : vector<8x32xf32>
    %121 = vector.extract_strided_slice %12 {offsets = [0, 20], sizes = [8, 4], strides = [1, 1]} : vector<8x32xf32> to vector<8x4xf32>
    %122 = vector.extract_strided_slice %13 {offsets = [0, 20], sizes = [8, 4], strides = [1, 1]} : vector<8x32xf32> to vector<8x4xf32>
    %123 = vector.extract_strided_slice %14 {offsets = [0, 20], sizes = [8, 4], strides = [1, 1]} : vector<8x32xf32> to vector<8x4xf32>
    %124 = tpu.transpose %122, [1, 0] : vector<8x4xf32> -> vector<4x8xf32>
    %cst_36 = arith.constant dense<0.000000e+00> : vector<8x8xf32>
    %125 = tpu.matmul %121, %124, %cst_36 {dimension_numbers = #tpu.dot_dimension_numbers<[1], [0], [0], [1], [0, 0, 1, 1], [], []>} : vector<8x4xf32>, vector<4x8xf32>, vector<8x8xf32> -> vector<8x8xf32>
    %cst_37 = arith.constant 5.000000e-01 : f32
    %126 = vector.broadcast %cst_37 : f32 to vector<8x8xf32>
    %127 = arith.mulf %125, %126 : vector<8x8xf32>
    %cst_38 = arith.constant dense<0xFF800000> : vector<8xf32>
    %128 = vector.multi_reduction <maximumf>, %127, %cst_38 [1] : vector<8x8xf32> to vector<8xf32>
    %129 = vector.shape_cast %128 : vector<8xf32> to vector<8x1xf32>
    %130 = vector.broadcast %129 : vector<8x1xf32> to vector<8x8xf32>
    %131 = arith.subf %127, %130 : vector<8x8xf32>
    %132 = math.exp %131 : vector<8x8xf32>
    %cst_39 = arith.constant dense<0.000000e+00> : vector<8xf32>
    %133 = vector.multi_reduction <add>, %132, %cst_39 [1] : vector<8x8xf32> to vector<8xf32>
    %134 = vector.shape_cast %133 : vector<8xf32> to vector<8x1xf32>
    %135 = tpu.reciprocal %134 : vector<8x1xf32> -> vector<8x1xf32>
    %136 = vector.broadcast %135 : vector<8x1xf32> to vector<8x8xf32>
    %137 = arith.mulf %132, %136 : vector<8x8xf32>
    %cst_40 = arith.constant dense<0.000000e+00> : vector<8x4xf32>
    %138 = tpu.matmul %137, %123, %cst_40 {dimension_numbers = #tpu.dot_dimension_numbers<[1], [0], [0], [1], [0, 0, 1, 1], [], []>} : vector<8x8xf32>, vector<8x4xf32>, vector<8x4xf32> -> vector<8x4xf32>
    %139 = vector.extract_strided_slice %8 {offsets = [20, 0], sizes = [4, 32], strides = [1, 1]} : vector<32x32xf32> to vector<4x32xf32>
    %cst_41 = arith.constant dense<0.000000e+00> : vector<8x32xf32>
    %140 = tpu.matmul %138, %139, %cst_41 {dimension_numbers = #tpu.dot_dimension_numbers<[1], [0], [0], [1], [0, 0, 1, 1], [], []>} : vector<8x4xf32>, vector<4x32xf32>, vector<8x32xf32> -> vector<8x32xf32>
    %141 = arith.addf %120, %140 : vector<8x32xf32>
    %142 = vector.extract_strided_slice %12 {offsets = [0, 24], sizes = [8, 4], strides = [1, 1]} : vector<8x32xf32> to vector<8x4xf32>
    %143 = vector.extract_strided_slice %13 {offsets = [0, 24], sizes = [8, 4], strides = [1, 1]} : vector<8x32xf32> to vector<8x4xf32>
    %144 = vector.extract_strided_slice %14 {offsets = [0, 24], sizes = [8, 4], strides = [1, 1]} : vector<8x32xf32> to vector<8x4xf32>
    %145 = tpu.transpose %143, [1, 0] : vector<8x4xf32> -> vector<4x8xf32>
    %cst_42 = arith.constant dense<0.000000e+00> : vector<8x8xf32>
    %146 = tpu.matmul %142, %145, %cst_42 {dimension_numbers = #tpu.dot_dimension_numbers<[1], [0], [0], [1], [0, 0, 1, 1], [], []>} : vector<8x4xf32>, vector<4x8xf32>, vector<8x8xf32> -> vector<8x8xf32>
    %cst_43 = arith.constant 5.000000e-01 : f32
    %147 = vector.broadcast %cst_43 : f32 to vector<8x8xf32>
    %148 = arith.mulf %146, %147 : vector<8x8xf32>
    %cst_44 = arith.constant dense<0xFF800000> : vector<8xf32>
    %149 = vector.multi_reduction <maximumf>, %148, %cst_44 [1] : vector<8x8xf32> to vector<8xf32>
    %150 = vector.shape_cast %149 : vector<8xf32> to vector<8x1xf32>
    %151 = vector.broadcast %150 : vector<8x1xf32> to vector<8x8xf32>
    %152 = arith.subf %148, %151 : vector<8x8xf32>
    %153 = math.exp %152 : vector<8x8xf32>
    %cst_45 = arith.constant dense<0.000000e+00> : vector<8xf32>
    %154 = vector.multi_reduction <add>, %153, %cst_45 [1] : vector<8x8xf32> to vector<8xf32>
    %155 = vector.shape_cast %154 : vector<8xf32> to vector<8x1xf32>
    %156 = tpu.reciprocal %155 : vector<8x1xf32> -> vector<8x1xf32>
    %157 = vector.broadcast %156 : vector<8x1xf32> to vector<8x8xf32>
    %158 = arith.mulf %153, %157 : vector<8x8xf32>
    %cst_46 = arith.constant dense<0.000000e+00> : vector<8x4xf32>
    %159 = tpu.matmul %158, %144, %cst_46 {dimension_numbers = #tpu.dot_dimension_numbers<[1], [0], [0], [1], [0, 0, 1, 1], [], []>} : vector<8x8xf32>, vector<8x4xf32>, vector<8x4xf32> -> vector<8x4xf32>
    %160 = vector.extract_strided_slice %8 {offsets = [24, 0], sizes = [4, 32], strides = [1, 1]} : vector<32x32xf32> to vector<4x32xf32>
    %cst_47 = arith.constant dense<0.000000e+00> : vector<8x32xf32>
    %161 = tpu.matmul %159, %160, %cst_47 {dimension_numbers = #tpu.dot_dimension_numbers<[1], [0], [0], [1], [0, 0, 1, 1], [], []>} : vector<8x4xf32>, vector<4x32xf32>, vector<8x32xf32> -> vector<8x32xf32>
    %162 = arith.addf %141, %161 : vector<8x32xf32>
    %163 = vector.extract_strided_slice %12 {offsets = [0, 28], sizes = [8, 4], strides = [1, 1]} : vector<8x32xf32> to vector<8x4xf32>
    %164 = vector.extract_strided_slice %13 {offsets = [0, 28], sizes = [8, 4], strides = [1, 1]} : vector<8x32xf32> to vector<8x4xf32>
    %165 = vector.extract_strided_slice %14 {offsets = [0, 28], sizes = [8, 4], strides = [1, 1]} : vector<8x32xf32> to vector<8x4xf32>
    %166 = tpu.transpose %164, [1, 0] : vector<8x4xf32> -> vector<4x8xf32>
    %cst_48 = arith.constant dense<0.000000e+00> : vector<8x8xf32>
    %167 = tpu.matmul %163, %166, %cst_48 {dimension_numbers = #tpu.dot_dimension_numbers<[1], [0], [0], [1], [0, 0, 1, 1], [], []>} : vector<8x4xf32>, vector<4x8xf32>, vector<8x8xf32> -> vector<8x8xf32>
    %cst_49 = arith.constant 5.000000e-01 : f32
    %168 = vector.broadcast %cst_49 : f32 to vector<8x8xf32>
    %169 = arith.mulf %167, %168 : vector<8x8xf32>
    %cst_50 = arith.constant dense<0xFF800000> : vector<8xf32>
    %170 = vector.multi_reduction <maximumf>, %169, %cst_50 [1] : vector<8x8xf32> to vector<8xf32>
    %171 = vector.shape_cast %170 : vector<8xf32> to vector<8x1xf32>
    %172 = vector.broadcast %171 : vector<8x1xf32> to vector<8x8xf32>
    %173 = arith.subf %169, %172 : vector<8x8xf32>
    %174 = math.exp %173 : vector<8x8xf32>
    %cst_51 = arith.constant dense<0.000000e+00> : vector<8xf32>
    %175 = vector.multi_reduction <add>, %174, %cst_51 [1] : vector<8x8xf32> to vector<8xf32>
    %176 = vector.shape_cast %175 : vector<8xf32> to vector<8x1xf32>
    %177 = tpu.reciprocal %176 : vector<8x1xf32> -> vector<8x1xf32>
    %178 = vector.broadcast %177 : vector<8x1xf32> to vector<8x8xf32>
    %179 = arith.mulf %174, %178 : vector<8x8xf32>
    %cst_52 = arith.constant dense<0.000000e+00> : vector<8x4xf32>
    %180 = tpu.matmul %179, %165, %cst_52 {dimension_numbers = #tpu.dot_dimension_numbers<[1], [0], [0], [1], [0, 0, 1, 1], [], []>} : vector<8x8xf32>, vector<8x4xf32>, vector<8x4xf32> -> vector<8x4xf32>
    %181 = vector.extract_strided_slice %8 {offsets = [28, 0], sizes = [4, 32], strides = [1, 1]} : vector<32x32xf32> to vector<4x32xf32>
    %cst_53 = arith.constant dense<0.000000e+00> : vector<8x32xf32>
    %182 = tpu.matmul %180, %181, %cst_53 {dimension_numbers = #tpu.dot_dimension_numbers<[1], [0], [0], [1], [0, 0, 1, 1], [], []>} : vector<8x4xf32>, vector<4x32xf32>, vector<8x32xf32> -> vector<8x32xf32>
    %183 = arith.addf %162, %182 : vector<8x32xf32>
    %184 = vector.broadcast %9 : vector<1x32xf32> to vector<8x32xf32>
    %185 = arith.addf %183, %184 : vector<8x32xf32>
    %cst_54 = arith.constant dense<0.000000e+00> : vector<32xf32>
    %186 = vector.multi_reduction <add>, %185, %cst_54 [0] : vector<8x32xf32> to vector<32xf32>
    %187 = vector.shape_cast %186 : vector<32xf32> to vector<1x32xf32>
    %cst_55 = arith.constant 8.000000e+00 : f32
    %188 = vector.broadcast %cst_55 : f32 to vector<1x32xf32>
    %189 = arith.divf %187, %188 : vector<1x32xf32>
    %cst_56 = arith.constant dense<0.000000e+00> : vector<1x24xf32>
    %190 = tpu.matmul %189, %10, %cst_56 {dimension_numbers = #tpu.dot_dimension_numbers<[1], [0], [0], [1], [0, 0, 1, 1], [], []>} : vector<1x32xf32>, vector<32x24xf32>, vector<1x24xf32> -> vector<1x24xf32>
    %191 = arith.addf %190, %11 : vector<1x24xf32>
    %192 = vector.extract_strided_slice %7 {offsets = [8, 0], sizes = [8, 32], strides = [1, 1]} : vector<16x96xf32> to vector<8x32xf32>
    %193 = vector.extract_strided_slice %7 {offsets = [8, 32], sizes = [8, 32], strides = [1, 1]} : vector<16x96xf32> to vector<8x32xf32>
    %194 = vector.extract_strided_slice %7 {offsets = [8, 64], sizes = [8, 32], strides = [1, 1]} : vector<16x96xf32> to vector<8x32xf32>
    %cst_57 = arith.constant 0.000000e+00 : f32
    %195 = vector.broadcast %cst_57 : f32 to vector<8x32xf32>
    %196 = vector.extract_strided_slice %192 {offsets = [0, 0], sizes = [8, 4], strides = [1, 1]} : vector<8x32xf32> to vector<8x4xf32>
    %197 = vector.extract_strided_slice %193 {offsets = [0, 0], sizes = [8, 4], strides = [1, 1]} : vector<8x32xf32> to vector<8x4xf32>
    %198 = vector.extract_strided_slice %194 {offsets = [0, 0], sizes = [8, 4], strides = [1, 1]} : vector<8x32xf32> to vector<8x4xf32>
    %199 = tpu.transpose %197, [1, 0] : vector<8x4xf32> -> vector<4x8xf32>
    %cst_58 = arith.constant dense<0.000000e+00> : vector<8x8xf32>
    %200 = tpu.matmul %196, %199, %cst_58 {dimension_numbers = #tpu.dot_dimension_numbers<[1], [0], [0], [1], [0, 0, 1, 1], [], []>} : vector<8x4xf32>, vector<4x8xf32>, vector<8x8xf32> -> vector<8x8xf32>
    %cst_59 = arith.constant 5.000000e-01 : f32
    %201 = vector.broadcast %cst_59 : f32 to vector<8x8xf32>
    %202 = arith.mulf %200, %201 : vector<8x8xf32>
    %cst_60 = arith.constant dense<0xFF800000> : vector<8xf32>
    %203 = vector.multi_reduction <maximumf>, %202, %cst_60 [1] : vector<8x8xf32> to vector<8xf32>
    %204 = vector.shape_cast %203 : vector<8xf32> to vector<8x1xf32>
    %205 = vector.broadcast %204 : vector<8x1xf32> to vector<8x8xf32>
    %206 = arith.subf %202, %205 : vector<8x8xf32>
    %207 = math.exp %206 : vector<8x8xf32>
    %cst_61 = arith.constant dense<0.000000e+00> : vector<8xf32>
    %208 = vector.multi_reduction <add>, %207, %cst_61 [1] : vector<8x8xf32> to vector<8xf32>
    %209 = vector.shape_cast %208 : vector<8xf32> to vector<8x1xf32>
    %210 = tpu.reciprocal %209 : vector<8x1xf32> -> vector<8x1xf32>
    %211 = vector.broadcast %210 : vector<8x1xf32> to vector<8x8xf32>
    %212 = arith.mulf %207, %211 : vector<8x8xf32>
    %cst_62 = arith.constant dense<0.000000e+00> : vector<8x4xf32>
    %213 = tpu.matmul %212, %198, %cst_62 {dimension_numbers = #tpu.dot_dimension_numbers<[1], [0], [0], [1], [0, 0, 1, 1], [], []>} : vector<8x8xf32>, vector<8x4xf32>, vector<8x4xf32> -> vector<8x4xf32>
    %214 = vector.extract_strided_slice %8 {offsets = [0, 0], sizes = [4, 32], strides = [1, 1]} : vector<32x32xf32> to vector<4x32xf32>
    %cst_63 = arith.constant dense<0.000000e+00> : vector<8x32xf32>
    %215 = tpu.matmul %213, %214, %cst_63 {dimension_numbers = #tpu.dot_dimension_numbers<[1], [0], [0], [1], [0, 0, 1, 1], [], []>} : vector<8x4xf32>, vector<4x32xf32>, vector<8x32xf32> -> vector<8x32xf32>
    %216 = arith.addf %195, %215 : vector<8x32xf32>
    %217 = vector.extract_strided_slice %192 {offsets = [0, 4], sizes = [8, 4], strides = [1, 1]} : vector<8x32xf32> to vector<8x4xf32>
    %218 = vector.extract_strided_slice %193 {offsets = [0, 4], sizes = [8, 4], strides = [1, 1]} : vector<8x32xf32> to vector<8x4xf32>
    %219 = vector.extract_strided_slice %194 {offsets = [0, 4], sizes = [8, 4], strides = [1, 1]} : vector<8x32xf32> to vector<8x4xf32>
    %220 = tpu.transpose %218, [1, 0] : vector<8x4xf32> -> vector<4x8xf32>
    %cst_64 = arith.constant dense<0.000000e+00> : vector<8x8xf32>
    %221 = tpu.matmul %217, %220, %cst_64 {dimension_numbers = #tpu.dot_dimension_numbers<[1], [0], [0], [1], [0, 0, 1, 1], [], []>} : vector<8x4xf32>, vector<4x8xf32>, vector<8x8xf32> -> vector<8x8xf32>
    %cst_65 = arith.constant 5.000000e-01 : f32
    %222 = vector.broadcast %cst_65 : f32 to vector<8x8xf32>
    %223 = arith.mulf %221, %222 : vector<8x8xf32>
    %cst_66 = arith.constant dense<0xFF800000> : vector<8xf32>
    %224 = vector.multi_reduction <maximumf>, %223, %cst_66 [1] : vector<8x8xf32> to vector<8xf32>
    %225 = vector.shape_cast %224 : vector<8xf32> to vector<8x1xf32>
    %226 = vector.broadcast %225 : vector<8x1xf32> to vector<8x8xf32>
    %227 = arith.subf %223, %226 : vector<8x8xf32>
    %228 = math.exp %227 : vector<8x8xf32>
    %cst_67 = arith.constant dense<0.000000e+00> : vector<8xf32>
    %229 = vector.multi_reduction <add>, %228, %cst_67 [1] : vector<8x8xf32> to vector<8xf32>
    %230 = vector.shape_cast %229 : vector<8xf32> to vector<8x1xf32>
    %231 = tpu.reciprocal %230 : vector<8x1xf32> -> vector<8x1xf32>
    %232 = vector.broadcast %231 : vector<8x1xf32> to vector<8x8xf32>
    %233 = arith.mulf %228, %232 : vector<8x8xf32>
    %cst_68 = arith.constant dense<0.000000e+00> : vector<8x4xf32>
    %234 = tpu.matmul %233, %219, %cst_68 {dimension_numbers = #tpu.dot_dimension_numbers<[1], [0], [0], [1], [0, 0, 1, 1], [], []>} : vector<8x8xf32>, vector<8x4xf32>, vector<8x4xf32> -> vector<8x4xf32>
    %235 = vector.extract_strided_slice %8 {offsets = [4, 0], sizes = [4, 32], strides = [1, 1]} : vector<32x32xf32> to vector<4x32xf32>
    %cst_69 = arith.constant dense<0.000000e+00> : vector<8x32xf32>
    %236 = tpu.matmul %234, %235, %cst_69 {dimension_numbers = #tpu.dot_dimension_numbers<[1], [0], [0], [1], [0, 0, 1, 1], [], []>} : vector<8x4xf32>, vector<4x32xf32>, vector<8x32xf32> -> vector<8x32xf32>
    %237 = arith.addf %216, %236 : vector<8x32xf32>
    %238 = vector.extract_strided_slice %192 {offsets = [0, 8], sizes = [8, 4], strides = [1, 1]} : vector<8x32xf32> to vector<8x4xf32>
    %239 = vector.extract_strided_slice %193 {offsets = [0, 8], sizes = [8, 4], strides = [1, 1]} : vector<8x32xf32> to vector<8x4xf32>
    %240 = vector.extract_strided_slice %194 {offsets = [0, 8], sizes = [8, 4], strides = [1, 1]} : vector<8x32xf32> to vector<8x4xf32>
    %241 = tpu.transpose %239, [1, 0] : vector<8x4xf32> -> vector<4x8xf32>
    %cst_70 = arith.constant dense<0.000000e+00> : vector<8x8xf32>
    %242 = tpu.matmul %238, %241, %cst_70 {dimension_numbers = #tpu.dot_dimension_numbers<[1], [0], [0], [1], [0, 0, 1, 1], [], []>} : vector<8x4xf32>, vector<4x8xf32>, vector<8x8xf32> -> vector<8x8xf32>
    %cst_71 = arith.constant 5.000000e-01 : f32
    %243 = vector.broadcast %cst_71 : f32 to vector<8x8xf32>
    %244 = arith.mulf %242, %243 : vector<8x8xf32>
    %cst_72 = arith.constant dense<0xFF800000> : vector<8xf32>
    %245 = vector.multi_reduction <maximumf>, %244, %cst_72 [1] : vector<8x8xf32> to vector<8xf32>
    %246 = vector.shape_cast %245 : vector<8xf32> to vector<8x1xf32>
    %247 = vector.broadcast %246 : vector<8x1xf32> to vector<8x8xf32>
    %248 = arith.subf %244, %247 : vector<8x8xf32>
    %249 = math.exp %248 : vector<8x8xf32>
    %cst_73 = arith.constant dense<0.000000e+00> : vector<8xf32>
    %250 = vector.multi_reduction <add>, %249, %cst_73 [1] : vector<8x8xf32> to vector<8xf32>
    %251 = vector.shape_cast %250 : vector<8xf32> to vector<8x1xf32>
    %252 = tpu.reciprocal %251 : vector<8x1xf32> -> vector<8x1xf32>
    %253 = vector.broadcast %252 : vector<8x1xf32> to vector<8x8xf32>
    %254 = arith.mulf %249, %253 : vector<8x8xf32>
    %cst_74 = arith.constant dense<0.000000e+00> : vector<8x4xf32>
    %255 = tpu.matmul %254, %240, %cst_74 {dimension_numbers = #tpu.dot_dimension_numbers<[1], [0], [0], [1], [0, 0, 1, 1], [], []>} : vector<8x8xf32>, vector<8x4xf32>, vector<8x4xf32> -> vector<8x4xf32>
    %256 = vector.extract_strided_slice %8 {offsets = [8, 0], sizes = [4, 32], strides = [1, 1]} : vector<32x32xf32> to vector<4x32xf32>
    %cst_75 = arith.constant dense<0.000000e+00> : vector<8x32xf32>
    %257 = tpu.matmul %255, %256, %cst_75 {dimension_numbers = #tpu.dot_dimension_numbers<[1], [0], [0], [1], [0, 0, 1, 1], [], []>} : vector<8x4xf32>, vector<4x32xf32>, vector<8x32xf32> -> vector<8x32xf32>
    %258 = arith.addf %237, %257 : vector<8x32xf32>
    %259 = vector.extract_strided_slice %192 {offsets = [0, 12], sizes = [8, 4], strides = [1, 1]} : vector<8x32xf32> to vector<8x4xf32>
    %260 = vector.extract_strided_slice %193 {offsets = [0, 12], sizes = [8, 4], strides = [1, 1]} : vector<8x32xf32> to vector<8x4xf32>
    %261 = vector.extract_strided_slice %194 {offsets = [0, 12], sizes = [8, 4], strides = [1, 1]} : vector<8x32xf32> to vector<8x4xf32>
    %262 = tpu.transpose %260, [1, 0] : vector<8x4xf32> -> vector<4x8xf32>
    %cst_76 = arith.constant dense<0.000000e+00> : vector<8x8xf32>
    %263 = tpu.matmul %259, %262, %cst_76 {dimension_numbers = #tpu.dot_dimension_numbers<[1], [0], [0], [1], [0, 0, 1, 1], [], []>} : vector<8x4xf32>, vector<4x8xf32>, vector<8x8xf32> -> vector<8x8xf32>
    %cst_77 = arith.constant 5.000000e-01 : f32
    %264 = vector.broadcast %cst_77 : f32 to vector<8x8xf32>
    %265 = arith.mulf %263, %264 : vector<8x8xf32>
    %cst_78 = arith.constant dense<0xFF800000> : vector<8xf32>
    %266 = vector.multi_reduction <maximumf>, %265, %cst_78 [1] : vector<8x8xf32> to vector<8xf32>
    %267 = vector.shape_cast %266 : vector<8xf32> to vector<8x1xf32>
    %268 = vector.broadcast %267 : vector<8x1xf32> to vector<8x8xf32>
    %269 = arith.subf %265, %268 : vector<8x8xf32>
    %270 = math.exp %269 : vector<8x8xf32>
    %cst_79 = arith.constant dense<0.000000e+00> : vector<8xf32>
    %271 = vector.multi_reduction <add>, %270, %cst_79 [1] : vector<8x8xf32> to vector<8xf32>
    %272 = vector.shape_cast %271 : vector<8xf32> to vector<8x1xf32>
    %273 = tpu.reciprocal %272 : vector<8x1xf32> -> vector<8x1xf32>
    %274 = vector.broadcast %273 : vector<8x1xf32> to vector<8x8xf32>
    %275 = arith.mulf %270, %274 : vector<8x8xf32>
    %cst_80 = arith.constant dense<0.000000e+00> : vector<8x4xf32>
    %276 = tpu.matmul %275, %261, %cst_80 {dimension_numbers = #tpu.dot_dimension_numbers<[1], [0], [0], [1], [0, 0, 1, 1], [], []>} : vector<8x8xf32>, vector<8x4xf32>, vector<8x4xf32> -> vector<8x4xf32>
    %277 = vector.extract_strided_slice %8 {offsets = [12, 0], sizes = [4, 32], strides = [1, 1]} : vector<32x32xf32> to vector<4x32xf32>
    %cst_81 = arith.constant dense<0.000000e+00> : vector<8x32xf32>
    %278 = tpu.matmul %276, %277, %cst_81 {dimension_numbers = #tpu.dot_dimension_numbers<[1], [0], [0], [1], [0, 0, 1, 1], [], []>} : vector<8x4xf32>, vector<4x32xf32>, vector<8x32xf32> -> vector<8x32xf32>
    %279 = arith.addf %258, %278 : vector<8x32xf32>
    %280 = vector.extract_strided_slice %192 {offsets = [0, 16], sizes = [8, 4], strides = [1, 1]} : vector<8x32xf32> to vector<8x4xf32>
    %281 = vector.extract_strided_slice %193 {offsets = [0, 16], sizes = [8, 4], strides = [1, 1]} : vector<8x32xf32> to vector<8x4xf32>
    %282 = vector.extract_strided_slice %194 {offsets = [0, 16], sizes = [8, 4], strides = [1, 1]} : vector<8x32xf32> to vector<8x4xf32>
    %283 = tpu.transpose %281, [1, 0] : vector<8x4xf32> -> vector<4x8xf32>
    %cst_82 = arith.constant dense<0.000000e+00> : vector<8x8xf32>
    %284 = tpu.matmul %280, %283, %cst_82 {dimension_numbers = #tpu.dot_dimension_numbers<[1], [0], [0], [1], [0, 0, 1, 1], [], []>} : vector<8x4xf32>, vector<4x8xf32>, vector<8x8xf32> -> vector<8x8xf32>
    %cst_83 = arith.constant 5.000000e-01 : f32
    %285 = vector.broadcast %cst_83 : f32 to vector<8x8xf32>
    %286 = arith.mulf %284, %285 : vector<8x8xf32>
    %cst_84 = arith.constant dense<0xFF800000> : vector<8xf32>
    %287 = vector.multi_reduction <maximumf>, %286, %cst_84 [1] : vector<8x8xf32> to vector<8xf32>
    %288 = vector.shape_cast %287 : vector<8xf32> to vector<8x1xf32>
    %289 = vector.broadcast %288 : vector<8x1xf32> to vector<8x8xf32>
    %290 = arith.subf %286, %289 : vector<8x8xf32>
    %291 = math.exp %290 : vector<8x8xf32>
    %cst_85 = arith.constant dense<0.000000e+00> : vector<8xf32>
    %292 = vector.multi_reduction <add>, %291, %cst_85 [1] : vector<8x8xf32> to vector<8xf32>
    %293 = vector.shape_cast %292 : vector<8xf32> to vector<8x1xf32>
    %294 = tpu.reciprocal %293 : vector<8x1xf32> -> vector<8x1xf32>
    %295 = vector.broadcast %294 : vector<8x1xf32> to vector<8x8xf32>
    %296 = arith.mulf %291, %295 : vector<8x8xf32>
    %cst_86 = arith.constant dense<0.000000e+00> : vector<8x4xf32>
    %297 = tpu.matmul %296, %282, %cst_86 {dimension_numbers = #tpu.dot_dimension_numbers<[1], [0], [0], [1], [0, 0, 1, 1], [], []>} : vector<8x8xf32>, vector<8x4xf32>, vector<8x4xf32> -> vector<8x4xf32>
    %298 = vector.extract_strided_slice %8 {offsets = [16, 0], sizes = [4, 32], strides = [1, 1]} : vector<32x32xf32> to vector<4x32xf32>
    %cst_87 = arith.constant dense<0.000000e+00> : vector<8x32xf32>
    %299 = tpu.matmul %297, %298, %cst_87 {dimension_numbers = #tpu.dot_dimension_numbers<[1], [0], [0], [1], [0, 0, 1, 1], [], []>} : vector<8x4xf32>, vector<4x32xf32>, vector<8x32xf32> -> vector<8x32xf32>
    %300 = arith.addf %279, %299 : vector<8x32xf32>
    %301 = vector.extract_strided_slice %192 {offsets = [0, 20], sizes = [8, 4], strides = [1, 1]} : vector<8x32xf32> to vector<8x4xf32>
    %302 = vector.extract_strided_slice %193 {offsets = [0, 20], sizes = [8, 4], strides = [1, 1]} : vector<8x32xf32> to vector<8x4xf32>
    %303 = vector.extract_strided_slice %194 {offsets = [0, 20], sizes = [8, 4], strides = [1, 1]} : vector<8x32xf32> to vector<8x4xf32>
    %304 = tpu.transpose %302, [1, 0] : vector<8x4xf32> -> vector<4x8xf32>
    %cst_88 = arith.constant dense<0.000000e+00> : vector<8x8xf32>
    %305 = tpu.matmul %301, %304, %cst_88 {dimension_numbers = #tpu.dot_dimension_numbers<[1], [0], [0], [1], [0, 0, 1, 1], [], []>} : vector<8x4xf32>, vector<4x8xf32>, vector<8x8xf32> -> vector<8x8xf32>
    %cst_89 = arith.constant 5.000000e-01 : f32
    %306 = vector.broadcast %cst_89 : f32 to vector<8x8xf32>
    %307 = arith.mulf %305, %306 : vector<8x8xf32>
    %cst_90 = arith.constant dense<0xFF800000> : vector<8xf32>
    %308 = vector.multi_reduction <maximumf>, %307, %cst_90 [1] : vector<8x8xf32> to vector<8xf32>
    %309 = vector.shape_cast %308 : vector<8xf32> to vector<8x1xf32>
    %310 = vector.broadcast %309 : vector<8x1xf32> to vector<8x8xf32>
    %311 = arith.subf %307, %310 : vector<8x8xf32>
    %312 = math.exp %311 : vector<8x8xf32>
    %cst_91 = arith.constant dense<0.000000e+00> : vector<8xf32>
    %313 = vector.multi_reduction <add>, %312, %cst_91 [1] : vector<8x8xf32> to vector<8xf32>
    %314 = vector.shape_cast %313 : vector<8xf32> to vector<8x1xf32>
    %315 = tpu.reciprocal %314 : vector<8x1xf32> -> vector<8x1xf32>
    %316 = vector.broadcast %315 : vector<8x1xf32> to vector<8x8xf32>
    %317 = arith.mulf %312, %316 : vector<8x8xf32>
    %cst_92 = arith.constant dense<0.000000e+00> : vector<8x4xf32>
    %318 = tpu.matmul %317, %303, %cst_92 {dimension_numbers = #tpu.dot_dimension_numbers<[1], [0], [0], [1], [0, 0, 1, 1], [], []>} : vector<8x8xf32>, vector<8x4xf32>, vector<8x4xf32> -> vector<8x4xf32>
    %319 = vector.extract_strided_slice %8 {offsets = [20, 0], sizes = [4, 32], strides = [1, 1]} : vector<32x32xf32> to vector<4x32xf32>
    %cst_93 = arith.constant dense<0.000000e+00> : vector<8x32xf32>
    %320 = tpu.matmul %318, %319, %cst_93 {dimension_numbers = #tpu.dot_dimension_numbers<[1], [0], [0], [1], [0, 0, 1, 1], [], []>} : vector<8x4xf32>, vector<4x32xf32>, vector<8x32xf32> -> vector<8x32xf32>
    %321 = arith.addf %300, %320 : vector<8x32xf32>
    %322 = vector.extract_strided_slice %192 {offsets = [0, 24], sizes = [8, 4], strides = [1, 1]} : vector<8x32xf32> to vector<8x4xf32>
    %323 = vector.extract_strided_slice %193 {offsets = [0, 24], sizes = [8, 4], strides = [1, 1]} : vector<8x32xf32> to vector<8x4xf32>
    %324 = vector.extract_strided_slice %194 {offsets = [0, 24], sizes = [8, 4], strides = [1, 1]} : vector<8x32xf32> to vector<8x4xf32>
    %325 = tpu.transpose %323, [1, 0] : vector<8x4xf32> -> vector<4x8xf32>
    %cst_94 = arith.constant dense<0.000000e+00> : vector<8x8xf32>
    %326 = tpu.matmul %322, %325, %cst_94 {dimension_numbers = #tpu.dot_dimension_numbers<[1], [0], [0], [1], [0, 0, 1, 1], [], []>} : vector<8x4xf32>, vector<4x8xf32>, vector<8x8xf32> -> vector<8x8xf32>
    %cst_95 = arith.constant 5.000000e-01 : f32
    %327 = vector.broadcast %cst_95 : f32 to vector<8x8xf32>
    %328 = arith.mulf %326, %327 : vector<8x8xf32>
    %cst_96 = arith.constant dense<0xFF800000> : vector<8xf32>
    %329 = vector.multi_reduction <maximumf>, %328, %cst_96 [1] : vector<8x8xf32> to vector<8xf32>
    %330 = vector.shape_cast %329 : vector<8xf32> to vector<8x1xf32>
    %331 = vector.broadcast %330 : vector<8x1xf32> to vector<8x8xf32>
    %332 = arith.subf %328, %331 : vector<8x8xf32>
    %333 = math.exp %332 : vector<8x8xf32>
    %cst_97 = arith.constant dense<0.000000e+00> : vector<8xf32>
    %334 = vector.multi_reduction <add>, %333, %cst_97 [1] : vector<8x8xf32> to vector<8xf32>
    %335 = vector.shape_cast %334 : vector<8xf32> to vector<8x1xf32>
    %336 = tpu.reciprocal %335 : vector<8x1xf32> -> vector<8x1xf32>
    %337 = vector.broadcast %336 : vector<8x1xf32> to vector<8x8xf32>
    %338 = arith.mulf %333, %337 : vector<8x8xf32>
    %cst_98 = arith.constant dense<0.000000e+00> : vector<8x4xf32>
    %339 = tpu.matmul %338, %324, %cst_98 {dimension_numbers = #tpu.dot_dimension_numbers<[1], [0], [0], [1], [0, 0, 1, 1], [], []>} : vector<8x8xf32>, vector<8x4xf32>, vector<8x4xf32> -> vector<8x4xf32>
    %340 = vector.extract_strided_slice %8 {offsets = [24, 0], sizes = [4, 32], strides = [1, 1]} : vector<32x32xf32> to vector<4x32xf32>
    %cst_99 = arith.constant dense<0.000000e+00> : vector<8x32xf32>
    %341 = tpu.matmul %339, %340, %cst_99 {dimension_numbers = #tpu.dot_dimension_numbers<[1], [0], [0], [1], [0, 0, 1, 1], [], []>} : vector<8x4xf32>, vector<4x32xf32>, vector<8x32xf32> -> vector<8x32xf32>
    %342 = arith.addf %321, %341 : vector<8x32xf32>
    %343 = vector.extract_strided_slice %192 {offsets = [0, 28], sizes = [8, 4], strides = [1, 1]} : vector<8x32xf32> to vector<8x4xf32>
    %344 = vector.extract_strided_slice %193 {offsets = [0, 28], sizes = [8, 4], strides = [1, 1]} : vector<8x32xf32> to vector<8x4xf32>
    %345 = vector.extract_strided_slice %194 {offsets = [0, 28], sizes = [8, 4], strides = [1, 1]} : vector<8x32xf32> to vector<8x4xf32>
    %346 = tpu.transpose %344, [1, 0] : vector<8x4xf32> -> vector<4x8xf32>
    %cst_100 = arith.constant dense<0.000000e+00> : vector<8x8xf32>
    %347 = tpu.matmul %343, %346, %cst_100 {dimension_numbers = #tpu.dot_dimension_numbers<[1], [0], [0], [1], [0, 0, 1, 1], [], []>} : vector<8x4xf32>, vector<4x8xf32>, vector<8x8xf32> -> vector<8x8xf32>
    %cst_101 = arith.constant 5.000000e-01 : f32
    %348 = vector.broadcast %cst_101 : f32 to vector<8x8xf32>
    %349 = arith.mulf %347, %348 : vector<8x8xf32>
    %cst_102 = arith.constant dense<0xFF800000> : vector<8xf32>
    %350 = vector.multi_reduction <maximumf>, %349, %cst_102 [1] : vector<8x8xf32> to vector<8xf32>
    %351 = vector.shape_cast %350 : vector<8xf32> to vector<8x1xf32>
    %352 = vector.broadcast %351 : vector<8x1xf32> to vector<8x8xf32>
    %353 = arith.subf %349, %352 : vector<8x8xf32>
    %354 = math.exp %353 : vector<8x8xf32>
    %cst_103 = arith.constant dense<0.000000e+00> : vector<8xf32>
    %355 = vector.multi_reduction <add>, %354, %cst_103 [1] : vector<8x8xf32> to vector<8xf32>
    %356 = vector.shape_cast %355 : vector<8xf32> to vector<8x1xf32>
    %357 = tpu.reciprocal %356 : vector<8x1xf32> -> vector<8x1xf32>
    %358 = vector.broadcast %357 : vector<8x1xf32> to vector<8x8xf32>
    %359 = arith.mulf %354, %358 : vector<8x8xf32>
    %cst_104 = arith.constant dense<0.000000e+00> : vector<8x4xf32>
    %360 = tpu.matmul %359, %345, %cst_104 {dimension_numbers = #tpu.dot_dimension_numbers<[1], [0], [0], [1], [0, 0, 1, 1], [], []>} : vector<8x8xf32>, vector<8x4xf32>, vector<8x4xf32> -> vector<8x4xf32>
    %361 = vector.extract_strided_slice %8 {offsets = [28, 0], sizes = [4, 32], strides = [1, 1]} : vector<32x32xf32> to vector<4x32xf32>
    %cst_105 = arith.constant dense<0.000000e+00> : vector<8x32xf32>
    %362 = tpu.matmul %360, %361, %cst_105 {dimension_numbers = #tpu.dot_dimension_numbers<[1], [0], [0], [1], [0, 0, 1, 1], [], []>} : vector<8x4xf32>, vector<4x32xf32>, vector<8x32xf32> -> vector<8x32xf32>
    %363 = arith.addf %342, %362 : vector<8x32xf32>
    %364 = vector.broadcast %9 : vector<1x32xf32> to vector<8x32xf32>
    %365 = arith.addf %363, %364 : vector<8x32xf32>
    %cst_106 = arith.constant dense<0.000000e+00> : vector<32xf32>
    %366 = vector.multi_reduction <add>, %365, %cst_106 [0] : vector<8x32xf32> to vector<32xf32>
    %367 = vector.shape_cast %366 : vector<32xf32> to vector<1x32xf32>
    %cst_107 = arith.constant 8.000000e+00 : f32
    %368 = vector.broadcast %cst_107 : f32 to vector<1x32xf32>
    %369 = arith.divf %367, %368 : vector<1x32xf32>
    %cst_108 = arith.constant dense<0.000000e+00> : vector<1x24xf32>
    %370 = tpu.matmul %369, %10, %cst_108 {dimension_numbers = #tpu.dot_dimension_numbers<[1], [0], [0], [1], [0, 0, 1, 1], [], []>} : vector<1x32xf32>, vector<32x24xf32>, vector<1x24xf32> -> vector<1x24xf32>
    %371 = arith.addf %370, %11 : vector<1x24xf32>
    %372 = tpu.concatenate %191, %371 in 0 : vector<1x24xf32>, vector<1x24xf32> -> vector<2x24xf32>
    %c0_109 = arith.constant 0 : index
    %c0_110 = arith.constant 0 : index
    %373 = vector.load %arg4[%c0_109, %c0_110] : memref<2x24xf32, #tpu.memory_space<vmem>>, vector<2x24xf32>
    tpu.vector_store %arg4[%c0_109, %c0_110], %372 {strides = array<i32>} : memref<2x24xf32, #tpu.memory_space<vmem>>, vector<2x24xf32>,
    return
  }
  func.func @transform_0(%arg0: i32) -> (i32, i32) {
    %c0_i32 = arith.constant 0 : i32
    %c0_i32_0 = arith.constant 0 : i32
    %c0_i32_1 = arith.constant 0 : i32
    return %c0_i32, %c0_i32_0 : i32, i32
  }
  func.func @transform_1(%arg0: i32) -> (i32, i32) {
    %c0_i32 = arith.constant 0 : i32
    %c0_i32_0 = arith.constant 0 : i32
    %c0_i32_1 = arith.constant 0 : i32
    return %c0_i32, %c0_i32_0 : i32, i32
  }
  func.func @transform_2(%arg0: i32) -> (i32, i32) {
    %c0_i32 = arith.constant 0 : i32
    %c0_i32_0 = arith.constant 0 : i32
    %c0_i32_1 = arith.constant 0 : i32
    return %c0_i32, %c0_i32_0 : i32, i32
  }
  func.func @transform_3(%arg0: i32) -> (i32, i32) {
    %c0_i32 = arith.constant 0 : i32
    %c0_i32_0 = arith.constant 0 : i32
    %c0_i32_1 = arith.constant 0 : i32
    return %c0_i32, %c0_i32_0 : i32, i32
  }
}

</mosaic_0001>

<llo_original>
// kernel: tpu_custom_call.1
$region0: #{tpu_custom_call.1}
  #allocation0 [shape = 'u32[]', space=smem, size = 0x4, offset = 0x4, fixed_abs, tag = 'smem constant byte address 0x4 - core index']
  #allocation1 [shape = 'u32[144,128]{1,0:T(1,128)}', space=vmem, size = 0x12000, scoped, tag = 'internal scratch']
  %s0 = inlined_call_operand.hbm [shape: f32[16,32], index: 0, kind: input, shape index: {}]
  %s1 = inlined_call_operand.hbm [shape: f32[32,152], index: 1, kind: input, shape index: {}]
  %s2 = inlined_call_operand.vmem [shape: f32[1,152], index: 2, kind: input, shape index: {}]
  %s3 = inlined_call_operand.hbm [shape: f32[2,24], index: 3, kind: output, shape index: {}]
  %s4 = sld [smem:[#allocation0]]
  $region30: #{tpu_custom_call.1} parent=0
    _
  %s6 = ssub.s32 1, %s4
  %s7 = scalar_select 0, %s6, %s4
  $region1: #{tpu_custom_call.1} parent=0
    #allocation2 [shape = 'u8[8192]{0}', space=vmem, size = 0x2000, scoped, tag = 'input window, operand 0, single buffered']
    #allocation3 [shape = 's32[1]{0}', space=sflag, size = 0x4, scoped, tag = 'scoped memory for tpu_custom_call.1']
    #allocation4 [shape = 's32[1]{0}', space=sflag, size = 0x4, scoped, tag = 'scoped memory for tpu_custom_call.1']
    #allocation5 [shape = 'u8[32768]{0}', space=vmem, size = 0x8000, scoped, tag = 'input window, operand 1, single buffered']
    #allocation6 [shape = 's32[1]{0}', space=sflag, size = 0x4, scoped, tag = 'scoped memory for tpu_custom_call.1']
    #allocation7 [shape = 'u8[1024]{0}', space=vmem, size = 0x400, scoped, tag = 'output window, operand 0, single buffered']
    %8 = vsyncpa [#allocation3], 0
    %9 = vsyncpa [#allocation6], 0
    %10 = vsyncpa [#allocation4], 0
    // Predicated region
    $region2: #{tpu_custom_call.1} parent=1 // pred_check
      _
    $region3: #{tpu_custom_call.1} parent=1 // pred_check_branch
      %12 = sbr.rel (0) target = $region5
    $region4: #{tpu_custom_call.1} parent=1 // pred_region
      %s14 = ssub.s32 256, 256
      %15 = vsyncadd [#allocation3], %s14
      %s16 = sshll.u32 [#allocation2], 4
      %s17 = int_to_ptr.vmem [resolvable:$true] %s16
      %22 = dma.hbm_to_vmem [thread:$0]  %s0, 256, %s17, [#allocation3], 128, 128, 8
    $region5: #{tpu_custom_call.1} parent=1 // pred_fallthru
      _
    // Predicated region
    $region6: #{tpu_custom_call.1} parent=1 // pred_check
      _
    $region7: #{tpu_custom_call.1} parent=1 // pred_check_branch
      %24 = sbr.rel (0) target = $region9
    $region8: #{tpu_custom_call.1} parent=1 // pred_region
      %s26 = ssub.s32 1024, 1024
      %27 = vsyncadd [#allocation6], %s26
      %s28 = sshll.u32 [#allocation5], 4
      %s29 = int_to_ptr.vmem [resolvable:$true] %s28
      %34 = dma.hbm_to_vmem [thread:$0]  %s1, 1024, %s29, [#allocation6], 256, 256, 16
    $region9: #{tpu_custom_call.1} parent=1 // pred_fallthru
      _
    // Predicated region
    $region10: #{tpu_custom_call.1} parent=1 // pred_check
      _
    $region11: #{tpu_custom_call.1} parent=1 // pred_check_branch
      %36 = sbr.rel (0) target = $region13
    $region12: #{tpu_custom_call.1} parent=1 // pred_region
      _
    $region13: #{tpu_custom_call.1} parent=1 // pred_fallthru
      _
    // Predicated region
    $region14: #{tpu_custom_call.1} parent=1 // pred_check
      _
    $region15: #{tpu_custom_call.1} parent=1 // pred_check_branch
      %38 = sbr.rel (0) target = $region17
    $region16: #{tpu_custom_call.1} parent=1 // pred_region
      %39 = dma.done [#allocation3], 256
    $region17: #{tpu_custom_call.1} parent=1 // pred_fallthru
      _
    // Predicated region
    $region18: #{tpu_custom_call.1} parent=1 // pred_check
      _
    $region19: #{tpu_custom_call.1} parent=1 // pred_check_branch
      %41 = sbr.rel (0) target = $region21
    $region20: #{tpu_custom_call.1} parent=1 // pred_region
      %42 = dma.done [#allocation6], 1024
    $region21: #{tpu_custom_call.1} parent=1 // pred_fallthru
      _
    %v43 = vld [vmem:[#allocation2] sm:$0xff]
    %v44 = vld [vmem:[#allocation2 + $0x8] sm:$0xff]
    %v45 = vld [vmem:[#allocation5] sm:$0xff]
    %v46 = vld [vmem:[#allocation5 + $0x8] sm:$0xff]
    %v47 = vld [vmem:[#allocation5 + $0x10] sm:$0xff]
    %v48 = vld [vmem:[#allocation5 + $0x18] sm:$0xff]
    %v49 = vld [vmem:[#allocation5 + $0x20] sm:$0xff]
    %v50 = vld [vmem:[#allocation5 + $0x28] sm:$0xff]
    %v51 = vld [vmem:[#allocation5 + $0x30] sm:$0xff]
    %v52 = vld [vmem:[#allocation5 + $0x38] sm:$0xff]
    %v53 = vld [vmem:[%s2] sm:$0x3]
    %v55 = vlaneseq
    %v56 = vshrl.u32 %v55, 7
    %v57 = vsub.s32 0, %v56
    %v58 = vrot.slane %v53, %v57
    %vm60 = vcmask 261120
    %v62 = vsel %vm60, %v43, 0
    %v65 = vsel %vm60, %v44, 0
    %67 = vmatprep.subr.mxu0 0.0
    %68 = vmatpush1.msra.mxu0 %v45
    %69 = vmatprep.subr.mxu0 0.0
    %70 = vmatpush1.msra.mxu0 %v47
    %71 = vmatprep.subr.mxu0 0.0
    %72 = vmatpush1.msra.mxu0 %v49
    %73 = vmatprep.subr.mxu0 0.0
    %74 = vmatpush1.msra.mxu0 %v51
    %75 = vmatprep.subr.mxu0 0.0
    %76 = vmatpush1.msra.mxu0 0.0
    %77 = vmatprep.subr.mxu0 0.0
    %78 = vmatpush1.msra.mxu0 0.0
    %79 = vmatprep.subr.mxu0 0.0
    %80 = vmatpush1.msra.mxu0 0.0
    %81 = vmatprep.subr.mxu0 0.0
    %82 = vmatpush1.msra.mxu0 0.0
    %83 = vmatprep.subr.mxu0 0.0
    %84 = vmatpush1.msra.mxu0 0.0
    %85 = vmatprep.subr.mxu0 0.0
    %86 = vmatpush1.msra.mxu0 0.0
    %87 = vmatprep.subr.mxu0 0.0
    %88 = vmatpush1.msra.mxu0 0.0
    %89 = vmatprep.subr.mxu0 0.0
    %90 = vmatpush1.msra.mxu0 0.0
    %91 = vmatprep.subr.mxu0 0.0
    %92 = vmatpush1.msra.mxu0 0.0
    %93 = vmatprep.subr.mxu0 0.0
    %94 = vmatpush1.msra.mxu0 0.0
    %95 = vmatprep.subr.mxu0 0.0
    %96 = vmatpush1.msra.mxu0 0.0
    %97 = vmatprep.subr.mxu0 0.0
    %98 = vmatpush1.msra.mxu0 0.0
    %99 = vmatprep.subr.mxu0 0.0
    %100 = vmatpush1.msra.mxu0 0.0
    %101 = vmatprep.subr.mxu0 0.0
    %102 = vmatpush1.msra.mxu0 0.0
    %103 = vmatprep.subr.mxu0 0.0
    %104 = vmatpush1.msra.mxu0 0.0
    %105 = vmatprep.subr.mxu0 0.0
    %106 = vmatpush1.msra.mxu0 0.0
    %107 = vmatprep.subr.mxu0 0.0
    %108 = vmatpush1.msra.mxu0 0.0
    %109 = vmatprep.subr.mxu0 0.0
    %110 = vmatpush1.msra.mxu0 0.0
    %111 = vmatprep.subr.mxu0 0.0
    %112 = vmatpush1.msra.mxu0 0.0
    %113 = vmatprep.subr.mxu0 0.0
    %114 = vmatpush1.msra.mxu0 0.0
    %115 = vmatprep.subr.mxu0 0.0
    %116 = vmatpush1.msra.mxu0 0.0
    %117 = vmatprep.subr.mxu0 0.0
    %118 = vmatpush1.msra.mxu0 0.0
    %119 = vmatprep.subr.mxu0 0.0
    %120 = vmatpush1.msra.mxu0 0.0
    %121 = vmatprep.subr.mxu0 0.0
    %122 = vmatpush1.msra.mxu0 0.0
    %123 = vmatprep.subr.mxu0 0.0
    %124 = vmatpush1.msra.mxu0 0.0
    %125 = vmatprep.subr.mxu0 0.0
    %126 = vmatpush1.msra.mxu0 0.0
    %127 = vmatprep.subr.mxu0 0.0
    %128 = vmatpush1.msra.mxu0 0.0
    %129 = vmatprep.subr.mxu0 0.0
    %130 = vmatpush1.msra.mxu0 0.0
    %131 = vmatprep.mubr.f32.mxu0 0.0
    %132 = vmatmul.mubr.f32.gmra.mrb[0].mxu0 %v62
    %v133 = vpop.f32.mrb[0].mxu0
    %v134 = vadd.f32 %v58, %v133
    %v135 = vpop.f32.mrb[0].mxu0
    %136 = vmatprep.mubr.f32.mxu0 0.0
    %137 = vmatmul.mubr.f32.gmra.mrb[0].mxu0 %v65
    %v138 = vpop.f32.mrb[0].mxu0
    %v139 = vadd.f32 %v58, %v138
    %v140 = vpop.f32.mrb[0].mxu0
    %141 = vdwg.mxu0
    %143 = vrot.lane.b32.xlu0 %v134, 96
    %v144 = vpop.permute.xlu0 %143
    %vm145 = vcmask 31744
    %v146 = vsel %vm145, %v134, 0
    %v148 = vsel %vm145, %v144, 0
    %150 = vmatprep.subr.mxu0 0.0
    %151 = vmatpush1.xpose.msra.mxu0 %v148
    %152 = vmatprep.subr.mxu0 0.0
    %153 = vmatpush1.xpose.msra.mxu0 0.0
    %154 = vmatprep.subr.mxu0 0.0
    %155 = vmatpush1.xpose.msra.mxu0 0.0
    %156 = vmatprep.subr.mxu0 0.0
    %157 = vmatpush1.xpose.msra.mxu0 0.0
    %158 = vmatprep.subr.mxu0 0.0
    %159 = vmatpush1.xpose.msra.mxu0 0.0
    %160 = vmatprep.subr.mxu0 0.0
    %161 = vmatpush1.xpose.msra.mxu0 0.0
    %162 = vmatprep.subr.mxu0 0.0
    %163 = vmatpush1.xpose.msra.mxu0 0.0
    %164 = vmatprep.subr.mxu0 0.0
    %165 = vmatpush1.xpose.msra.mxu0 0.0
    %166 = vmatprep.subr.mxu0 0.0
    %167 = vmatpush1.xpose.msra.mxu0 0.0
    %168 = vmatprep.subr.mxu0 0.0
    %169 = vmatpush1.xpose.msra.mxu0 0.0
    %170 = vmatprep.subr.mxu0 0.0
    %171 = vmatpush1.xpose.msra.mxu0 0.0
    %172 = vmatprep.subr.mxu0 0.0
    %173 = vmatpush1.xpose.msra.mxu0 0.0
    %174 = vmatprep.subr.mxu0 0.0
    %175 = vmatpush1.xpose.msra.mxu0 0.0
    %176 = vmatprep.subr.mxu0 0.0
    %177 = vmatpush1.xpose.msra.mxu0 0.0
    %178 = vmatprep.subr.mxu0 0.0
    %179 = vmatpush1.xpose.msra.mxu0 0.0
    %180 = vmatprep.subr.mxu0 0.0
    %181 = vmatpush1.xpose.msra.mxu0 0.0
    %182 = vmatprep.subr.mxu0 0.0
    %183 = vmatpush1.xpose.msra.mxu0 0.0
    %184 = vmatprep.subr.mxu0 0.0
    %185 = vmatpush1.xpose.msra.mxu0 0.0
    %186 = vmatprep.subr.mxu0 0.0
    %187 = vmatpush1.xpose.msra.mxu0 0.0
    %188 = vmatprep.subr.mxu0 0.0
    %189 = vmatpush1.xpose.msra.mxu0 0.0
    %190 = vmatprep.subr.mxu0 0.0
    %191 = vmatpush1.xpose.msra.mxu0 0.0
    %192 = vmatprep.subr.mxu0 0.0
    %193 = vmatpush1.xpose.msra.mxu0 0.0
    %194 = vmatprep.subr.mxu0 0.0
    %195 = vmatpush1.xpose.msra.mxu0 0.0
    %196 = vmatprep.subr.mxu0 0.0
    %197 = vmatpush1.xpose.msra.mxu0 0.0
    %198 = vmatprep.subr.mxu0 0.0
    %199 = vmatpush1.xpose.msra.mxu0 0.0
    %200 = vmatprep.subr.mxu0 0.0
    %201 = vmatpush1.xpose.msra.mxu0 0.0
    %202 = vmatprep.subr.mxu0 0.0
    %203 = vmatpush1.xpose.msra.mxu0 0.0
    %204 = vmatprep.subr.mxu0 0.0
    %205 = vmatpush1.xpose.msra.mxu0 0.0
    %206 = vmatprep.subr.mxu0 0.0
    %207 = vmatpush1.xpose.msra.mxu0 0.0
    %208 = vmatprep.subr.mxu0 0.0
    %209 = vmatpush1.xpose.msra.mxu0 0.0
    %210 = vmatprep.subr.mxu0 0.0
    %211 = vmatpush1.xpose.msra.mxu0 0.0
    %212 = vmatprep.subr.mxu0 0.0
    %213 = vmatpush1.xpose.msra.mxu0 0.0
    %214 = vmatprep.mubr.f32.mxu0 0.0
    %215 = vmatmul.mubr.f32.gmra.mrb[0].mxu0 %v146
    %v216 = vpop.f32.mrb[0].mxu0
    %v217 = vadd.f32 0.0, %v216
    %v218 = vpop.f32.mrb[0].mxu0
    %219 = vdwg.mxu0
    %v220 = vmul.f32 %v217, 0.5
    %vm221 = vcmask 64512
    %v222 = vsel %vm221, %v220, -inf
    %223 = vmax.xlane.f32.xlu0 %v222
    %v224 = vpop.xlane.xlu0 %223
    %v225 = vsub.f32 %v220, %v224
    %v226 = vmul.f32 %v225, 1.442695
    %v227 = vpow.pop %v226
    %v228 = vsel %vm221, %v227, 0.0
    %229 = vadd.xlane.f32.xlu0 %v228
    %v230 = vpop.xlane.xlu0 %229
    %v231 = vrcp.pop %v230
    %v232 = vmul.f32 %v227, %v231
    %233 = vrot.lane.b32.xlu0 %v134, 64
    %v234 = vpop.permute.xlu0 %233
    %v237 = vsel %vm221, %v232, 0
    %239 = vmatprep.subr.mxu0 0.0
    %240 = vmatpush1.msra.mxu0 %v234
    %241 = vmatprep.subr.mxu0 0.0
    %242 = vmatpush1.msra.mxu0 0.0
    %243 = vmatprep.subr.mxu0 0.0
    %244 = vmatpush1.msra.mxu0 0.0
    %245 = vmatprep.subr.mxu0 0.0
    %246 = vmatpush1.msra.mxu0 0.0
    %247 = vmatprep.subr.mxu0 0.0
    %248 = vmatpush1.msra.mxu0 0.0
    %249 = vmatprep.subr.mxu0 0.0
    %250 = vmatpush1.msra.mxu0 0.0
    %251 = vmatprep.subr.mxu0 0.0
    %252 = vmatpush1.msra.mxu0 0.0
    %253 = vmatprep.subr.mxu0 0.0
    %254 = vmatpush1.msra.mxu0 0.0
    %255 = vmatprep.subr.mxu0 0.0
    %256 = vmatpush1.msra.mxu0 0.0
    %257 = vmatprep.subr.mxu0 0.0
    %258 = vmatpush1.msra.mxu0 0.0
    %259 = vmatprep.subr.mxu0 0.0
    %260 = vmatpush1.msra.mxu0 0.0
    %261 = vmatprep.subr.mxu0 0.0
    %262 = vmatpush1.msra.mxu0 0.0
    %263 = vmatprep.subr.mxu0 0.0
    %264 = vmatpush1.msra.mxu0 0.0
    %265 = vmatprep.subr.mxu0 0.0
    %266 = vmatpush1.msra.mxu0 0.0
    %267 = vmatprep.subr.mxu0 0.0
    %268 = vmatpush1.msra.mxu0 0.0
    %269 = vmatprep.subr.mxu0 0.0
    %270 = vmatpush1.msra.mxu0 0.0
    %271 = vmatprep.subr.mxu0 0.0
    %272 = vmatpush1.msra.mxu0 0.0
    %273 = vmatprep.subr.mxu0 0.0
    %274 = vmatpush1.msra.mxu0 0.0
    %275 = vmatprep.subr.mxu0 0.0
    %276 = vmatpush1.msra.mxu0 0.0
    %277 = vmatprep.subr.mxu0 0.0
    %278 = vmatpush1.msra.mxu0 0.0
    %279 = vmatprep.subr.mxu0 0.0
    %280 = vmatpush1.msra.mxu0 0.0
    %281 = vmatprep.subr.mxu0 0.0
    %282 = vmatpush1.msra.mxu0 0.0
    %283 = vmatprep.subr.mxu0 0.0
    %284 = vmatpush1.msra.mxu0 0.0
    %285 = vmatprep.subr.mxu0 0.0
    %286 = vmatpush1.msra.mxu0 0.0
    %287 = vmatprep.subr.mxu0 0.0
    %288 = vmatpush1.msra.mxu0 0.0
    %289 = vmatprep.subr.mxu0 0.0
    %290 = vmatpush1.msra.mxu0 0.0
    %291 = vmatprep.subr.mxu0 0.0
    %292 = vmatpush1.msra.mxu0 0.0
    %293 = vmatprep.subr.mxu0 0.0
    %294 = vmatpush1.msra.mxu0 0.0
    %295 = vmatprep.subr.mxu0 0.0
    %296 = vmatpush1.msra.mxu0 0.0
    %297 = vmatprep.subr.mxu0 0.0
    %298 = vmatpush1.msra.mxu0 0.0
    %299 = vmatprep.subr.mxu0 0.0
    %300 = vmatpush1.msra.mxu0 0.0
    %301 = vmatprep.subr.mxu0 0.0
    %302 = vmatpush1.msra.mxu0 0.0
    %303 = vmatprep.mubr.f32.mxu0 0.0
    %304 = vmatmul.mubr.f32.gmra.mrb[0].mxu0 %v237
    %v305 = vpop.f32.mrb[0].mxu0
    %v306 = vadd.f32 0.0, %v305
    %v307 = vpop.f32.mrb[0].mxu0
    %308 = vdwg.mxu0
    %309 = vrot.lane.b32.xlu0 %v134, 124
    %v310 = vpop.permute.xlu0 %309
    %311 = vrot.lane.b32.xlu0 %v134, 92
    %v312 = vpop.permute.xlu0 %311
    %v313 = vsel %vm145, %v310, 0
    %v315 = vsel %vm145, %v312, 0
    %317 = vmatprep.subr.mxu0 0.0
    %318 = vmatpush1.xpose.msra.mxu0 %v315
    %319 = vmatprep.subr.mxu0 0.0
    %320 = vmatpush1.xpose.msra.mxu0 0.0
    %321 = vmatprep.subr.mxu0 0.0
    %322 = vmatpush1.xpose.msra.mxu0 0.0
    %323 = vmatprep.subr.mxu0 0.0
    %324 = vmatpush1.xpose.msra.mxu0 0.0
    %325 = vmatprep.subr.mxu0 0.0
    %326 = vmatpush1.xpose.msra.mxu0 0.0
    %327 = vmatprep.subr.mxu0 0.0
    %328 = vmatpush1.xpose.msra.mxu0 0.0
    %329 = vmatprep.subr.mxu0 0.0
    %330 = vmatpush1.xpose.msra.mxu0 0.0
    %331 = vmatprep.subr.mxu0 0.0
    %332 = vmatpush1.xpose.msra.mxu0 0.0
    %333 = vmatprep.subr.mxu0 0.0
    %334 = vmatpush1.xpose.msra.mxu0 0.0
    %335 = vmatprep.subr.mxu0 0.0
    %336 = vmatpush1.xpose.msra.mxu0 0.0
    %337 = vmatprep.subr.mxu0 0.0
    %338 = vmatpush1.xpose.msra.mxu0 0.0
    %339 = vmatprep.subr.mxu0 0.0
    %340 = vmatpush1.xpose.msra.mxu0 0.0
    %341 = vmatprep.subr.mxu0 0.0
    %342 = vmatpush1.xpose.msra.mxu0 0.0
    %343 = vmatprep.subr.mxu0 0.0
    %344 = vmatpush1.xpose.msra.mxu0 0.0
    %345 = vmatprep.subr.mxu0 0.0
    %346 = vmatpush1.xpose.msra.mxu0 0.0
    %347 = vmatprep.subr.mxu0 0.0
    %348 = vmatpush1.xpose.msra.mxu0 0.0
    %349 = vmatprep.subr.mxu0 0.0
    %350 = vmatpush1.xpose.msra.mxu0 0.0
    %351 = vmatprep.subr.mxu0 0.0
    %352 = vmatpush1.xpose.msra.mxu0 0.0
    %353 = vmatprep.subr.mxu0 0.0
    %354 = vmatpush1.xpose.msra.mxu0 0.0
    %355 = vmatprep.subr.mxu0 0.0
    %356 = vmatpush1.xpose.msra.mxu0 0.0
    %357 = vmatprep.subr.mxu0 0.0
    %358 = vmatpush1.xpose.msra.mxu0 0.0
    %359 = vmatprep.subr.mxu0 0.0
    %360 = vmatpush1.xpose.msra.mxu0 0.0
    %361 = vmatprep.subr.mxu0 0.0
    %362 = vmatpush1.xpose.msra.mxu0 0.0
    %363 = vmatprep.subr.mxu0 0.0
    %364 = vmatpush1.xpose.msra.mxu0 0.0
    %365 = vmatprep.subr.mxu0 0.0
    %366 = vmatpush1.xpose.msra.mxu0 0.0
    %367 = vmatprep.subr.mxu0 0.0
    %368 = vmatpush1.xpose.msra.mxu0 0.0
    %369 = vmatprep.subr.mxu0 0.0
    %370 = vmatpush1.xpose.msra.mxu0 0.0
    %371 = vmatprep.subr.mxu0 0.0
    %372 = vmatpush1.xpose.msra.mxu0 0.0
    %373 = vmatprep.subr.mxu0 0.0
    %374 = vmatpush1.xpose.msra.mxu0 0.0
    %375 = vmatprep.subr.mxu0 0.0
    %376 = vmatpush1.xpose.msra.mxu0 0.0
    %377 = vmatprep.subr.mxu0 0.0
    %378 = vmatpush1.xpose.msra.mxu0 0.0
    %379 = vmatprep.subr.mxu0 0.0
    %380 = vmatpush1.xpose.msra.mxu0 0.0
    %381 = vmatprep.mubr.f32.mxu0 0.0
    %382 = vmatmul.mubr.f32.gmra.mrb[0].mxu0 %v313
    %v383 = vpop.f32.mrb[0].mxu0
    %v384 = vadd.f32 0.0, %v383
    %v385 = vpop.f32.mrb[0].mxu0
    %386 = vdwg.mxu0
    %v387 = vmul.f32 %v384, 0.5
    %v388 = vsel %vm221, %v387, -inf
    %389 = vmax.xlane.f32.xlu0 %v388
    %v390 = vpop.xlane.xlu0 %389
    %v391 = vsub.f32 %v387, %v390
    %v392 = vmul.f32 %v391, 1.442695
    %v393 = vpow.pop %v392
    %v394 = vsel %vm221, %v393, 0.0
    %395 = vadd.xlane.f32.xlu0 %v394
    %v396 = vpop.xlane.xlu0 %395
    %v397 = vrcp.pop %v396
    %v398 = vmul.f32 %v393, %v397
    %399 = vrot.lane.b32.xlu0 %v134, 60
    %v400 = vpop.permute.xlu0 %399
    %v403 = vsel %vm221, %v398, 0
    %405 = vmatprep.subr.mxu0 0.0
    %406 = vmatpush1.msra.mxu0 %v400
    %407 = vmatprep.subr.mxu0 0.0
    %408 = vmatpush1.msra.mxu0 0.0
    %409 = vmatprep.subr.mxu0 0.0
    %410 = vmatpush1.msra.mxu0 0.0
    %411 = vmatprep.subr.mxu0 0.0
    %412 = vmatpush1.msra.mxu0 0.0
    %413 = vmatprep.subr.mxu0 0.0
    %414 = vmatpush1.msra.mxu0 0.0
    %415 = vmatprep.subr.mxu0 0.0
    %416 = vmatpush1.msra.mxu0 0.0
    %417 = vmatprep.subr.mxu0 0.0
    %418 = vmatpush1.msra.mxu0 0.0
    %419 = vmatprep.subr.mxu0 0.0
    %420 = vmatpush1.msra.mxu0 0.0
    %421 = vmatprep.subr.mxu0 0.0
    %422 = vmatpush1.msra.mxu0 0.0
    %423 = vmatprep.subr.mxu0 0.0
    %424 = vmatpush1.msra.mxu0 0.0
    %425 = vmatprep.subr.mxu0 0.0
    %426 = vmatpush1.msra.mxu0 0.0
    %427 = vmatprep.subr.mxu0 0.0
    %428 = vmatpush1.msra.mxu0 0.0
    %429 = vmatprep.subr.mxu0 0.0
    %430 = vmatpush1.msra.mxu0 0.0
    %431 = vmatprep.subr.mxu0 0.0
    %432 = vmatpush1.msra.mxu0 0.0
    %433 = vmatprep.subr.mxu0 0.0
    %434 = vmatpush1.msra.mxu0 0.0
    %435 = vmatprep.subr.mxu0 0.0
    %436 = vmatpush1.msra.mxu0 0.0
    %437 = vmatprep.subr.mxu0 0.0
    %438 = vmatpush1.msra.mxu0 0.0
    %439 = vmatprep.subr.mxu0 0.0
    %440 = vmatpush1.msra.mxu0 0.0
    %441 = vmatprep.subr.mxu0 0.0
    %442 = vmatpush1.msra.mxu0 0.0
    %443 = vmatprep.subr.mxu0 0.0
    %444 = vmatpush1.msra.mxu0 0.0
    %445 = vmatprep.subr.mxu0 0.0
    %446 = vmatpush1.msra.mxu0 0.0
    %447 = vmatprep.subr.mxu0 0.0
    %448 = vmatpush1.msra.mxu0 0.0
    %449 = vmatprep.subr.mxu0 0.0
    %450 = vmatpush1.msra.mxu0 0.0
    %451 = vmatprep.subr.mxu0 0.0
    %452 = vmatpush1.msra.mxu0 0.0
    %453 = vmatprep.subr.mxu0 0.0
    %454 = vmatpush1.msra.mxu0 0.0
    %455 = vmatprep.subr.mxu0 0.0
    %456 = vmatpush1.msra.mxu0 0.0
    %457 = vmatprep.subr.mxu0 0.0
    %458 = vmatpush1.msra.mxu0 0.0
    %459 = vmatprep.subr.mxu0 0.0
    %460 = vmatpush1.msra.mxu0 0.0
    %461 = vmatprep.subr.mxu0 0.0
    %462 = vmatpush1.msra.mxu0 0.0
    %463 = vmatprep.subr.mxu0 0.0
    %464 = vmatpush1.msra.mxu0 0.0
    %465 = vmatprep.subr.mxu0 0.0
    %466 = vmatpush1.msra.mxu0 0.0
    %467 = vmatprep.subr.mxu0 0.0
    %468 = vmatpush1.msra.mxu0 0.0
    %469 = vmatprep.mubr.f32.mxu0 0.0
    %470 = vmatmul.mubr.f32.gmra.mrb[0].mxu0 %v403
    %v471 = vpop.f32.mrb[0].mxu0
    %v472 = vadd.f32 0.0, %v471
    %v473 = vpop.f32.mrb[0].mxu0
    %474 = vdwg.mxu0
    %v476 = vrot.slane %v45, 4
    %477 = vrot.lane.b32.xlu0 %v476, 32
    %v478 = vpop.permute.xlu0 %477
    %v480 = vsel %vm145, %v472, 0
    %vm482 = vcmask 1043456
    %v483 = vsel %vm482, %v478, 0
    %485 = vmatprep.subr.mxu0 0.0
    %486 = vmatpush1.msra.mxu0 %v483
    %487 = vmatprep.subr.mxu0 0.0
    %488 = vmatpush1.msra.mxu0 0.0
    %489 = vmatprep.subr.mxu0 0.0
    %490 = vmatpush1.msra.mxu0 0.0
    %491 = vmatprep.subr.mxu0 0.0
    %492 = vmatpush1.msra.mxu0 0.0
    %493 = vmatprep.subr.mxu0 0.0
    %494 = vmatpush1.msra.mxu0 0.0
    %495 = vmatprep.subr.mxu0 0.0
    %496 = vmatpush1.msra.mxu0 0.0
    %497 = vmatprep.subr.mxu0 0.0
    %498 = vmatpush1.msra.mxu0 0.0
    %499 = vmatprep.subr.mxu0 0.0
    %500 = vmatpush1.msra.mxu0 0.0
    %501 = vmatprep.subr.mxu0 0.0
    %502 = vmatpush1.msra.mxu0 0.0
    %503 = vmatprep.subr.mxu0 0.0
    %504 = vmatpush1.msra.mxu0 0.0
    %505 = vmatprep.subr.mxu0 0.0
    %506 = vmatpush1.msra.mxu0 0.0
    %507 = vmatprep.subr.mxu0 0.0
    %508 = vmatpush1.msra.mxu0 0.0
    %509 = vmatprep.subr.mxu0 0.0
    %510 = vmatpush1.msra.mxu0 0.0
    %511 = vmatprep.subr.mxu0 0.0
    %512 = vmatpush1.msra.mxu0 0.0
    %513 = vmatprep.subr.mxu0 0.0
    %514 = vmatpush1.msra.mxu0 0.0
    %515 = vmatprep.subr.mxu0 0.0
    %516 = vmatpush1.msra.mxu0 0.0
    %517 = vmatprep.subr.mxu0 0.0
    %518 = vmatpush1.msra.mxu0 0.0
    %519 = vmatprep.subr.mxu0 0.0
    %520 = vmatpush1.msra.mxu0 0.0
    %521 = vmatprep.subr.mxu0 0.0
    %522 = vmatpush1.msra.mxu0 0.0
    %523 = vmatprep.subr.mxu0 0.0
    %524 = vmatpush1.msra.mxu0 0.0
    %525 = vmatprep.subr.mxu0 0.0
    %526 = vmatpush1.msra.mxu0 0.0
    %527 = vmatprep.subr.mxu0 0.0
    %528 = vmatpush1.msra.mxu0 0.0
    %529 = vmatprep.subr.mxu0 0.0
    %530 = vmatpush1.msra.mxu0 0.0
    %531 = vmatprep.subr.mxu0 0.0
    %532 = vmatpush1.msra.mxu0 0.0
    %533 = vmatprep.subr.mxu0 0.0
    %534 = vmatpush1.msra.mxu0 0.0
    %535 = vmatprep.subr.mxu0 0.0
    %536 = vmatpush1.msra.mxu0 0.0
    %537 = vmatprep.subr.mxu0 0.0
    %538 = vmatpush1.msra.mxu0 0.0
    %539 = vmatprep.subr.mxu0 0.0
    %540 = vmatpush1.msra.mxu0 0.0
    %541 = vmatprep.subr.mxu0 0.0
    %542 = vmatpush1.msra.mxu0 0.0
    %543 = vmatprep.subr.mxu0 0.0
    %544 = vmatpush1.msra.mxu0 0.0
    %545 = vmatprep.subr.mxu0 0.0
    %546 = vmatpush1.msra.mxu0 0.0
    %547 = vmatprep.subr.mxu0 0.0
    %548 = vmatpush1.msra.mxu0 0.0
    %549 = vmatprep.mubr.f32.mxu0 0.0
    %550 = vmatmul.mubr.f32.gmra.mrb[0].mxu0 %v480
    %v551 = vpop.f32.mrb[0].mxu0
    %v552 = vadd.f32 0.0, %v551
    %v553 = vpop.f32.mrb[0].mxu0
    %554 = vdwg.mxu0
    %555 = vrot.lane.b32.xlu0 %v45, 32
    %v556 = vpop.permute.xlu0 %555
    %v558 = vsel %vm145, %v306, 0
    %v560 = vsel %vm482, %v556, 0
    %562 = vmatprep.subr.mxu0 0.0
    %563 = vmatpush1.msra.mxu0 %v560
    %564 = vmatprep.subr.mxu0 0.0
    %565 = vmatpush1.msra.mxu0 0.0
    %566 = vmatprep.subr.mxu0 0.0
    %567 = vmatpush1.msra.mxu0 0.0
    %568 = vmatprep.subr.mxu0 0.0
    %569 = vmatpush1.msra.mxu0 0.0
    %570 = vmatprep.subr.mxu0 0.0
    %571 = vmatpush1.msra.mxu0 0.0
    %572 = vmatprep.subr.mxu0 0.0
    %573 = vmatpush1.msra.mxu0 0.0
    %574 = vmatprep.subr.mxu0 0.0
    %575 = vmatpush1.msra.mxu0 0.0
    %576 = vmatprep.subr.mxu0 0.0
    %577 = vmatpush1.msra.mxu0 0.0
    %578 = vmatprep.subr.mxu0 0.0
    %579 = vmatpush1.msra.mxu0 0.0
    %580 = vmatprep.subr.mxu0 0.0
    %581 = vmatpush1.msra.mxu0 0.0
    %582 = vmatprep.subr.mxu0 0.0
    %583 = vmatpush1.msra.mxu0 0.0
    %584 = vmatprep.subr.mxu0 0.0
    %585 = vmatpush1.msra.mxu0 0.0
    %586 = vmatprep.subr.mxu0 0.0
    %587 = vmatpush1.msra.mxu0 0.0
    %588 = vmatprep.subr.mxu0 0.0
    %589 = vmatpush1.msra.mxu0 0.0
    %590 = vmatprep.subr.mxu0 0.0
    %591 = vmatpush1.msra.mxu0 0.0
    %592 = vmatprep.subr.mxu0 0.0
    %593 = vmatpush1.msra.mxu0 0.0
    %594 = vmatprep.subr.mxu0 0.0
    %595 = vmatpush1.msra.mxu0 0.0
    %596 = vmatprep.subr.mxu0 0.0
    %597 = vmatpush1.msra.mxu0 0.0
    %598 = vmatprep.subr.mxu0 0.0
    %599 = vmatpush1.msra.mxu0 0.0
    %600 = vmatprep.subr.mxu0 0.0
    %601 = vmatpush1.msra.mxu0 0.0
    %602 = vmatprep.subr.mxu0 0.0
    %603 = vmatpush1.msra.mxu0 0.0
    %604 = vmatprep.subr.mxu0 0.0
    %605 = vmatpush1.msra.mxu0 0.0
    %606 = vmatprep.subr.mxu0 0.0
    %607 = vmatpush1.msra.mxu0 0.0
    %608 = vmatprep.subr.mxu0 0.0
    %609 = vmatpush1.msra.mxu0 0.0
    %610 = vmatprep.subr.mxu0 0.0
    %611 = vmatpush1.msra.mxu0 0.0
    %612 = vmatprep.subr.mxu0 0.0
    %613 = vmatpush1.msra.mxu0 0.0
    %614 = vmatprep.subr.mxu0 0.0
    %615 = vmatpush1.msra.mxu0 0.0
    %616 = vmatprep.subr.mxu0 0.0
    %617 = vmatpush1.msra.mxu0 0.0
    %618 = vmatprep.subr.mxu0 0.0
    %619 = vmatpush1.msra.mxu0 0.0
    %620 = vmatprep.subr.mxu0 0.0
    %621 = vmatpush1.msra.mxu0 0.0
    %622 = vmatprep.subr.mxu0 0.0
    %623 = vmatpush1.msra.mxu0 0.0
    %624 = vmatprep.subr.mxu0 0.0
    %625 = vmatpush1.msra.mxu0 0.0
    %626 = vmatprep.mubr.f32.mxu0 0.0
    %627 = vmatmul.mubr.f32.gmra.mrb[0].mxu0 %v558
    %v628 = vpop.f32.mrb[0].mxu0
    %v629 = vadd.f32 %v552, %v628
    %v630 = vpop.f32.mrb[0].mxu0
    %631 = vdwg.mxu0
    %632 = vrot.lane.b32.xlu0 %v134, 120
    %v633 = vpop.permute.xlu0 %632
    %634 = vrot.lane.b32.xlu0 %v134, 88
    %v635 = vpop.permute.xlu0 %634
    %v636 = vsel %vm145, %v633, 0
    %v638 = vsel %vm145, %v635, 0
    %640 = vmatprep.subr.mxu0 0.0
    %641 = vmatpush1.xpose.msra.mxu0 %v638
    %642 = vmatprep.subr.mxu0 0.0
    %643 = vmatpush1.xpose.msra.mxu0 0.0
    %644 = vmatprep.subr.mxu0 0.0
    %645 = vmatpush1.xpose.msra.mxu0 0.0
    %646 = vmatprep.subr.mxu0 0.0
    %647 = vmatpush1.xpose.msra.mxu0 0.0
    %648 = vmatprep.subr.mxu0 0.0
    %649 = vmatpush1.xpose.msra.mxu0 0.0
    %650 = vmatprep.subr.mxu0 0.0
    %651 = vmatpush1.xpose.msra.mxu0 0.0
    %652 = vmatprep.subr.mxu0 0.0
    %653 = vmatpush1.xpose.msra.mxu0 0.0
    %654 = vmatprep.subr.mxu0 0.0
    %655 = vmatpush1.xpose.msra.mxu0 0.0
    %656 = vmatprep.subr.mxu0 0.0
    %657 = vmatpush1.xpose.msra.mxu0 0.0
    %658 = vmatprep.subr.mxu0 0.0
    %659 = vmatpush1.xpose.msra.mxu0 0.0
    %660 = vmatprep.subr.mxu0 0.0
    %661 = vmatpush1.xpose.msra.mxu0 0.0
    %662 = vmatprep.subr.mxu0 0.0
    %663 = vmatpush1.xpose.msra.mxu0 0.0
    %664 = vmatprep.subr.mxu0 0.0
    %665 = vmatpush1.xpose.msra.mxu0 0.0
    %666 = vmatprep.subr.mxu0 0.0
    %667 = vmatpush1.xpose.msra.mxu0 0.0
    %668 = vmatprep.subr.mxu0 0.0
    %669 = vmatpush1.xpose.msra.mxu0 0.0
    %670 = vmatprep.subr.mxu0 0.0
    %671 = vmatpush1.xpose.msra.mxu0 0.0
    %672 = vmatprep.subr.mxu0 0.0
    %673 = vmatpush1.xpose.msra.mxu0 0.0
    %674 = vmatprep.subr.mxu0 0.0
    %675 = vmatpush1.xpose.msra.mxu0 0.0
    %676 = vmatprep.subr.mxu0 0.0
    %677 = vmatpush1.xpose.msra.mxu0 0.0
    %678 = vmatprep.subr.mxu0 0.0
    %679 = vmatpush1.xpose.msra.mxu0 0.0
    %680 = vmatprep.subr.mxu0 0.0
    %681 = vmatpush1.xpose.msra.mxu0 0.0
    %682 = vmatprep.subr.mxu0 0.0
    %683 = vmatpush1.xpose.msra.mxu0 0.0
    %684 = vmatprep.subr.mxu0 0.0
    %685 = vmatpush1.xpose.msra.mxu0 0.0
    %686 = vmatprep.subr.mxu0 0.0
    %687 = vmatpush1.xpose.msra.mxu0 0.0
    %688 = vmatprep.subr.mxu0 0.0
    %689 = vmatpush1.xpose.msra.mxu0 0.0
    %690 = vmatprep.subr.mxu0 0.0
    %691 = vmatpush1.xpose.msra.mxu0 0.0
    %692 = vmatprep.subr.mxu0 0.0
    %693 = vmatpush1.xpose.msra.mxu0 0.0
    %694 = vmatprep.subr.mxu0 0.0
    %695 = vmatpush1.xpose.msra.mxu0 0.0
    %696 = vmatprep.subr.mxu0 0.0
    %697 = vmatpush1.xpose.msra.mxu0 0.0
    %698 = vmatprep.subr.mxu0 0.0
    %699 = vmatpush1.xpose.msra.mxu0 0.0
    %700 = vmatprep.subr.mxu0 0.0
    %701 = vmatpush1.xpose.msra.mxu0 0.0
    %702 = vmatprep.subr.mxu0 0.0
    %703 = vmatpush1.xpose.msra.mxu0 0.0
    %704 = vmatprep.mubr.f32.mxu0 0.0
    %705 = vmatmul.mubr.f32.gmra.mrb[0].mxu0 %v636
    %v706 = vpop.f32.mrb[0].mxu0
    %v707 = vadd.f32 0.0, %v706
    %v708 = vpop.f32.mrb[0].mxu0
    %709 = vdwg.mxu0
    %v710 = vmul.f32 %v707, 0.5
    %v711 = vsel %vm221, %v710, -inf
    %712 = vmax.xlane.f32.xlu0 %v711
    %v713 = vpop.xlane.xlu0 %712
    %v714 = vsub.f32 %v710, %v713
    %v715 = vmul.f32 %v714, 1.442695
    %v716 = vpow.pop %v715
    %v717 = vsel %vm221, %v716, 0.0
    %718 = vadd.xlane.f32.xlu0 %v717
    %v719 = vpop.xlane.xlu0 %718
    %v720 = vrcp.pop %v719
    %v721 = vmul.f32 %v716, %v720
    %722 = vrot.lane.b32.xlu0 %v134, 56
    %v723 = vpop.permute.xlu0 %722
    %v726 = vsel %vm221, %v721, 0
    %728 = vmatprep.subr.mxu0 0.0
    %729 = vmatpush1.msra.mxu0 %v723
    %730 = vmatprep.subr.mxu0 0.0
    %731 = vmatpush1.msra.mxu0 0.0
    %732 = vmatprep.subr.mxu0 0.0
    %733 = vmatpush1.msra.mxu0 0.0
    %734 = vmatprep.subr.mxu0 0.0
    %735 = vmatpush1.msra.mxu0 0.0
    %736 = vmatprep.subr.mxu0 0.0
    %737 = vmatpush1.msra.mxu0 0.0
    %738 = vmatprep.subr.mxu0 0.0
    %739 = vmatpush1.msra.mxu0 0.0
    %740 = vmatprep.subr.mxu0 0.0
    %741 = vmatpush1.msra.mxu0 0.0
    %742 = vmatprep.subr.mxu0 0.0
    %743 = vmatpush1.msra.mxu0 0.0
    %744 = vmatprep.subr.mxu0 0.0
    %745 = vmatpush1.msra.mxu0 0.0
    %746 = vmatprep.subr.mxu0 0.0
    %747 = vmatpush1.msra.mxu0 0.0
    %748 = vmatprep.subr.mxu0 0.0
    %749 = vmatpush1.msra.mxu0 0.0
    %750 = vmatprep.subr.mxu0 0.0
    %751 = vmatpush1.msra.mxu0 0.0
    %752 = vmatprep.subr.mxu0 0.0
    %753 = vmatpush1.msra.mxu0 0.0
    %754 = vmatprep.subr.mxu0 0.0
    %755 = vmatpush1.msra.mxu0 0.0
    %756 = vmatprep.subr.mxu0 0.0
    %757 = vmatpush1.msra.mxu0 0.0
    %758 = vmatprep.subr.mxu0 0.0
    %759 = vmatpush1.msra.mxu0 0.0
    %760 = vmatprep.subr.mxu0 0.0
    %761 = vmatpush1.msra.mxu0 0.0
    %762 = vmatprep.subr.mxu0 0.0
    %763 = vmatpush1.msra.mxu0 0.0
    %764 = vmatprep.subr.mxu0 0.0
    %765 = vmatpush1.msra.mxu0 0.0
    %766 = vmatprep.subr.mxu0 0.0
    %767 = vmatpush1.msra.mxu0 0.0
    %768 = vmatprep.subr.mxu0 0.0
    %769 = vmatpush1.msra.mxu0 0.0
    %770 = vmatprep.subr.mxu0 0.0
    %771 = vmatpush1.msra.mxu0 0.0
    %772 = vmatprep.subr.mxu0 0.0
    %773 = vmatpush1.msra.mxu0 0.0
    %774 = vmatprep.subr.mxu0 0.0
    %775 = vmatpush1.msra.mxu0 0.0
    %776 = vmatprep.subr.mxu0 0.0
    %777 = vmatpush1.msra.mxu0 0.0
    %778 = vmatprep.subr.mxu0 0.0
    %779 = vmatpush1.msra.mxu0 0.0
    %780 = vmatprep.subr.mxu0 0.0
    %781 = vmatpush1.msra.mxu0 0.0
    %782 = vmatprep.subr.mxu0 0.0
    %783 = vmatpush1.msra.mxu0 0.0
    %784 = vmatprep.subr.mxu0 0.0
    %785 = vmatpush1.msra.mxu0 0.0
    %786 = vmatprep.subr.mxu0 0.0
    %787 = vmatpush1.msra.mxu0 0.0
    %788 = vmatprep.subr.mxu0 0.0
    %789 = vmatpush1.msra.mxu0 0.0
    %790 = vmatprep.subr.mxu0 0.0
    %791 = vmatpush1.msra.mxu0 0.0
    %792 = vmatprep.mubr.f32.mxu0 0.0
    %793 = vmatmul.mubr.f32.gmra.mrb[0].mxu0 %v726
    %v794 = vpop.f32.mrb[0].mxu0
    %v795 = vadd.f32 0.0, %v794
    %v796 = vpop.f32.mrb[0].mxu0
    %797 = vdwg.mxu0
    %799 = vrot.lane.b32.xlu0 %v47, 32
    %v800 = vpop.permute.xlu0 %799
    %v802 = vsel %vm145, %v795, 0
    %v804 = vsel %vm482, %v800, 0
    %806 = vmatprep.subr.mxu0 0.0
    %807 = vmatpush1.msra.mxu0 %v804
    %808 = vmatprep.subr.mxu0 0.0
    %809 = vmatpush1.msra.mxu0 0.0
    %810 = vmatprep.subr.mxu0 0.0
    %811 = vmatpush1.msra.mxu0 0.0
    %812 = vmatprep.subr.mxu0 0.0
    %813 = vmatpush1.msra.mxu0 0.0
    %814 = vmatprep.subr.mxu0 0.0
    %815 = vmatpush1.msra.mxu0 0.0
    %816 = vmatprep.subr.mxu0 0.0
    %817 = vmatpush1.msra.mxu0 0.0
    %818 = vmatprep.subr.mxu0 0.0
    %819 = vmatpush1.msra.mxu0 0.0
    %820 = vmatprep.subr.mxu0 0.0
    %821 = vmatpush1.msra.mxu0 0.0
    %822 = vmatprep.subr.mxu0 0.0
    %823 = vmatpush1.msra.mxu0 0.0
    %824 = vmatprep.subr.mxu0 0.0
    %825 = vmatpush1.msra.mxu0 0.0
    %826 = vmatprep.subr.mxu0 0.0
    %827 = vmatpush1.msra.mxu0 0.0
    %828 = vmatprep.subr.mxu0 0.0
    %829 = vmatpush1.msra.mxu0 0.0
    %830 = vmatprep.subr.mxu0 0.0
    %831 = vmatpush1.msra.mxu0 0.0
    %832 = vmatprep.subr.mxu0 0.0
    %833 = vmatpush1.msra.mxu0 0.0
    %834 = vmatprep.subr.mxu0 0.0
    %835 = vmatpush1.msra.mxu0 0.0
    %836 = vmatprep.subr.mxu0 0.0
    %837 = vmatpush1.msra.mxu0 0.0
    %838 = vmatprep.subr.mxu0 0.0
    %839 = vmatpush1.msra.mxu0 0.0
    %840 = vmatprep.subr.mxu0 0.0
    %841 = vmatpush1.msra.mxu0 0.0
    %842 = vmatprep.subr.mxu0 0.0
    %843 = vmatpush1.msra.mxu0 0.0
    %844 = vmatprep.subr.mxu0 0.0
    %845 = vmatpush1.msra.mxu0 0.0
    %846 = vmatprep.subr.mxu0 0.0
    %847 = vmatpush1.msra.mxu0 0.0
    %848 = vmatprep.subr.mxu0 0.0
    %849 = vmatpush1.msra.mxu0 0.0
    %850 = vmatprep.subr.mxu0 0.0
    %851 = vmatpush1.msra.mxu0 0.0
    %852 = vmatprep.subr.mxu0 0.0
    %853 = vmatpush1.msra.mxu0 0.0
    %854 = vmatprep.subr.mxu0 0.0
    %855 = vmatpush1.msra.mxu0 0.0
    %856 = vmatprep.subr.mxu0 0.0
    %857 = vmatpush1.msra.mxu0 0.0
    %858 = vmatprep.subr.mxu0 0.0
    %859 = vmatpush1.msra.mxu0 0.0
    %860 = vmatprep.subr.mxu0 0.0
    %861 = vmatpush1.msra.mxu0 0.0
    %862 = vmatprep.subr.mxu0 0.0
    %863 = vmatpush1.msra.mxu0 0.0
    %864 = vmatprep.subr.mxu0 0.0
    %865 = vmatpush1.msra.mxu0 0.0
    %866 = vmatprep.subr.mxu0 0.0
    %867 = vmatpush1.msra.mxu0 0.0
    %868 = vmatprep.subr.mxu0 0.0
    %869 = vmatpush1.msra.mxu0 0.0
    %870 = vmatprep.mubr.f32.mxu0 0.0
    %871 = vmatmul.mubr.f32.gmra.mrb[0].mxu0 %v802
    %v872 = vpop.f32.mrb[0].mxu0
    %v873 = vadd.f32 0.0, %v872
    %v874 = vpop.f32.mrb[0].mxu0
    %875 = vdwg.mxu0
    %v876 = vadd.f32 %v629, %v873
    %877 = vrot.lane.b32.xlu0 %v134, 116
    %v878 = vpop.permute.xlu0 %877
    %879 = vrot.lane.b32.xlu0 %v134, 84
    %v880 = vpop.permute.xlu0 %879
    %v881 = vsel %vm145, %v878, 0
    %v883 = vsel %vm145, %v880, 0
    %885 = vmatprep.subr.mxu0 0.0
    %886 = vmatpush1.xpose.msra.mxu0 %v883
    %887 = vmatprep.subr.mxu0 0.0
    %888 = vmatpush1.xpose.msra.mxu0 0.0
    %889 = vmatprep.subr.mxu0 0.0
    %890 = vmatpush1.xpose.msra.mxu0 0.0
    %891 = vmatprep.subr.mxu0 0.0
    %892 = vmatpush1.xpose.msra.mxu0 0.0
    %893 = vmatprep.subr.mxu0 0.0
    %894 = vmatpush1.xpose.msra.mxu0 0.0
    %895 = vmatprep.subr.mxu0 0.0
    %896 = vmatpush1.xpose.msra.mxu0 0.0
    %897 = vmatprep.subr.mxu0 0.0
    %898 = vmatpush1.xpose.msra.mxu0 0.0
    %899 = vmatprep.subr.mxu0 0.0
    %900 = vmatpush1.xpose.msra.mxu0 0.0
    %901 = vmatprep.subr.mxu0 0.0
    %902 = vmatpush1.xpose.msra.mxu0 0.0
    %903 = vmatprep.subr.mxu0 0.0
    %904 = vmatpush1.xpose.msra.mxu0 0.0
    %905 = vmatprep.subr.mxu0 0.0
    %906 = vmatpush1.xpose.msra.mxu0 0.0
    %907 = vmatprep.subr.mxu0 0.0
    %908 = vmatpush1.xpose.msra.mxu0 0.0
    %909 = vmatprep.subr.mxu0 0.0
    %910 = vmatpush1.xpose.msra.mxu0 0.0
    %911 = vmatprep.subr.mxu0 0.0
    %912 = vmatpush1.xpose.msra.mxu0 0.0
    %913 = vmatprep.subr.mxu0 0.0
    %914 = vmatpush1.xpose.msra.mxu0 0.0
    %915 = vmatprep.subr.mxu0 0.0
    %916 = vmatpush1.xpose.msra.mxu0 0.0
    %917 = vmatprep.subr.mxu0 0.0
    %918 = vmatpush1.xpose.msra.mxu0 0.0
    %919 = vmatprep.subr.mxu0 0.0
    %920 = vmatpush1.xpose.msra.mxu0 0.0
    %921 = vmatprep.subr.mxu0 0.0
    %922 = vmatpush1.xpose.msra.mxu0 0.0
    %923 = vmatprep.subr.mxu0 0.0
    %924 = vmatpush1.xpose.msra.mxu0 0.0
    %925 = vmatprep.subr.mxu0 0.0
    %926 = vmatpush1.xpose.msra.mxu0 0.0
    %927 = vmatprep.subr.mxu0 0.0
    %928 = vmatpush1.xpose.msra.mxu0 0.0
    %929 = vmatprep.subr.mxu0 0.0
    %930 = vmatpush1.xpose.msra.mxu0 0.0
    %931 = vmatprep.subr.mxu0 0.0
    %932 = vmatpush1.xpose.msra.mxu0 0.0
    %933 = vmatprep.subr.mxu0 0.0
    %934 = vmatpush1.xpose.msra.mxu0 0.0
    %935 = vmatprep.subr.mxu0 0.0
    %936 = vmatpush1.xpose.msra.mxu0 0.0
    %937 = vmatprep.subr.mxu0 0.0
    %938 = vmatpush1.xpose.msra.mxu0 0.0
    %939 = vmatprep.subr.mxu0 0.0
    %940 = vmatpush1.xpose.msra.mxu0 0.0
    %941 = vmatprep.subr.mxu0 0.0
    %942 = vmatpush1.xpose.msra.mxu0 0.0
    %943 = vmatprep.subr.mxu0 0.0
    %944 = vmatpush1.xpose.msra.mxu0 0.0
    %945 = vmatprep.subr.mxu0 0.0
    %946 = vmatpush1.xpose.msra.mxu0 0.0
    %947 = vmatprep.subr.mxu0 0.0
    %948 = vmatpush1.xpose.msra.mxu0 0.0
    %949 = vmatprep.mubr.f32.mxu0 0.0
    %950 = vmatmul.mubr.f32.gmra.mrb[0].mxu0 %v881
    %v951 = vpop.f32.mrb[0].mxu0
    %v952 = vadd.f32 0.0, %v951
    %v953 = vpop.f32.mrb[0].mxu0
    %954 = vdwg.mxu0
    %v955 = vmul.f32 %v952, 0.5
    %v956 = vsel %vm221, %v955, -inf
    %957 = vmax.xlane.f32.xlu0 %v956
    %v958 = vpop.xlane.xlu0 %957
    %v959 = vsub.f32 %v955, %v958
    %v960 = vmul.f32 %v959, 1.442695
    %v961 = vpow.pop %v960
    %v962 = vsel %vm221, %v961, 0.0
    %963 = vadd.xlane.f32.xlu0 %v962
    %v964 = vpop.xlane.xlu0 %963
    %v965 = vrcp.pop %v964
    %v966 = vmul.f32 %v961, %v965
    %967 = vrot.lane.b32.xlu0 %v134, 52
    %v968 = vpop.permute.xlu0 %967
    %v971 = vsel %vm221, %v966, 0
    %973 = vmatprep.subr.mxu0 0.0
    %974 = vmatpush1.msra.mxu0 %v968
    %975 = vmatprep.subr.mxu0 0.0
    %976 = vmatpush1.msra.mxu0 0.0
    %977 = vmatprep.subr.mxu0 0.0
    %978 = vmatpush1.msra.mxu0 0.0
    %979 = vmatprep.subr.mxu0 0.0
    %980 = vmatpush1.msra.mxu0 0.0
    %981 = vmatprep.subr.mxu0 0.0
    %982 = vmatpush1.msra.mxu0 0.0
    %983 = vmatprep.subr.mxu0 0.0
    %984 = vmatpush1.msra.mxu0 0.0
    %985 = vmatprep.subr.mxu0 0.0
    %986 = vmatpush1.msra.mxu0 0.0
    %987 = vmatprep.subr.mxu0 0.0
    %988 = vmatpush1.msra.mxu0 0.0
    %989 = vmatprep.subr.mxu0 0.0
    %990 = vmatpush1.msra.mxu0 0.0
    %991 = vmatprep.subr.mxu0 0.0
    %992 = vmatpush1.msra.mxu0 0.0
    %993 = vmatprep.subr.mxu0 0.0
    %994 = vmatpush1.msra.mxu0 0.0
    %995 = vmatprep.subr.mxu0 0.0
    %996 = vmatpush1.msra.mxu0 0.0
    %997 = vmatprep.subr.mxu0 0.0
    %998 = vmatpush1.msra.mxu0 0.0
    %999 = vmatprep.subr.mxu0 0.0
    %1000 = vmatpush1.msra.mxu0 0.0
    %1001 = vmatprep.subr.mxu0 0.0
    %1002 = vmatpush1.msra.mxu0 0.0
    %1003 = vmatprep.subr.mxu0 0.0
    %1004 = vmatpush1.msra.mxu0 0.0
    %1005 = vmatprep.subr.mxu0 0.0
    %1006 = vmatpush1.msra.mxu0 0.0
    %1007 = vmatprep.subr.mxu0 0.0
    %1008 = vmatpush1.msra.mxu0 0.0
    %1009 = vmatprep.subr.mxu0 0.0
    %1010 = vmatpush1.msra.mxu0 0.0
    %1011 = vmatprep.subr.mxu0 0.0
    %1012 = vmatpush1.msra.mxu0 0.0
    %1013 = vmatprep.subr.mxu0 0.0
    %1014 = vmatpush1.msra.mxu0 0.0
    %1015 = vmatprep.subr.mxu0 0.0
    %1016 = vmatpush1.msra.mxu0 0.0
    %1017 = vmatprep.subr.mxu0 0.0
    %1018 = vmatpush1.msra.mxu0 0.0
    %1019 = vmatprep.subr.mxu0 0.0
    %1020 = vmatpush1.msra.mxu0 0.0
    %1021 = vmatprep.subr.mxu0 0.0
    %1022 = vmatpush1.msra.mxu0 0.0
    %1023 = vmatprep.subr.mxu0 0.0
    %1024 = vmatpush1.msra.mxu0 0.0
    %1025 = vmatprep.subr.mxu0 0.0
    %1026 = vmatpush1.msra.mxu0 0.0
    %1027 = vmatprep.subr.mxu0 0.0
    %1028 = vmatpush1.msra.mxu0 0.0
    %1029 = vmatprep.subr.mxu0 0.0
    %1030 = vmatpush1.msra.mxu0 0.0
    %1031 = vmatprep.subr.mxu0 0.0
    %1032 = vmatpush1.msra.mxu0 0.0
    %1033 = vmatprep.subr.mxu0 0.0
    %1034 = vmatpush1.msra.mxu0 0.0
    %1035 = vmatprep.subr.mxu0 0.0
    %1036 = vmatpush1.msra.mxu0 0.0
    %1037 = vmatprep.mubr.f32.mxu0 0.0
    %1038 = vmatmul.mubr.f32.gmra.mrb[0].mxu0 %v971
    %v1039 = vpop.f32.mrb[0].mxu0
    %v1040 = vadd.f32 0.0, %v1039
    %v1041 = vpop.f32.mrb[0].mxu0
    %1042 = vdwg.mxu0
    %v1043 = vrot.slane %v47, 4
    %1044 = vrot.lane.b32.xlu0 %v1043, 32
    %v1045 = vpop.permute.xlu0 %1044
    %v1047 = vsel %vm145, %v1040, 0
    %v1049 = vsel %vm482, %v1045, 0
    %1051 = vmatprep.subr.mxu0 0.0
    %1052 = vmatpush1.msra.mxu0 %v1049
    %1053 = vmatprep.subr.mxu0 0.0
    %1054 = vmatpush1.msra.mxu0 0.0
    %1055 = vmatprep.subr.mxu0 0.0
    %1056 = vmatpush1.msra.mxu0 0.0
    %1057 = vmatprep.subr.mxu0 0.0
    %1058 = vmatpush1.msra.mxu0 0.0
    %1059 = vmatprep.subr.mxu0 0.0
    %1060 = vmatpush1.msra.mxu0 0.0
    %1061 = vmatprep.subr.mxu0 0.0
    %1062 = vmatpush1.msra.mxu0 0.0
    %1063 = vmatprep.subr.mxu0 0.0
    %1064 = vmatpush1.msra.mxu0 0.0
    %1065 = vmatprep.subr.mxu0 0.0
    %1066 = vmatpush1.msra.mxu0 0.0
    %1067 = vmatprep.subr.mxu0 0.0
    %1068 = vmatpush1.msra.mxu0 0.0
    %1069 = vmatprep.subr.mxu0 0.0
    %1070 = vmatpush1.msra.mxu0 0.0
    %1071 = vmatprep.subr.mxu0 0.0
    %1072 = vmatpush1.msra.mxu0 0.0
    %1073 = vmatprep.subr.mxu0 0.0
    %1074 = vmatpush1.msra.mxu0 0.0
    %1075 = vmatprep.subr.mxu0 0.0
    %1076 = vmatpush1.msra.mxu0 0.0
    %1077 = vmatprep.subr.mxu0 0.0
    %1078 = vmatpush1.msra.mxu0 0.0
    %1079 = vmatprep.subr.mxu0 0.0
    %1080 = vmatpush1.msra.mxu0 0.0
    %1081 = vmatprep.subr.mxu0 0.0
    %1082 = vmatpush1.msra.mxu0 0.0
    %1083 = vmatprep.subr.mxu0 0.0
    %1084 = vmatpush1.msra.mxu0 0.0
    %1085 = vmatprep.subr.mxu0 0.0
    %1086 = vmatpush1.msra.mxu0 0.0
    %1087 = vmatprep.subr.mxu0 0.0
    %1088 = vmatpush1.msra.mxu0 0.0
    %1089 = vmatprep.subr.mxu0 0.0
    %1090 = vmatpush1.msra.mxu0 0.0
    %1091 = vmatprep.subr.mxu0 0.0
    %1092 = vmatpush1.msra.mxu0 0.0
    %1093 = vmatprep.subr.mxu0 0.0
    %1094 = vmatpush1.msra.mxu0 0.0
    %1095 = vmatprep.subr.mxu0 0.0
    %1096 = vmatpush1.msra.mxu0 0.0
    %1097 = vmatprep.subr.mxu0 0.0
    %1098 = vmatpush1.msra.mxu0 0.0
    %1099 = vmatprep.subr.mxu0 0.0
    %1100 = vmatpush1.msra.mxu0 0.0
    %1101 = vmatprep.subr.mxu0 0.0
    %1102 = vmatpush1.msra.mxu0 0.0
    %1103 = vmatprep.subr.mxu0 0.0
    %1104 = vmatpush1.msra.mxu0 0.0
    %1105 = vmatprep.subr.mxu0 0.0
    %1106 = vmatpush1.msra.mxu0 0.0
    %1107 = vmatprep.subr.mxu0 0.0
    %1108 = vmatpush1.msra.mxu0 0.0
    %1109 = vmatprep.subr.mxu0 0.0
    %1110 = vmatpush1.msra.mxu0 0.0
    %1111 = vmatprep.subr.mxu0 0.0
    %1112 = vmatpush1.msra.mxu0 0.0
    %1113 = vmatprep.subr.mxu0 0.0
    %1114 = vmatpush1.msra.mxu0 0.0
    %1115 = vmatprep.mubr.f32.mxu0 0.0
    %1116 = vmatmul.mubr.f32.gmra.mrb[0].mxu0 %v1047
    %v1117 = vpop.f32.mrb[0].mxu0
    %v1118 = vadd.f32 0.0, %v1117
    %v1119 = vpop.f32.mrb[0].mxu0
    %1120 = vdwg.mxu0
    %v1121 = vadd.f32 %v876, %v1118
    %1122 = vrot.lane.b32.xlu0 %v134, 112
    %v1123 = vpop.permute.xlu0 %1122
    %1124 = vrot.lane.b32.xlu0 %v134, 80
    %v1125 = vpop.permute.xlu0 %1124
    %v1126 = vsel %vm145, %v1123, 0
    %v1128 = vsel %vm145, %v1125, 0
    %1130 = vmatprep.subr.mxu0 0.0
    %1131 = vmatpush1.xpose.msra.mxu0 %v1128
    %1132 = vmatprep.subr.mxu0 0.0
    %1133 = vmatpush1.xpose.msra.mxu0 0.0
    %1134 = vmatprep.subr.mxu0 0.0
    %1135 = vmatpush1.xpose.msra.mxu0 0.0
    %1136 = vmatprep.subr.mxu0 0.0
    %1137 = vmatpush1.xpose.msra.mxu0 0.0
    %1138 = vmatprep.subr.mxu0 0.0
    %1139 = vmatpush1.xpose.msra.mxu0 0.0
    %1140 = vmatprep.subr.mxu0 0.0
    %1141 = vmatpush1.xpose.msra.mxu0 0.0
    %1142 = vmatprep.subr.mxu0 0.0
    %1143 = vmatpush1.xpose.msra.mxu0 0.0
    %1144 = vmatprep.subr.mxu0 0.0
    %1145 = vmatpush1.xpose.msra.mxu0 0.0
    %1146 = vmatprep.subr.mxu0 0.0
    %1147 = vmatpush1.xpose.msra.mxu0 0.0
    %1148 = vmatprep.subr.mxu0 0.0
    %1149 = vmatpush1.xpose.msra.mxu0 0.0
    %1150 = vmatprep.subr.mxu0 0.0
    %1151 = vmatpush1.xpose.msra.mxu0 0.0
    %1152 = vmatprep.subr.mxu0 0.0
    %1153 = vmatpush1.xpose.msra.mxu0 0.0
    %1154 = vmatprep.subr.mxu0 0.0
    %1155 = vmatpush1.xpose.msra.mxu0 0.0
    %1156 = vmatprep.subr.mxu0 0.0
    %1157 = vmatpush1.xpose.msra.mxu0 0.0
    %1158 = vmatprep.subr.mxu0 0.0
    %1159 = vmatpush1.xpose.msra.mxu0 0.0
    %1160 = vmatprep.subr.mxu0 0.0
    %1161 = vmatpush1.xpose.msra.mxu0 0.0
    %1162 = vmatprep.subr.mxu0 0.0
    %1163 = vmatpush1.xpose.msra.mxu0 0.0
    %1164 = vmatprep.subr.mxu0 0.0
    %1165 = vmatpush1.xpose.msra.mxu0 0.0
    %1166 = vmatprep.subr.mxu0 0.0
    %1167 = vmatpush1.xpose.msra.mxu0 0.0
    %1168 = vmatprep.subr.mxu0 0.0
    %1169 = vmatpush1.xpose.msra.mxu0 0.0
    %1170 = vmatprep.subr.mxu0 0.0
    %1171 = vmatpush1.xpose.msra.mxu0 0.0
    %1172 = vmatprep.subr.mxu0 0.0
    %1173 = vmatpush1.xpose.msra.mxu0 0.0
    %1174 = vmatprep.subr.mxu0 0.0
    %1175 = vmatpush1.xpose.msra.mxu0 0.0
    %1176 = vmatprep.subr.mxu0 0.0
    %1177 = vmatpush1.xpose.msra.mxu0 0.0
    %1178 = vmatprep.subr.mxu0 0.0
    %1179 = vmatpush1.xpose.msra.mxu0 0.0
    %1180 = vmatprep.subr.mxu0 0.0
    %1181 = vmatpush1.xpose.msra.mxu0 0.0
    %1182 = vmatprep.subr.mxu0 0.0
    %1183 = vmatpush1.xpose.msra.mxu0 0.0
    %1184 = vmatprep.subr.mxu0 0.0
    %1185 = vmatpush1.xpose.msra.mxu0 0.0
    %1186 = vmatprep.subr.mxu0 0.0
    %1187 = vmatpush1.xpose.msra.mxu0 0.0
    %1188 = vmatprep.subr.mxu0 0.0
    %1189 = vmatpush1.xpose.msra.mxu0 0.0
    %1190 = vmatprep.subr.mxu0 0.0
    %1191 = vmatpush1.xpose.msra.mxu0 0.0
    %1192 = vmatprep.subr.mxu0 0.0
    %1193 = vmatpush1.xpose.msra.mxu0 0.0
    %1194 = vmatprep.mubr.f32.mxu0 0.0
    %1195 = vmatmul.mubr.f32.gmra.mrb[0].mxu0 %v1126
    %v1196 = vpop.f32.mrb[0].mxu0
    %v1197 = vadd.f32 0.0, %v1196
    %v1198 = vpop.f32.mrb[0].mxu0
    %1199 = vdwg.mxu0
    %v1200 = vmul.f32 %v1197, 0.5
    %v1201 = vsel %vm221, %v1200, -inf
    %1202 = vmax.xlane.f32.xlu0 %v1201
    %v1203 = vpop.xlane.xlu0 %1202
    %v1204 = vsub.f32 %v1200, %v1203
    %v1205 = vmul.f32 %v1204, 1.442695
    %v1206 = vpow.pop %v1205
    %v1207 = vsel %vm221, %v1206, 0.0
    %1208 = vadd.xlane.f32.xlu0 %v1207
    %v1209 = vpop.xlane.xlu0 %1208
    %v1210 = vrcp.pop %v1209
    %v1211 = vmul.f32 %v1206, %v1210
    %1212 = vrot.lane.b32.xlu0 %v134, 48
    %v1213 = vpop.permute.xlu0 %1212
    %v1216 = vsel %vm221, %v1211, 0
    %1218 = vmatprep.subr.mxu0 0.0
    %1219 = vmatpush1.msra.mxu0 %v1213
    %1220 = vmatprep.subr.mxu0 0.0
    %1221 = vmatpush1.msra.mxu0 0.0
    %1222 = vmatprep.subr.mxu0 0.0
    %1223 = vmatpush1.msra.mxu0 0.0
    %1224 = vmatprep.subr.mxu0 0.0
    %1225 = vmatpush1.msra.mxu0 0.0
    %1226 = vmatprep.subr.mxu0 0.0
    %1227 = vmatpush1.msra.mxu0 0.0
    %1228 = vmatprep.subr.mxu0 0.0
    %1229 = vmatpush1.msra.mxu0 0.0
    %1230 = vmatprep.subr.mxu0 0.0
    %1231 = vmatpush1.msra.mxu0 0.0
    %1232 = vmatprep.subr.mxu0 0.0
    %1233 = vmatpush1.msra.mxu0 0.0
    %1234 = vmatprep.subr.mxu0 0.0
    %1235 = vmatpush1.msra.mxu0 0.0
    %1236 = vmatprep.subr.mxu0 0.0
    %1237 = vmatpush1.msra.mxu0 0.0
    %1238 = vmatprep.subr.mxu0 0.0
    %1239 = vmatpush1.msra.mxu0 0.0
    %1240 = vmatprep.subr.mxu0 0.0
    %1241 = vmatpush1.msra.mxu0 0.0
    %1242 = vmatprep.subr.mxu0 0.0
    %1243 = vmatpush1.msra.mxu0 0.0
    %1244 = vmatprep.subr.mxu0 0.0
    %1245 = vmatpush1.msra.mxu0 0.0
    %1246 = vmatprep.subr.mxu0 0.0
    %1247 = vmatpush1.msra.mxu0 0.0
    %1248 = vmatprep.subr.mxu0 0.0
    %1249 = vmatpush1.msra.mxu0 0.0
    %1250 = vmatprep.subr.mxu0 0.0
    %1251 = vmatpush1.msra.mxu0 0.0
    %1252 = vmatprep.subr.mxu0 0.0
    %1253 = vmatpush1.msra.mxu0 0.0
    %1254 = vmatprep.subr.mxu0 0.0
    %1255 = vmatpush1.msra.mxu0 0.0
    %1256 = vmatprep.subr.mxu0 0.0
    %1257 = vmatpush1.msra.mxu0 0.0
    %1258 = vmatprep.subr.mxu0 0.0
    %1259 = vmatpush1.msra.mxu0 0.0
    %1260 = vmatprep.subr.mxu0 0.0
    %1261 = vmatpush1.msra.mxu0 0.0
    %1262 = vmatprep.subr.mxu0 0.0
    %1263 = vmatpush1.msra.mxu0 0.0
    %1264 = vmatprep.subr.mxu0 0.0
    %1265 = vmatpush1.msra.mxu0 0.0
    %1266 = vmatprep.subr.mxu0 0.0
    %1267 = vmatpush1.msra.mxu0 0.0
    %1268 = vmatprep.subr.mxu0 0.0
    %1269 = vmatpush1.msra.mxu0 0.0
    %1270 = vmatprep.subr.mxu0 0.0
    %1271 = vmatpush1.msra.mxu0 0.0
    %1272 = vmatprep.subr.mxu0 0.0
    %1273 = vmatpush1.msra.mxu0 0.0
    %1274 = vmatprep.subr.mxu0 0.0
    %1275 = vmatpush1.msra.mxu0 0.0
    %1276 = vmatprep.subr.mxu0 0.0
    %1277 = vmatpush1.msra.mxu0 0.0
    %1278 = vmatprep.subr.mxu0 0.0
    %1279 = vmatpush1.msra.mxu0 0.0
    %1280 = vmatprep.subr.mxu0 0.0
    %1281 = vmatpush1.msra.mxu0 0.0
    %1282 = vmatprep.mubr.f32.mxu0 0.0
    %1283 = vmatmul.mubr.f32.gmra.mrb[0].mxu0 %v1216
    %v1284 = vpop.f32.mrb[0].mxu0
    %v1285 = vadd.f32 0.0, %v1284
    %v1286 = vpop.f32.mrb[0].mxu0
    %1287 = vdwg.mxu0
    %1289 = vrot.lane.b32.xlu0 %v49, 32
    %v1290 = vpop.permute.xlu0 %1289
    %v1292 = vsel %vm145, %v1285, 0
    %v1294 = vsel %vm482, %v1290, 0
    %1296 = vmatprep.subr.mxu0 0.0
    %1297 = vmatpush1.msra.mxu0 %v1294
    %1298 = vmatprep.subr.mxu0 0.0
    %1299 = vmatpush1.msra.mxu0 0.0
    %1300 = vmatprep.subr.mxu0 0.0
    %1301 = vmatpush1.msra.mxu0 0.0
    %1302 = vmatprep.subr.mxu0 0.0
    %1303 = vmatpush1.msra.mxu0 0.0
    %1304 = vmatprep.subr.mxu0 0.0
    %1305 = vmatpush1.msra.mxu0 0.0
    %1306 = vmatprep.subr.mxu0 0.0
    %1307 = vmatpush1.msra.mxu0 0.0
    %1308 = vmatprep.subr.mxu0 0.0
    %1309 = vmatpush1.msra.mxu0 0.0
    %1310 = vmatprep.subr.mxu0 0.0
    %1311 = vmatpush1.msra.mxu0 0.0
    %1312 = vmatprep.subr.mxu0 0.0
    %1313 = vmatpush1.msra.mxu0 0.0
    %1314 = vmatprep.subr.mxu0 0.0
    %1315 = vmatpush1.msra.mxu0 0.0
    %1316 = vmatprep.subr.mxu0 0.0
    %1317 = vmatpush1.msra.mxu0 0.0
    %1318 = vmatprep.subr.mxu0 0.0
    %1319 = vmatpush1.msra.mxu0 0.0
    %1320 = vmatprep.subr.mxu0 0.0
    %1321 = vmatpush1.msra.mxu0 0.0
    %1322 = vmatprep.subr.mxu0 0.0
    %1323 = vmatpush1.msra.mxu0 0.0
    %1324 = vmatprep.subr.mxu0 0.0
    %1325 = vmatpush1.msra.mxu0 0.0
    %1326 = vmatprep.subr.mxu0 0.0
    %1327 = vmatpush1.msra.mxu0 0.0
    %1328 = vmatprep.subr.mxu0 0.0
    %1329 = vmatpush1.msra.mxu0 0.0
    %1330 = vmatprep.subr.mxu0 0.0
    %1331 = vmatpush1.msra.mxu0 0.0
    %1332 = vmatprep.subr.mxu0 0.0
    %1333 = vmatpush1.msra.mxu0 0.0
    %1334 = vmatprep.subr.mxu0 0.0
    %1335 = vmatpush1.msra.mxu0 0.0
    %1336 = vmatprep.subr.mxu0 0.0
    %1337 = vmatpush1.msra.mxu0 0.0
    %1338 = vmatprep.subr.mxu0 0.0
    %1339 = vmatpush1.msra.mxu0 0.0
    %1340 = vmatprep.subr.mxu0 0.0
    %1341 = vmatpush1.msra.mxu0 0.0
    %1342 = vmatprep.subr.mxu0 0.0
    %1343 = vmatpush1.msra.mxu0 0.0
    %1344 = vmatprep.subr.mxu0 0.0
    %1345 = vmatpush1.msra.mxu0 0.0
    %1346 = vmatprep.subr.mxu0 0.0
    %1347 = vmatpush1.msra.mxu0 0.0
    %1348 = vmatprep.subr.mxu0 0.0
    %1349 = vmatpush1.msra.mxu0 0.0
    %1350 = vmatprep.subr.mxu0 0.0
    %1351 = vmatpush1.msra.mxu0 0.0
    %1352 = vmatprep.subr.mxu0 0.0
    %1353 = vmatpush1.msra.mxu0 0.0
    %1354 = vmatprep.subr.mxu0 0.0
    %1355 = vmatpush1.msra.mxu0 0.0
    %1356 = vmatprep.subr.mxu0 0.0
    %1357 = vmatpush1.msra.mxu0 0.0
    %1358 = vmatprep.subr.mxu0 0.0
    %1359 = vmatpush1.msra.mxu0 0.0
    %1360 = vmatprep.mubr.f32.mxu0 0.0
    %1361 = vmatmul.mubr.f32.gmra.mrb[0].mxu0 %v1292
    %v1362 = vpop.f32.mrb[0].mxu0
    %v1363 = vadd.f32 0.0, %v1362
    %v1364 = vpop.f32.mrb[0].mxu0
    %1365 = vdwg.mxu0
    %v1366 = vadd.f32 %v1121, %v1363
    %1367 = vrot.lane.b32.xlu0 %v134, 108
    %v1368 = vpop.permute.xlu0 %1367
    %1369 = vrot.lane.b32.xlu0 %v134, 76
    %v1370 = vpop.permute.xlu0 %1369
    %v1371 = vsel %vm145, %v1368, 0
    %v1373 = vsel %vm145, %v1370, 0
    %1375 = vmatprep.subr.mxu0 0.0
    %1376 = vmatpush1.xpose.msra.mxu0 %v1373
    %1377 = vmatprep.subr.mxu0 0.0
    %1378 = vmatpush1.xpose.msra.mxu0 0.0
    %1379 = vmatprep.subr.mxu0 0.0
    %1380 = vmatpush1.xpose.msra.mxu0 0.0
    %1381 = vmatprep.subr.mxu0 0.0
    %1382 = vmatpush1.xpose.msra.mxu0 0.0
    %1383 = vmatprep.subr.mxu0 0.0
    %1384 = vmatpush1.xpose.msra.mxu0 0.0
    %1385 = vmatprep.subr.mxu0 0.0
    %1386 = vmatpush1.xpose.msra.mxu0 0.0
    %1387 = vmatprep.subr.mxu0 0.0
    %1388 = vmatpush1.xpose.msra.mxu0 0.0
    %1389 = vmatprep.subr.mxu0 0.0
    %1390 = vmatpush1.xpose.msra.mxu0 0.0
    %1391 = vmatprep.subr.mxu0 0.0
    %1392 = vmatpush1.xpose.msra.mxu0 0.0
    %1393 = vmatprep.subr.mxu0 0.0
    %1394 = vmatpush1.xpose.msra.mxu0 0.0
    %1395 = vmatprep.subr.mxu0 0.0
    %1396 = vmatpush1.xpose.msra.mxu0 0.0
    %1397 = vmatprep.subr.mxu0 0.0
    %1398 = vmatpush1.xpose.msra.mxu0 0.0
    %1399 = vmatprep.subr.mxu0 0.0
    %1400 = vmatpush1.xpose.msra.mxu0 0.0
    %1401 = vmatprep.subr.mxu0 0.0
    %1402 = vmatpush1.xpose.msra.mxu0 0.0
    %1403 = vmatprep.subr.mxu0 0.0
    %1404 = vmatpush1.xpose.msra.mxu0 0.0
    %1405 = vmatprep.subr.mxu0 0.0
    %1406 = vmatpush1.xpose.msra.mxu0 0.0
    %1407 = vmatprep.subr.mxu0 0.0
    %1408 = vmatpush1.xpose.msra.mxu0 0.0
    %1409 = vmatprep.subr.mxu0 0.0
    %1410 = vmatpush1.xpose.msra.mxu0 0.0
    %1411 = vmatprep.subr.mxu0 0.0
    %1412 = vmatpush1.xpose.msra.mxu0 0.0
    %1413 = vmatprep.subr.mxu0 0.0
    %1414 = vmatpush1.xpose.msra.mxu0 0.0
    %1415 = vmatprep.subr.mxu0 0.0
    %1416 = vmatpush1.xpose.msra.mxu0 0.0
    %1417 = vmatprep.subr.mxu0 0.0
    %1418 = vmatpush1.xpose.msra.mxu0 0.0
    %1419 = vmatprep.subr.mxu0 0.0
    %1420 = vmatpush1.xpose.msra.mxu0 0.0
    %1421 = vmatprep.subr.mxu0 0.0
    %1422 = vmatpush1.xpose.msra.mxu0 0.0
    %1423 = vmatprep.subr.mxu0 0.0
    %1424 = vmatpush1.xpose.msra.mxu0 0.0
    %1425 = vmatprep.subr.mxu0 0.0
    %1426 = vmatpush1.xpose.msra.mxu0 0.0
    %1427 = vmatprep.subr.mxu0 0.0
    %1428 = vmatpush1.xpose.msra.mxu0 0.0
    %1429 = vmatprep.subr.mxu0 0.0
    %1430 = vmatpush1.xpose.msra.mxu0 0.0
    %1431 = vmatprep.subr.mxu0 0.0
    %1432 = vmatpush1.xpose.msra.mxu0 0.0
    %1433 = vmatprep.subr.mxu0 0.0
    %1434 = vmatpush1.xpose.msra.mxu0 0.0
    %1435 = vmatprep.subr.mxu0 0.0
    %1436 = vmatpush1.xpose.msra.mxu0 0.0
    %1437 = vmatprep.subr.mxu0 0.0
    %1438 = vmatpush1.xpose.msra.mxu0 0.0
    %1439 = vmatprep.mubr.f32.mxu0 0.0
    %1440 = vmatmul.mubr.f32.gmra.mrb[0].mxu0 %v1371
    %v1441 = vpop.f32.mrb[0].mxu0
    %v1442 = vadd.f32 0.0, %v1441
    %v1443 = vpop.f32.mrb[0].mxu0
    %1444 = vdwg.mxu0
    %v1445 = vmul.f32 %v1442, 0.5
    %v1446 = vsel %vm221, %v1445, -inf
    %1447 = vmax.xlane.f32.xlu0 %v1446
    %v1448 = vpop.xlane.xlu0 %1447
    %v1449 = vsub.f32 %v1445, %v1448
    %v1450 = vmul.f32 %v1449, 1.442695
    %v1451 = vpow.pop %v1450
    %v1452 = vsel %vm221, %v1451, 0.0
    %1453 = vadd.xlane.f32.xlu0 %v1452
    %v1454 = vpop.xlane.xlu0 %1453
    %v1455 = vrcp.pop %v1454
    %v1456 = vmul.f32 %v1451, %v1455
    %1457 = vrot.lane.b32.xlu0 %v134, 44
    %v1458 = vpop.permute.xlu0 %1457
    %v1461 = vsel %vm221, %v1456, 0
    %1463 = vmatprep.subr.mxu0 0.0
    %1464 = vmatpush1.msra.mxu0 %v1458
    %1465 = vmatprep.subr.mxu0 0.0
    %1466 = vmatpush1.msra.mxu0 0.0
    %1467 = vmatprep.subr.mxu0 0.0
    %1468 = vmatpush1.msra.mxu0 0.0
    %1469 = vmatprep.subr.mxu0 0.0
    %1470 = vmatpush1.msra.mxu0 0.0
    %1471 = vmatprep.subr.mxu0 0.0
    %1472 = vmatpush1.msra.mxu0 0.0
    %1473 = vmatprep.subr.mxu0 0.0
    %1474 = vmatpush1.msra.mxu0 0.0
    %1475 = vmatprep.subr.mxu0 0.0
    %1476 = vmatpush1.msra.mxu0 0.0
    %1477 = vmatprep.subr.mxu0 0.0
    %1478 = vmatpush1.msra.mxu0 0.0
    %1479 = vmatprep.subr.mxu0 0.0
    %1480 = vmatpush1.msra.mxu0 0.0
    %1481 = vmatprep.subr.mxu0 0.0
    %1482 = vmatpush1.msra.mxu0 0.0
    %1483 = vmatprep.subr.mxu0 0.0
    %1484 = vmatpush1.msra.mxu0 0.0
    %1485 = vmatprep.subr.mxu0 0.0
    %1486 = vmatpush1.msra.mxu0 0.0
    %1487 = vmatprep.subr.mxu0 0.0
    %1488 = vmatpush1.msra.mxu0 0.0
    %1489 = vmatprep.subr.mxu0 0.0
    %1490 = vmatpush1.msra.mxu0 0.0
    %1491 = vmatprep.subr.mxu0 0.0
    %1492 = vmatpush1.msra.mxu0 0.0
    %1493 = vmatprep.subr.mxu0 0.0
    %1494 = vmatpush1.msra.mxu0 0.0
    %1495 = vmatprep.subr.mxu0 0.0
    %1496 = vmatpush1.msra.mxu0 0.0
    %1497 = vmatprep.subr.mxu0 0.0
    %1498 = vmatpush1.msra.mxu0 0.0
    %1499 = vmatprep.subr.mxu0 0.0
    %1500 = vmatpush1.msra.mxu0 0.0
    %1501 = vmatprep.subr.mxu0 0.0
    %1502 = vmatpush1.msra.mxu0 0.0
    %1503 = vmatprep.subr.mxu0 0.0
    %1504 = vmatpush1.msra.mxu0 0.0
    %1505 = vmatprep.subr.mxu0 0.0
    %1506 = vmatpush1.msra.mxu0 0.0
    %1507 = vmatprep.subr.mxu0 0.0
    %1508 = vmatpush1.msra.mxu0 0.0
    %1509 = vmatprep.subr.mxu0 0.0
    %1510 = vmatpush1.msra.mxu0 0.0
    %1511 = vmatprep.subr.mxu0 0.0
    %1512 = vmatpush1.msra.mxu0 0.0
    %1513 = vmatprep.subr.mxu0 0.0
    %1514 = vmatpush1.msra.mxu0 0.0
    %1515 = vmatprep.subr.mxu0 0.0
    %1516 = vmatpush1.msra.mxu0 0.0
    %1517 = vmatprep.subr.mxu0 0.0
    %1518 = vmatpush1.msra.mxu0 0.0
    %1519 = vmatprep.subr.mxu0 0.0
    %1520 = vmatpush1.msra.mxu0 0.0
    %1521 = vmatprep.subr.mxu0 0.0
    %1522 = vmatpush1.msra.mxu0 0.0
    %1523 = vmatprep.subr.mxu0 0.0
    %1524 = vmatpush1.msra.mxu0 0.0
    %1525 = vmatprep.subr.mxu0 0.0
    %1526 = vmatpush1.msra.mxu0 0.0
    %1527 = vmatprep.mubr.f32.mxu0 0.0
    %1528 = vmatmul.mubr.f32.gmra.mrb[0].mxu0 %v1461
    %v1529 = vpop.f32.mrb[0].mxu0
    %v1530 = vadd.f32 0.0, %v1529
    %v1531 = vpop.f32.mrb[0].mxu0
    %1532 = vdwg.mxu0
    %v1533 = vrot.slane %v49, 4
    %1534 = vrot.lane.b32.xlu0 %v1533, 32
    %v1535 = vpop.permute.xlu0 %1534
    %v1537 = vsel %vm145, %v1530, 0
    %v1539 = vsel %vm482, %v1535, 0
    %1541 = vmatprep.subr.mxu0 0.0
    %1542 = vmatpush1.msra.mxu0 %v1539
    %1543 = vmatprep.subr.mxu0 0.0
    %1544 = vmatpush1.msra.mxu0 0.0
    %1545 = vmatprep.subr.mxu0 0.0
    %1546 = vmatpush1.msra.mxu0 0.0
    %1547 = vmatprep.subr.mxu0 0.0
    %1548 = vmatpush1.msra.mxu0 0.0
    %1549 = vmatprep.subr.mxu0 0.0
    %1550 = vmatpush1.msra.mxu0 0.0
    %1551 = vmatprep.subr.mxu0 0.0
    %1552 = vmatpush1.msra.mxu0 0.0
    %1553 = vmatprep.subr.mxu0 0.0
    %1554 = vmatpush1.msra.mxu0 0.0
    %1555 = vmatprep.subr.mxu0 0.0
    %1556 = vmatpush1.msra.mxu0 0.0
    %1557 = vmatprep.subr.mxu0 0.0
    %1558 = vmatpush1.msra.mxu0 0.0
    %1559 = vmatprep.subr.mxu0 0.0
    %1560 = vmatpush1.msra.mxu0 0.0
    %1561 = vmatprep.subr.mxu0 0.0
    %1562 = vmatpush1.msra.mxu0 0.0
    %1563 = vmatprep.subr.mxu0 0.0
    %1564 = vmatpush1.msra.mxu0 0.0
    %1565 = vmatprep.subr.mxu0 0.0
    %1566 = vmatpush1.msra.mxu0 0.0
    %1567 = vmatprep.subr.mxu0 0.0
    %1568 = vmatpush1.msra.mxu0 0.0
    %1569 = vmatprep.subr.mxu0 0.0
    %1570 = vmatpush1.msra.mxu0 0.0
    %1571 = vmatprep.subr.mxu0 0.0
    %1572 = vmatpush1.msra.mxu0 0.0
    %1573 = vmatprep.subr.mxu0 0.0
    %1574 = vmatpush1.msra.mxu0 0.0
    %1575 = vmatprep.subr.mxu0 0.0
    %1576 = vmatpush1.msra.mxu0 0.0
    %1577 = vmatprep.subr.mxu0 0.0
    %1578 = vmatpush1.msra.mxu0 0.0
    %1579 = vmatprep.subr.mxu0 0.0
    %1580 = vmatpush1.msra.mxu0 0.0
    %1581 = vmatprep.subr.mxu0 0.0
    %1582 = vmatpush1.msra.mxu0 0.0
    %1583 = vmatprep.subr.mxu0 0.0
    %1584 = vmatpush1.msra.mxu0 0.0
    %1585 = vmatprep.subr.mxu0 0.0
    %1586 = vmatpush1.msra.mxu0 0.0
    %1587 = vmatprep.subr.mxu0 0.0
    %1588 = vmatpush1.msra.mxu0 0.0
    %1589 = vmatprep.subr.mxu0 0.0
    %1590 = vmatpush1.msra.mxu0 0.0
    %1591 = vmatprep.subr.mxu0 0.0
    %1592 = vmatpush1.msra.mxu0 0.0
    %1593 = vmatprep.subr.mxu0 0.0
    %1594 = vmatpush1.msra.mxu0 0.0
    %1595 = vmatprep.subr.mxu0 0.0
    %1596 = vmatpush1.msra.mxu0 0.0
    %1597 = vmatprep.subr.mxu0 0.0
    %1598 = vmatpush1.msra.mxu0 0.0
    %1599 = vmatprep.subr.mxu0 0.0
    %1600 = vmatpush1.msra.mxu0 0.0
    %1601 = vmatprep.subr.mxu0 0.0
    %1602 = vmatpush1.msra.mxu0 0.0
    %1603 = vmatprep.subr.mxu0 0.0
    %1604 = vmatpush1.msra.mxu0 0.0
    %1605 = vmatprep.mubr.f32.mxu0 0.0
    %1606 = vmatmul.mubr.f32.gmra.mrb[0].mxu0 %v1537
    %v1607 = vpop.f32.mrb[0].mxu0
    %v1608 = vadd.f32 0.0, %v1607
    %v1609 = vpop.f32.mrb[0].mxu0
    %1610 = vdwg.mxu0
    %v1611 = vadd.f32 %v1366, %v1608
    %1612 = vrot.lane.b32.xlu0 %v134, 104
    %v1613 = vpop.permute.xlu0 %1612
    %1614 = vrot.lane.b32.xlu0 %v134, 72
    %v1615 = vpop.permute.xlu0 %1614
    %v1616 = vsel %vm145, %v1613, 0
    %v1618 = vsel %vm145, %v1615, 0
    %1620 = vmatprep.subr.mxu0 0.0
    %1621 = vmatpush1.xpose.msra.mxu0 %v1618
    %1622 = vmatprep.subr.mxu0 0.0
    %1623 = vmatpush1.xpose.msra.mxu0 0.0
    %1624 = vmatprep.subr.mxu0 0.0
    %1625 = vmatpush1.xpose.msra.mxu0 0.0
    %1626 = vmatprep.subr.mxu0 0.0
    %1627 = vmatpush1.xpose.msra.mxu0 0.0
    %1628 = vmatprep.subr.mxu0 0.0
    %1629 = vmatpush1.xpose.msra.mxu0 0.0
    %1630 = vmatprep.subr.mxu0 0.0
    %1631 = vmatpush1.xpose.msra.mxu0 0.0
    %1632 = vmatprep.subr.mxu0 0.0
    %1633 = vmatpush1.xpose.msra.mxu0 0.0
    %1634 = vmatprep.subr.mxu0 0.0
    %1635 = vmatpush1.xpose.msra.mxu0 0.0
    %1636 = vmatprep.subr.mxu0 0.0
    %1637 = vmatpush1.xpose.msra.mxu0 0.0
    %1638 = vmatprep.subr.mxu0 0.0
    %1639 = vmatpush1.xpose.msra.mxu0 0.0
    %1640 = vmatprep.subr.mxu0 0.0
    %1641 = vmatpush1.xpose.msra.mxu0 0.0
    %1642 = vmatprep.subr.mxu0 0.0
    %1643 = vmatpush1.xpose.msra.mxu0 0.0
    %1644 = vmatprep.subr.mxu0 0.0
    %1645 = vmatpush1.xpose.msra.mxu0 0.0
    %1646 = vmatprep.subr.mxu0 0.0
    %1647 = vmatpush1.xpose.msra.mxu0 0.0
    %1648 = vmatprep.subr.mxu0 0.0
    %1649 = vmatpush1.xpose.msra.mxu0 0.0
    %1650 = vmatprep.subr.mxu0 0.0
    %1651 = vmatpush1.xpose.msra.mxu0 0.0
    %1652 = vmatprep.subr.mxu0 0.0
    %1653 = vmatpush1.xpose.msra.mxu0 0.0
    %1654 = vmatprep.subr.mxu0 0.0
    %1655 = vmatpush1.xpose.msra.mxu0 0.0
    %1656 = vmatprep.subr.mxu0 0.0
    %1657 = vmatpush1.xpose.msra.mxu0 0.0
    %1658 = vmatprep.subr.mxu0 0.0
    %1659 = vmatpush1.xpose.msra.mxu0 0.0
    %1660 = vmatprep.subr.mxu0 0.0
    %1661 = vmatpush1.xpose.msra.mxu0 0.0
    %1662 = vmatprep.subr.mxu0 0.0
    %1663 = vmatpush1.xpose.msra.mxu0 0.0
    %1664 = vmatprep.subr.mxu0 0.0
    %1665 = vmatpush1.xpose.msra.mxu0 0.0
    %1666 = vmatprep.subr.mxu0 0.0
    %1667 = vmatpush1.xpose.msra.mxu0 0.0
    %1668 = vmatprep.subr.mxu0 0.0
    %1669 = vmatpush1.xpose.msra.mxu0 0.0
    %1670 = vmatprep.subr.mxu0 0.0
    %1671 = vmatpush1.xpose.msra.mxu0 0.0
    %1672 = vmatprep.subr.mxu0 0.0
    %1673 = vmatpush1.xpose.msra.mxu0 0.0
    %1674 = vmatprep.subr.mxu0 0.0
    %1675 = vmatpush1.xpose.msra.mxu0 0.0
    %1676 = vmatprep.subr.mxu0 0.0
    %1677 = vmatpush1.xpose.msra.mxu0 0.0
    %1678 = vmatprep.subr.mxu0 0.0
    %1679 = vmatpush1.xpose.msra.mxu0 0.0
    %1680 = vmatprep.subr.mxu0 0.0
    %1681 = vmatpush1.xpose.msra.mxu0 0.0
    %1682 = vmatprep.subr.mxu0 0.0
    %1683 = vmatpush1.xpose.msra.mxu0 0.0
    %1684 = vmatprep.mubr.f32.mxu0 0.0
    %1685 = vmatmul.mubr.f32.gmra.mrb[0].mxu0 %v1616
    %v1686 = vpop.f32.mrb[0].mxu0
    %v1687 = vadd.f32 0.0, %v1686
    %v1688 = vpop.f32.mrb[0].mxu0
    %1689 = vdwg.mxu0
    %v1690 = vmul.f32 %v1687, 0.5
    %v1691 = vsel %vm221, %v1690, -inf
    %1692 = vmax.xlane.f32.xlu0 %v1691
    %v1693 = vpop.xlane.xlu0 %1692
    %v1694 = vsub.f32 %v1690, %v1693
    %v1695 = vmul.f32 %v1694, 1.442695
    %v1696 = vpow.pop %v1695
    %v1697 = vsel %vm221, %v1696, 0.0
    %1698 = vadd.xlane.f32.xlu0 %v1697
    %v1699 = vpop.xlane.xlu0 %1698
    %v1700 = vrcp.pop %v1699
    %v1701 = vmul.f32 %v1696, %v1700
    %1702 = vrot.lane.b32.xlu0 %v134, 40
    %v1703 = vpop.permute.xlu0 %1702
    %v1706 = vsel %vm221, %v1701, 0
    %1708 = vmatprep.subr.mxu0 0.0
    %1709 = vmatpush1.msra.mxu0 %v1703
    %1710 = vmatprep.subr.mxu0 0.0
    %1711 = vmatpush1.msra.mxu0 0.0
    %1712 = vmatprep.subr.mxu0 0.0
    %1713 = vmatpush1.msra.mxu0 0.0
    %1714 = vmatprep.subr.mxu0 0.0
    %1715 = vmatpush1.msra.mxu0 0.0
    %1716 = vmatprep.subr.mxu0 0.0
    %1717 = vmatpush1.msra.mxu0 0.0
    %1718 = vmatprep.subr.mxu0 0.0
    %1719 = vmatpush1.msra.mxu0 0.0
    %1720 = vmatprep.subr.mxu0 0.0
    %1721 = vmatpush1.msra.mxu0 0.0
    %1722 = vmatprep.subr.mxu0 0.0
    %1723 = vmatpush1.msra.mxu0 0.0
    %1724 = vmatprep.subr.mxu0 0.0
    %1725 = vmatpush1.msra.mxu0 0.0
    %1726 = vmatprep.subr.mxu0 0.0
    %1727 = vmatpush1.msra.mxu0 0.0
    %1728 = vmatprep.subr.mxu0 0.0
    %1729 = vmatpush1.msra.mxu0 0.0
    %1730 = vmatprep.subr.mxu0 0.0
    %1731 = vmatpush1.msra.mxu0 0.0
    %1732 = vmatprep.subr.mxu0 0.0
    %1733 = vmatpush1.msra.mxu0 0.0
    %1734 = vmatprep.subr.mxu0 0.0
    %1735 = vmatpush1.msra.mxu0 0.0
    %1736 = vmatprep.subr.mxu0 0.0
    %1737 = vmatpush1.msra.mxu0 0.0
    %1738 = vmatprep.subr.mxu0 0.0
    %1739 = vmatpush1.msra.mxu0 0.0
    %1740 = vmatprep.subr.mxu0 0.0
    %1741 = vmatpush1.msra.mxu0 0.0
    %1742 = vmatprep.subr.mxu0 0.0
    %1743 = vmatpush1.msra.mxu0 0.0
    %1744 = vmatprep.subr.mxu0 0.0
    %1745 = vmatpush1.msra.mxu0 0.0
    %1746 = vmatprep.subr.mxu0 0.0
    %1747 = vmatpush1.msra.mxu0 0.0
    %1748 = vmatprep.subr.mxu0 0.0
    %1749 = vmatpush1.msra.mxu0 0.0
    %1750 = vmatprep.subr.mxu0 0.0
    %1751 = vmatpush1.msra.mxu0 0.0
    %1752 = vmatprep.subr.mxu0 0.0
    %1753 = vmatpush1.msra.mxu0 0.0
    %1754 = vmatprep.subr.mxu0 0.0
    %1755 = vmatpush1.msra.mxu0 0.0
    %1756 = vmatprep.subr.mxu0 0.0
    %1757 = vmatpush1.msra.mxu0 0.0
    %1758 = vmatprep.subr.mxu0 0.0
    %1759 = vmatpush1.msra.mxu0 0.0
    %1760 = vmatprep.subr.mxu0 0.0
    %1761 = vmatpush1.msra.mxu0 0.0
    %1762 = vmatprep.subr.mxu0 0.0
    %1763 = vmatpush1.msra.mxu0 0.0
    %1764 = vmatprep.subr.mxu0 0.0
    %1765 = vmatpush1.msra.mxu0 0.0
    %1766 = vmatprep.subr.mxu0 0.0
    %1767 = vmatpush1.msra.mxu0 0.0
    %1768 = vmatprep.subr.mxu0 0.0
    %1769 = vmatpush1.msra.mxu0 0.0
    %1770 = vmatprep.subr.mxu0 0.0
    %1771 = vmatpush1.msra.mxu0 0.0
    %1772 = vmatprep.mubr.f32.mxu0 0.0
    %1773 = vmatmul.mubr.f32.gmra.mrb[0].mxu0 %v1706
    %v1774 = vpop.f32.mrb[0].mxu0
    %v1775 = vadd.f32 0.0, %v1774
    %v1776 = vpop.f32.mrb[0].mxu0
    %1777 = vdwg.mxu0
    %1779 = vrot.lane.b32.xlu0 %v51, 32
    %v1780 = vpop.permute.xlu0 %1779
    %v1782 = vsel %vm145, %v1775, 0
    %v1784 = vsel %vm482, %v1780, 0
    %1786 = vmatprep.subr.mxu0 0.0
    %1787 = vmatpush1.msra.mxu0 %v1784
    %1788 = vmatprep.subr.mxu0 0.0
    %1789 = vmatpush1.msra.mxu0 0.0
    %1790 = vmatprep.subr.mxu0 0.0
    %1791 = vmatpush1.msra.mxu0 0.0
    %1792 = vmatprep.subr.mxu0 0.0
    %1793 = vmatpush1.msra.mxu0 0.0
    %1794 = vmatprep.subr.mxu0 0.0
    %1795 = vmatpush1.msra.mxu0 0.0
    %1796 = vmatprep.subr.mxu0 0.0
    %1797 = vmatpush1.msra.mxu0 0.0
    %1798 = vmatprep.subr.mxu0 0.0
    %1799 = vmatpush1.msra.mxu0 0.0
    %1800 = vmatprep.subr.mxu0 0.0
    %1801 = vmatpush1.msra.mxu0 0.0
    %1802 = vmatprep.subr.mxu0 0.0
    %1803 = vmatpush1.msra.mxu0 0.0
    %1804 = vmatprep.subr.mxu0 0.0
    %1805 = vmatpush1.msra.mxu0 0.0
    %1806 = vmatprep.subr.mxu0 0.0
    %1807 = vmatpush1.msra.mxu0 0.0
    %1808 = vmatprep.subr.mxu0 0.0
    %1809 = vmatpush1.msra.mxu0 0.0
    %1810 = vmatprep.subr.mxu0 0.0
    %1811 = vmatpush1.msra.mxu0 0.0
    %1812 = vmatprep.subr.mxu0 0.0
    %1813 = vmatpush1.msra.mxu0 0.0
    %1814 = vmatprep.subr.mxu0 0.0
    %1815 = vmatpush1.msra.mxu0 0.0
    %1816 = vmatprep.subr.mxu0 0.0
    %1817 = vmatpush1.msra.mxu0 0.0
    %1818 = vmatprep.subr.mxu0 0.0
    %1819 = vmatpush1.msra.mxu0 0.0
    %1820 = vmatprep.subr.mxu0 0.0
    %1821 = vmatpush1.msra.mxu0 0.0
    %1822 = vmatprep.subr.mxu0 0.0
    %1823 = vmatpush1.msra.mxu0 0.0
    %1824 = vmatprep.subr.mxu0 0.0
    %1825 = vmatpush1.msra.mxu0 0.0
    %1826 = vmatprep.subr.mxu0 0.0
    %1827 = vmatpush1.msra.mxu0 0.0
    %1828 = vmatprep.subr.mxu0 0.0
    %1829 = vmatpush1.msra.mxu0 0.0
    %1830 = vmatprep.subr.mxu0 0.0
    %1831 = vmatpush1.msra.mxu0 0.0
    %1832 = vmatprep.subr.mxu0 0.0
    %1833 = vmatpush1.msra.mxu0 0.0
    %1834 = vmatprep.subr.mxu0 0.0
    %1835 = vmatpush1.msra.mxu0 0.0
    %1836 = vmatprep.subr.mxu0 0.0
    %1837 = vmatpush1.msra.mxu0 0.0
    %1838 = vmatprep.subr.mxu0 0.0
    %1839 = vmatpush1.msra.mxu0 0.0
    %1840 = vmatprep.subr.mxu0 0.0
    %1841 = vmatpush1.msra.mxu0 0.0
    %1842 = vmatprep.subr.mxu0 0.0
    %1843 = vmatpush1.msra.mxu0 0.0
    %1844 = vmatprep.subr.mxu0 0.0
    %1845 = vmatpush1.msra.mxu0 0.0
    %1846 = vmatprep.subr.mxu0 0.0
    %1847 = vmatpush1.msra.mxu0 0.0
    %1848 = vmatprep.subr.mxu0 0.0
    %1849 = vmatpush1.msra.mxu0 0.0
    %1850 = vmatprep.mubr.f32.mxu0 0.0
    %1851 = vmatmul.mubr.f32.gmra.mrb[0].mxu0 %v1782
    %v1852 = vpop.f32.mrb[0].mxu0
    %v1853 = vadd.f32 0.0, %v1852
    %v1854 = vpop.f32.mrb[0].mxu0
    %1855 = vdwg.mxu0
    %v1856 = vadd.f32 %v1611, %v1853
    %1857 = vrot.lane.b32.xlu0 %v134, 100
    %v1858 = vpop.permute.xlu0 %1857
    %1859 = vrot.lane.b32.xlu0 %v134, 68
    %v1860 = vpop.permute.xlu0 %1859
    %v1861 = vsel %vm145, %v1858, 0
    %v1863 = vsel %vm145, %v1860, 0
    %1865 = vmatprep.subr.mxu0 0.0
    %1866 = vmatpush1.xpose.msra.mxu0 %v1863
    %1867 = vmatprep.subr.mxu0 0.0
    %1868 = vmatpush1.xpose.msra.mxu0 0.0
    %1869 = vmatprep.subr.mxu0 0.0
    %1870 = vmatpush1.xpose.msra.mxu0 0.0
    %1871 = vmatprep.subr.mxu0 0.0
    %1872 = vmatpush1.xpose.msra.mxu0 0.0
    %1873 = vmatprep.subr.mxu0 0.0
    %1874 = vmatpush1.xpose.msra.mxu0 0.0
    %1875 = vmatprep.subr.mxu0 0.0
    %1876 = vmatpush1.xpose.msra.mxu0 0.0
    %1877 = vmatprep.subr.mxu0 0.0
    %1878 = vmatpush1.xpose.msra.mxu0 0.0
    %1879 = vmatprep.subr.mxu0 0.0
    %1880 = vmatpush1.xpose.msra.mxu0 0.0
    %1881 = vmatprep.subr.mxu0 0.0
    %1882 = vmatpush1.xpose.msra.mxu0 0.0
    %1883 = vmatprep.subr.mxu0 0.0
    %1884 = vmatpush1.xpose.msra.mxu0 0.0
    %1885 = vmatprep.subr.mxu0 0.0
    %1886 = vmatpush1.xpose.msra.mxu0 0.0
    %1887 = vmatprep.subr.mxu0 0.0
    %1888 = vmatpush1.xpose.msra.mxu0 0.0
    %1889 = vmatprep.subr.mxu0 0.0
    %1890 = vmatpush1.xpose.msra.mxu0 0.0
    %1891 = vmatprep.subr.mxu0 0.0
    %1892 = vmatpush1.xpose.msra.mxu0 0.0
    %1893 = vmatprep.subr.mxu0 0.0
    %1894 = vmatpush1.xpose.msra.mxu0 0.0
    %1895 = vmatprep.subr.mxu0 0.0
    %1896 = vmatpush1.xpose.msra.mxu0 0.0
    %1897 = vmatprep.subr.mxu0 0.0
    %1898 = vmatpush1.xpose.msra.mxu0 0.0
    %1899 = vmatprep.subr.mxu0 0.0
    %1900 = vmatpush1.xpose.msra.mxu0 0.0
    %1901 = vmatprep.subr.mxu0 0.0
    %1902 = vmatpush1.xpose.msra.mxu0 0.0
    %1903 = vmatprep.subr.mxu0 0.0
    %1904 = vmatpush1.xpose.msra.mxu0 0.0
    %1905 = vmatprep.subr.mxu0 0.0
    %1906 = vmatpush1.xpose.msra.mxu0 0.0
    %1907 = vmatprep.subr.mxu0 0.0
    %1908 = vmatpush1.xpose.msra.mxu0 0.0
    %1909 = vmatprep.subr.mxu0 0.0
    %1910 = vmatpush1.xpose.msra.mxu0 0.0
    %1911 = vmatprep.subr.mxu0 0.0
    %1912 = vmatpush1.xpose.msra.mxu0 0.0
    %1913 = vmatprep.subr.mxu0 0.0
    %1914 = vmatpush1.xpose.msra.mxu0 0.0
    %1915 = vmatprep.subr.mxu0 0.0
    %1916 = vmatpush1.xpose.msra.mxu0 0.0
    %1917 = vmatprep.subr.mxu0 0.0
    %1918 = vmatpush1.xpose.msra.mxu0 0.0
    %1919 = vmatprep.subr.mxu0 0.0
    %1920 = vmatpush1.xpose.msra.mxu0 0.0
    %1921 = vmatprep.subr.mxu0 0.0
    %1922 = vmatpush1.xpose.msra.mxu0 0.0
    %1923 = vmatprep.subr.mxu0 0.0
    %1924 = vmatpush1.xpose.msra.mxu0 0.0
    %1925 = vmatprep.subr.mxu0 0.0
    %1926 = vmatpush1.xpose.msra.mxu0 0.0
    %1927 = vmatprep.subr.mxu0 0.0
    %1928 = vmatpush1.xpose.msra.mxu0 0.0
    %1929 = vmatprep.mubr.f32.mxu0 0.0
    %1930 = vmatmul.mubr.f32.gmra.mrb[0].mxu0 %v1861
    %v1931 = vpop.f32.mrb[0].mxu0
    %v1932 = vadd.f32 0.0, %v1931
    %v1933 = vpop.f32.mrb[0].mxu0
    %1934 = vdwg.mxu0
    %v1935 = vmul.f32 %v1932, 0.5
    %v1936 = vsel %vm221, %v1935, -inf
    %1937 = vmax.xlane.f32.xlu0 %v1936
    %v1938 = vpop.xlane.xlu0 %1937
    %v1939 = vsub.f32 %v1935, %v1938
    %v1940 = vmul.f32 %v1939, 1.442695
    %v1941 = vpow.pop %v1940
    %v1942 = vsel %vm221, %v1941, 0.0
    %1943 = vadd.xlane.f32.xlu0 %v1942
    %v1944 = vpop.xlane.xlu0 %1943
    %v1945 = vrcp.pop %v1944
    %v1946 = vmul.f32 %v1941, %v1945
    %1947 = vrot.lane.b32.xlu0 %v134, 36
    %v1948 = vpop.permute.xlu0 %1947
    %v1951 = vsel %vm221, %v1946, 0
    %1953 = vmatprep.subr.mxu0 0.0
    %1954 = vmatpush1.msra.mxu0 %v1948
    %1955 = vmatprep.subr.mxu0 0.0
    %1956 = vmatpush1.msra.mxu0 0.0
    %1957 = vmatprep.subr.mxu0 0.0
    %1958 = vmatpush1.msra.mxu0 0.0
    %1959 = vmatprep.subr.mxu0 0.0
    %1960 = vmatpush1.msra.mxu0 0.0
    %1961 = vmatprep.subr.mxu0 0.0
    %1962 = vmatpush1.msra.mxu0 0.0
    %1963 = vmatprep.subr.mxu0 0.0
    %1964 = vmatpush1.msra.mxu0 0.0
    %1965 = vmatprep.subr.mxu0 0.0
    %1966 = vmatpush1.msra.mxu0 0.0
    %1967 = vmatprep.subr.mxu0 0.0
    %1968 = vmatpush1.msra.mxu0 0.0
    %1969 = vmatprep.subr.mxu0 0.0
    %1970 = vmatpush1.msra.mxu0 0.0
    %1971 = vmatprep.subr.mxu0 0.0
    %1972 = vmatpush1.msra.mxu0 0.0
    %1973 = vmatprep.subr.mxu0 0.0
    %1974 = vmatpush1.msra.mxu0 0.0
    %1975 = vmatprep.subr.mxu0 0.0
    %1976 = vmatpush1.msra.mxu0 0.0
    %1977 = vmatprep.subr.mxu0 0.0
    %1978 = vmatpush1.msra.mxu0 0.0
    %1979 = vmatprep.subr.mxu0 0.0
    %1980 = vmatpush1.msra.mxu0 0.0
    %1981 = vmatprep.subr.mxu0 0.0
    %1982 = vmatpush1.msra.mxu0 0.0
    %1983 = vmatprep.subr.mxu0 0.0
    %1984 = vmatpush1.msra.mxu0 0.0
    %1985 = vmatprep.subr.mxu0 0.0
    %1986 = vmatpush1.msra.mxu0 0.0
    %1987 = vmatprep.subr.mxu0 0.0
    %1988 = vmatpush1.msra.mxu0 0.0
    %1989 = vmatprep.subr.mxu0 0.0
    %1990 = vmatpush1.msra.mxu0 0.0
    %1991 = vmatprep.subr.mxu0 0.0
    %1992 = vmatpush1.msra.mxu0 0.0
    %1993 = vmatprep.subr.mxu0 0.0
    %1994 = vmatpush1.msra.mxu0 0.0
    %1995 = vmatprep.subr.mxu0 0.0
    %1996 = vmatpush1.msra.mxu0 0.0
    %1997 = vmatprep.subr.mxu0 0.0
    %1998 = vmatpush1.msra.mxu0 0.0
    %1999 = vmatprep.subr.mxu0 0.0
    %2000 = vmatpush1.msra.mxu0 0.0
    %2001 = vmatprep.subr.mxu0 0.0
    %2002 = vmatpush1.msra.mxu0 0.0
    %2003 = vmatprep.subr.mxu0 0.0
    %2004 = vmatpush1.msra.mxu0 0.0
    %2005 = vmatprep.subr.mxu0 0.0
    %2006 = vmatpush1.msra.mxu0 0.0
    %2007 = vmatprep.subr.mxu0 0.0
    %2008 = vmatpush1.msra.mxu0 0.0
    %2009 = vmatprep.subr.mxu0 0.0
    %2010 = vmatpush1.msra.mxu0 0.0
    %2011 = vmatprep.subr.mxu0 0.0
    %2012 = vmatpush1.msra.mxu0 0.0
    %2013 = vmatprep.subr.mxu0 0.0
    %2014 = vmatpush1.msra.mxu0 0.0
    %2015 = vmatprep.subr.mxu0 0.0
    %2016 = vmatpush1.msra.mxu0 0.0
    %2017 = vmatprep.mubr.f32.mxu0 0.0
    %2018 = vmatmul.mubr.f32.gmra.mrb[0].mxu0 %v1951
    %v2019 = vpop.f32.mrb[0].mxu0
    %v2020 = vadd.f32 0.0, %v2019
    %v2021 = vpop.f32.mrb[0].mxu0
    %2022 = vdwg.mxu0
    %v2023 = vrot.slane %v51, 4
    %2024 = vrot.lane.b32.xlu0 %v2023, 32
    %v2025 = vpop.permute.xlu0 %2024
    %v2027 = vsel %vm145, %v2020, 0
    %v2029 = vsel %vm482, %v2025, 0
    %2031 = vmatprep.subr.mxu0 0.0
    %2032 = vmatpush1.msra.mxu0 %v2029
    %2033 = vmatprep.subr.mxu0 0.0
    %2034 = vmatpush1.msra.mxu0 0.0
    %2035 = vmatprep.subr.mxu0 0.0
    %2036 = vmatpush1.msra.mxu0 0.0
    %2037 = vmatprep.subr.mxu0 0.0
    %2038 = vmatpush1.msra.mxu0 0.0
    %2039 = vmatprep.subr.mxu0 0.0
    %2040 = vmatpush1.msra.mxu0 0.0
    %2041 = vmatprep.subr.mxu0 0.0
    %2042 = vmatpush1.msra.mxu0 0.0
    %2043 = vmatprep.subr.mxu0 0.0
    %2044 = vmatpush1.msra.mxu0 0.0
    %2045 = vmatprep.subr.mxu0 0.0
    %2046 = vmatpush1.msra.mxu0 0.0
    %2047 = vmatprep.subr.mxu0 0.0
    %2048 = vmatpush1.msra.mxu0 0.0
    %2049 = vmatprep.subr.mxu0 0.0
    %2050 = vmatpush1.msra.mxu0 0.0
    %2051 = vmatprep.subr.mxu0 0.0
    %2052 = vmatpush1.msra.mxu0 0.0
    %2053 = vmatprep.subr.mxu0 0.0
    %2054 = vmatpush1.msra.mxu0 0.0
    %2055 = vmatprep.subr.mxu0 0.0
    %2056 = vmatpush1.msra.mxu0 0.0
    %2057 = vmatprep.subr.mxu0 0.0
    %2058 = vmatpush1.msra.mxu0 0.0
    %2059 = vmatprep.subr.mxu0 0.0
    %2060 = vmatpush1.msra.mxu0 0.0
    %2061 = vmatprep.subr.mxu0 0.0
    %2062 = vmatpush1.msra.mxu0 0.0
    %2063 = vmatprep.subr.mxu0 0.0
    %2064 = vmatpush1.msra.mxu0 0.0
    %2065 = vmatprep.subr.mxu0 0.0
    %2066 = vmatpush1.msra.mxu0 0.0
    %2067 = vmatprep.subr.mxu0 0.0
    %2068 = vmatpush1.msra.mxu0 0.0
    %2069 = vmatprep.subr.mxu0 0.0
    %2070 = vmatpush1.msra.mxu0 0.0
    %2071 = vmatprep.subr.mxu0 0.0
    %2072 = vmatpush1.msra.mxu0 0.0
    %2073 = vmatprep.subr.mxu0 0.0
    %2074 = vmatpush1.msra.mxu0 0.0
    %2075 = vmatprep.subr.mxu0 0.0
    %2076 = vmatpush1.msra.mxu0 0.0
    %2077 = vmatprep.subr.mxu0 0.0
    %2078 = vmatpush1.msra.mxu0 0.0
    %2079 = vmatprep.subr.mxu0 0.0
    %2080 = vmatpush1.msra.mxu0 0.0
    %2081 = vmatprep.subr.mxu0 0.0
    %2082 = vmatpush1.msra.mxu0 0.0
    %2083 = vmatprep.subr.mxu0 0.0
    %2084 = vmatpush1.msra.mxu0 0.0
    %2085 = vmatprep.subr.mxu0 0.0
    %2086 = vmatpush1.msra.mxu0 0.0
    %2087 = vmatprep.subr.mxu0 0.0
    %2088 = vmatpush1.msra.mxu0 0.0
    %2089 = vmatprep.subr.mxu0 0.0
    %2090 = vmatpush1.msra.mxu0 0.0
    %2091 = vmatprep.subr.mxu0 0.0
    %2092 = vmatpush1.msra.mxu0 0.0
    %2093 = vmatprep.subr.mxu0 0.0
    %2094 = vmatpush1.msra.mxu0 0.0
    %2095 = vmatprep.mubr.f32.mxu0 0.0
    %2096 = vmatmul.mubr.f32.gmra.mrb[0].mxu0 %v2027
    %v2097 = vpop.f32.mrb[0].mxu0
    %v2098 = vadd.f32 0.0, %v2097
    %v2099 = vpop.f32.mrb[0].mxu0
    %2100 = vdwg.mxu0
    %v2101 = vadd.f32 %v1856, %v2098
    %2102 = vrot.lane.b32.xlu0 %v58, 32
    %v2103 = vpop.permute.xlu0 %2102
    %v2105 = vadd.f32 %v2101, %v2103
    %v2106 = vsel %vm60, %v2105, 0.0
    %v2107 = vrot.slane %v2106, 4
    %v2108 = vadd.f32 %v2106, %v2107
    %v2109 = vrot.slane %v2108, 2
    %v2110 = vadd.f32 %v2108, %v2109
    %v2111 = vrot.slane %v2110, 1
    %v2112 = vadd.f32 %v2110, %v2111
    %v2113 = vrcp.pop 8.0
    %v2114 = vmul.f32 %v2112, %v2113
    %v2115 = vlaneseq
    %v2116 = vshrl.u32 %v2115, 7
    %v2117 = vsub.s32 1, %v2116
    %v2118 = vrot.slane %v53, %v2117
    %v2121 = vsel %vm60, %v2114, 0
    %2123 = vmatprep.subr.mxu0 0.0
    %2124 = vmatpush1.msra.mxu0 %v46
    %2125 = vmatprep.subr.mxu0 0.0
    %2126 = vmatpush1.msra.mxu0 %v48
    %2127 = vmatprep.subr.mxu0 0.0
    %2128 = vmatpush1.msra.mxu0 %v50
    %2129 = vmatprep.subr.mxu0 0.0
    %2130 = vmatpush1.msra.mxu0 %v52
    %2131 = vmatprep.subr.mxu0 0.0
    %2132 = vmatpush1.msra.mxu0 0.0
    %2133 = vmatprep.subr.mxu0 0.0
    %2134 = vmatpush1.msra.mxu0 0.0
    %2135 = vmatprep.subr.mxu0 0.0
    %2136 = vmatpush1.msra.mxu0 0.0
    %2137 = vmatprep.subr.mxu0 0.0
    %2138 = vmatpush1.msra.mxu0 0.0
    %2139 = vmatprep.subr.mxu0 0.0
    %2140 = vmatpush1.msra.mxu0 0.0
    %2141 = vmatprep.subr.mxu0 0.0
    %2142 = vmatpush1.msra.mxu0 0.0
    %2143 = vmatprep.subr.mxu0 0.0
    %2144 = vmatpush1.msra.mxu0 0.0
    %2145 = vmatprep.subr.mxu0 0.0
    %2146 = vmatpush1.msra.mxu0 0.0
    %2147 = vmatprep.subr.mxu0 0.0
    %2148 = vmatpush1.msra.mxu0 0.0
    %2149 = vmatprep.subr.mxu0 0.0
    %2150 = vmatpush1.msra.mxu0 0.0
    %2151 = vmatprep.subr.mxu0 0.0
    %2152 = vmatpush1.msra.mxu0 0.0
    %2153 = vmatprep.subr.mxu0 0.0
    %2154 = vmatpush1.msra.mxu0 0.0
    %2155 = vmatprep.subr.mxu0 0.0
    %2156 = vmatpush1.msra.mxu0 0.0
    %2157 = vmatprep.subr.mxu0 0.0
    %2158 = vmatpush1.msra.mxu0 0.0
    %2159 = vmatprep.subr.mxu0 0.0
    %2160 = vmatpush1.msra.mxu0 0.0
    %2161 = vmatprep.subr.mxu0 0.0
    %2162 = vmatpush1.msra.mxu0 0.0
    %2163 = vmatprep.subr.mxu0 0.0
    %2164 = vmatpush1.msra.mxu0 0.0
    %2165 = vmatprep.subr.mxu0 0.0
    %2166 = vmatpush1.msra.mxu0 0.0
    %2167 = vmatprep.subr.mxu0 0.0
    %2168 = vmatpush1.msra.mxu0 0.0
    %2169 = vmatprep.subr.mxu0 0.0
    %2170 = vmatpush1.msra.mxu0 0.0
    %2171 = vmatprep.subr.mxu0 0.0
    %2172 = vmatpush1.msra.mxu0 0.0
    %2173 = vmatprep.subr.mxu0 0.0
    %2174 = vmatpush1.msra.mxu0 0.0
    %2175 = vmatprep.subr.mxu0 0.0
    %2176 = vmatpush1.msra.mxu0 0.0
    %2177 = vmatprep.subr.mxu0 0.0
    %2178 = vmatpush1.msra.mxu0 0.0
    %2179 = vmatprep.subr.mxu0 0.0
    %2180 = vmatpush1.msra.mxu0 0.0
    %2181 = vmatprep.subr.mxu0 0.0
    %2182 = vmatpush1.msra.mxu0 0.0
    %2183 = vmatprep.subr.mxu0 0.0
    %2184 = vmatpush1.msra.mxu0 0.0
    %2185 = vmatprep.subr.mxu0 0.0
    %2186 = vmatpush1.msra.mxu0 0.0
    %2187 = vmatprep.mubr.f32.mxu0 0.0
    %2188 = vmatmul.mubr.f32.gmra.mrb[0].mxu0 %v2121
    %v2189 = vpop.f32.mrb[0].mxu0
    %v2190 = vadd.f32 %v2118, %v2189
    %v2191 = vpop.f32.mrb[0].mxu0
    %2192 = vdwg.mxu0
    %2194 = vrot.lane.b32.xlu0 %v139, 96
    %v2195 = vpop.permute.xlu0 %2194
    %v2196 = vsel %vm145, %v139, 0
    %v2198 = vsel %vm145, %v2195, 0
    %2200 = vmatprep.subr.mxu0 0.0
    %2201 = vmatpush1.xpose.msra.mxu0 %v2198
    %2202 = vmatprep.subr.mxu0 0.0
    %2203 = vmatpush1.xpose.msra.mxu0 0.0
    %2204 = vmatprep.subr.mxu0 0.0
    %2205 = vmatpush1.xpose.msra.mxu0 0.0
    %2206 = vmatprep.subr.mxu0 0.0
    %2207 = vmatpush1.xpose.msra.mxu0 0.0
    %2208 = vmatprep.subr.mxu0 0.0
    %2209 = vmatpush1.xpose.msra.mxu0 0.0
    %2210 = vmatprep.subr.mxu0 0.0
    %2211 = vmatpush1.xpose.msra.mxu0 0.0
    %2212 = vmatprep.subr.mxu0 0.0
    %2213 = vmatpush1.xpose.msra.mxu0 0.0
    %2214 = vmatprep.subr.mxu0 0.0
    %2215 = vmatpush1.xpose.msra.mxu0 0.0
    %2216 = vmatprep.subr.mxu0 0.0
    %2217 = vmatpush1.xpose.msra.mxu0 0.0
    %2218 = vmatprep.subr.mxu0 0.0
    %2219 = vmatpush1.xpose.msra.mxu0 0.0
    %2220 = vmatprep.subr.mxu0 0.0
    %2221 = vmatpush1.xpose.msra.mxu0 0.0
    %2222 = vmatprep.subr.mxu0 0.0
    %2223 = vmatpush1.xpose.msra.mxu0 0.0
    %2224 = vmatprep.subr.mxu0 0.0
    %2225 = vmatpush1.xpose.msra.mxu0 0.0
    %2226 = vmatprep.subr.mxu0 0.0
    %2227 = vmatpush1.xpose.msra.mxu0 0.0
    %2228 = vmatprep.subr.mxu0 0.0
    %2229 = vmatpush1.xpose.msra.mxu0 0.0
    %2230 = vmatprep.subr.mxu0 0.0
    %2231 = vmatpush1.xpose.msra.mxu0 0.0
    %2232 = vmatprep.subr.mxu0 0.0
    %2233 = vmatpush1.xpose.msra.mxu0 0.0
    %2234 = vmatprep.subr.mxu0 0.0
    %2235 = vmatpush1.xpose.msra.mxu0 0.0
    %2236 = vmatprep.subr.mxu0 0.0
    %2237 = vmatpush1.xpose.msra.mxu0 0.0
    %2238 = vmatprep.subr.mxu0 0.0
    %2239 = vmatpush1.xpose.msra.mxu0 0.0
    %2240 = vmatprep.subr.mxu0 0.0
    %2241 = vmatpush1.xpose.msra.mxu0 0.0
    %2242 = vmatprep.subr.mxu0 0.0
    %2243 = vmatpush1.xpose.msra.mxu0 0.0
    %2244 = vmatprep.subr.mxu0 0.0
    %2245 = vmatpush1.xpose.msra.mxu0 0.0
    %2246 = vmatprep.subr.mxu0 0.0
    %2247 = vmatpush1.xpose.msra.mxu0 0.0
    %2248 = vmatprep.subr.mxu0 0.0
    %2249 = vmatpush1.xpose.msra.mxu0 0.0
    %2250 = vmatprep.subr.mxu0 0.0
    %2251 = vmatpush1.xpose.msra.mxu0 0.0
    %2252 = vmatprep.subr.mxu0 0.0
    %2253 = vmatpush1.xpose.msra.mxu0 0.0
    %2254 = vmatprep.subr.mxu0 0.0
    %2255 = vmatpush1.xpose.msra.mxu0 0.0
    %2256 = vmatprep.subr.mxu0 0.0
    %2257 = vmatpush1.xpose.msra.mxu0 0.0
    %2258 = vmatprep.subr.mxu0 0.0
    %2259 = vmatpush1.xpose.msra.mxu0 0.0
    %2260 = vmatprep.subr.mxu0 0.0
    %2261 = vmatpush1.xpose.msra.mxu0 0.0
    %2262 = vmatprep.subr.mxu0 0.0
    %2263 = vmatpush1.xpose.msra.mxu0 0.0
    %2264 = vmatprep.mubr.f32.mxu0 0.0
    %2265 = vmatmul.mubr.f32.gmra.mrb[0].mxu0 %v2196
    %v2266 = vpop.f32.mrb[0].mxu0
    %v2267 = vadd.f32 0.0, %v2266
    %v2268 = vpop.f32.mrb[0].mxu0
    %2269 = vdwg.mxu0
    %v2270 = vmul.f32 %v2267, 0.5
    %v2271 = vsel %vm221, %v2270, -inf
    %2272 = vmax.xlane.f32.xlu0 %v2271
    %v2273 = vpop.xlane.xlu0 %2272
    %v2274 = vsub.f32 %v2270, %v2273
    %v2275 = vmul.f32 %v2274, 1.442695
    %v2276 = vpow.pop %v2275
    %v2277 = vsel %vm221, %v2276, 0.0
    %2278 = vadd.xlane.f32.xlu0 %v2277
    %v2279 = vpop.xlane.xlu0 %2278
    %v2280 = vrcp.pop %v2279
    %v2281 = vmul.f32 %v2276, %v2280
    %2282 = vrot.lane.b32.xlu0 %v139, 64
    %v2283 = vpop.permute.xlu0 %2282
    %v2286 = vsel %vm221, %v2281, 0
    %2288 = vmatprep.subr.mxu0 0.0
    %2289 = vmatpush1.msra.mxu0 %v2283
    %2290 = vmatprep.subr.mxu0 0.0
    %2291 = vmatpush1.msra.mxu0 0.0
    %2292 = vmatprep.subr.mxu0 0.0
    %2293 = vmatpush1.msra.mxu0 0.0
    %2294 = vmatprep.subr.mxu0 0.0
    %2295 = vmatpush1.msra.mxu0 0.0
    %2296 = vmatprep.subr.mxu0 0.0
    %2297 = vmatpush1.msra.mxu0 0.0
    %2298 = vmatprep.subr.mxu0 0.0
    %2299 = vmatpush1.msra.mxu0 0.0
    %2300 = vmatprep.subr.mxu0 0.0
    %2301 = vmatpush1.msra.mxu0 0.0
    %2302 = vmatprep.subr.mxu0 0.0
    %2303 = vmatpush1.msra.mxu0 0.0
    %2304 = vmatprep.subr.mxu0 0.0
    %2305 = vmatpush1.msra.mxu0 0.0
    %2306 = vmatprep.subr.mxu0 0.0
    %2307 = vmatpush1.msra.mxu0 0.0
    %2308 = vmatprep.subr.mxu0 0.0
    %2309 = vmatpush1.msra.mxu0 0.0
    %2310 = vmatprep.subr.mxu0 0.0
    %2311 = vmatpush1.msra.mxu0 0.0
    %2312 = vmatprep.subr.mxu0 0.0
    %2313 = vmatpush1.msra.mxu0 0.0
    %2314 = vmatprep.subr.mxu0 0.0
    %2315 = vmatpush1.msra.mxu0 0.0
    %2316 = vmatprep.subr.mxu0 0.0
    %2317 = vmatpush1.msra.mxu0 0.0
    %2318 = vmatprep.subr.mxu0 0.0
    %2319 = vmatpush1.msra.mxu0 0.0
    %2320 = vmatprep.subr.mxu0 0.0
    %2321 = vmatpush1.msra.mxu0 0.0
    %2322 = vmatprep.subr.mxu0 0.0
    %2323 = vmatpush1.msra.mxu0 0.0
    %2324 = vmatprep.subr.mxu0 0.0
    %2325 = vmatpush1.msra.mxu0 0.0
    %2326 = vmatprep.subr.mxu0 0.0
    %2327 = vmatpush1.msra.mxu0 0.0
    %2328 = vmatprep.subr.mxu0 0.0
    %2329 = vmatpush1.msra.mxu0 0.0
    %2330 = vmatprep.subr.mxu0 0.0
    %2331 = vmatpush1.msra.mxu0 0.0
    %2332 = vmatprep.subr.mxu0 0.0
    %2333 = vmatpush1.msra.mxu0 0.0
    %2334 = vmatprep.subr.mxu0 0.0
    %2335 = vmatpush1.msra.mxu0 0.0
    %2336 = vmatprep.subr.mxu0 0.0
    %2337 = vmatpush1.msra.mxu0 0.0
    %2338 = vmatprep.subr.mxu0 0.0
    %2339 = vmatpush1.msra.mxu0 0.0
    %2340 = vmatprep.subr.mxu0 0.0
    %2341 = vmatpush1.msra.mxu0 0.0
    %2342 = vmatprep.subr.mxu0 0.0
    %2343 = vmatpush1.msra.mxu0 0.0
    %2344 = vmatprep.subr.mxu0 0.0
    %2345 = vmatpush1.msra.mxu0 0.0
    %2346 = vmatprep.subr.mxu0 0.0
    %2347 = vmatpush1.msra.mxu0 0.0
    %2348 = vmatprep.subr.mxu0 0.0
    %2349 = vmatpush1.msra.mxu0 0.0
    %2350 = vmatprep.subr.mxu0 0.0
    %2351 = vmatpush1.msra.mxu0 0.0
    %2352 = vmatprep.mubr.f32.mxu0 0.0
    %2353 = vmatmul.mubr.f32.gmra.mrb[0].mxu0 %v2286
    %v2354 = vpop.f32.mrb[0].mxu0
    %v2355 = vadd.f32 0.0, %v2354
    %v2356 = vpop.f32.mrb[0].mxu0
    %2357 = vdwg.mxu0
    %2358 = vrot.lane.b32.xlu0 %v139, 124
    %v2359 = vpop.permute.xlu0 %2358
    %2360 = vrot.lane.b32.xlu0 %v139, 92
    %v2361 = vpop.permute.xlu0 %2360
    %v2362 = vsel %vm145, %v2359, 0
    %v2364 = vsel %vm145, %v2361, 0
    %2366 = vmatprep.subr.mxu0 0.0
    %2367 = vmatpush1.xpose.msra.mxu0 %v2364
    %2368 = vmatprep.subr.mxu0 0.0
    %2369 = vmatpush1.xpose.msra.mxu0 0.0
    %2370 = vmatprep.subr.mxu0 0.0
    %2371 = vmatpush1.xpose.msra.mxu0 0.0
    %2372 = vmatprep.subr.mxu0 0.0
    %2373 = vmatpush1.xpose.msra.mxu0 0.0
    %2374 = vmatprep.subr.mxu0 0.0
    %2375 = vmatpush1.xpose.msra.mxu0 0.0
    %2376 = vmatprep.subr.mxu0 0.0
    %2377 = vmatpush1.xpose.msra.mxu0 0.0
    %2378 = vmatprep.subr.mxu0 0.0
    %2379 = vmatpush1.xpose.msra.mxu0 0.0
    %2380 = vmatprep.subr.mxu0 0.0
    %2381 = vmatpush1.xpose.msra.mxu0 0.0
    %2382 = vmatprep.subr.mxu0 0.0
    %2383 = vmatpush1.xpose.msra.mxu0 0.0
    %2384 = vmatprep.subr.mxu0 0.0
    %2385 = vmatpush1.xpose.msra.mxu0 0.0
    %2386 = vmatprep.subr.mxu0 0.0
    %2387 = vmatpush1.xpose.msra.mxu0 0.0
    %2388 = vmatprep.subr.mxu0 0.0
    %2389 = vmatpush1.xpose.msra.mxu0 0.0
    %2390 = vmatprep.subr.mxu0 0.0
    %2391 = vmatpush1.xpose.msra.mxu0 0.0
    %2392 = vmatprep.subr.mxu0 0.0
    %2393 = vmatpush1.xpose.msra.mxu0 0.0
    %2394 = vmatprep.subr.mxu0 0.0
    %2395 = vmatpush1.xpose.msra.mxu0 0.0
    %2396 = vmatprep.subr.mxu0 0.0
    %2397 = vmatpush1.xpose.msra.mxu0 0.0
    %2398 = vmatprep.subr.mxu0 0.0
    %2399 = vmatpush1.xpose.msra.mxu0 0.0
    %2400 = vmatprep.subr.mxu0 0.0
    %2401 = vmatpush1.xpose.msra.mxu0 0.0
    %2402 = vmatprep.subr.mxu0 0.0
    %2403 = vmatpush1.xpose.msra.mxu0 0.0
    %2404 = vmatprep.subr.mxu0 0.0
    %2405 = vmatpush1.xpose.msra.mxu0 0.0
    %2406 = vmatprep.subr.mxu0 0.0
    %2407 = vmatpush1.xpose.msra.mxu0 0.0
    %2408 = vmatprep.subr.mxu0 0.0
    %2409 = vmatpush1.xpose.msra.mxu0 0.0
    %2410 = vmatprep.subr.mxu0 0.0
    %2411 = vmatpush1.xpose.msra.mxu0 0.0
    %2412 = vmatprep.subr.mxu0 0.0
    %2413 = vmatpush1.xpose.msra.mxu0 0.0
    %2414 = vmatprep.subr.mxu0 0.0
    %2415 = vmatpush1.xpose.msra.mxu0 0.0
    %2416 = vmatprep.subr.mxu0 0.0
    %2417 = vmatpush1.xpose.msra.mxu0 0.0
    %2418 = vmatprep.subr.mxu0 0.0
    %2419 = vmatpush1.xpose.msra.mxu0 0.0
    %2420 = vmatprep.subr.mxu0 0.0
    %2421 = vmatpush1.xpose.msra.mxu0 0.0
    %2422 = vmatprep.subr.mxu0 0.0
    %2423 = vmatpush1.xpose.msra.mxu0 0.0
    %2424 = vmatprep.subr.mxu0 0.0
    %2425 = vmatpush1.xpose.msra.mxu0 0.0
    %2426 = vmatprep.subr.mxu0 0.0
    %2427 = vmatpush1.xpose.msra.mxu0 0.0
    %2428 = vmatprep.subr.mxu0 0.0
    %2429 = vmatpush1.xpose.msra.mxu0 0.0
    %2430 = vmatprep.mubr.f32.mxu0 0.0
    %2431 = vmatmul.mubr.f32.gmra.mrb[0].mxu0 %v2362
    %v2432 = vpop.f32.mrb[0].mxu0
    %v2433 = vadd.f32 0.0, %v2432
    %v2434 = vpop.f32.mrb[0].mxu0
    %2435 = vdwg.mxu0
    %v2436 = vmul.f32 %v2433, 0.5
    %v2437 = vsel %vm221, %v2436, -inf
    %2438 = vmax.xlane.f32.xlu0 %v2437
    %v2439 = vpop.xlane.xlu0 %2438
    %v2440 = vsub.f32 %v2436, %v2439
    %v2441 = vmul.f32 %v2440, 1.442695
    %v2442 = vpow.pop %v2441
    %v2443 = vsel %vm221, %v2442, 0.0
    %2444 = vadd.xlane.f32.xlu0 %v2443
    %v2445 = vpop.xlane.xlu0 %2444
    %v2446 = vrcp.pop %v2445
    %v2447 = vmul.f32 %v2442, %v2446
    %2448 = vrot.lane.b32.xlu0 %v139, 60
    %v2449 = vpop.permute.xlu0 %2448
    %v2452 = vsel %vm221, %v2447, 0
    %2454 = vmatprep.subr.mxu0 0.0
    %2455 = vmatpush1.msra.mxu0 %v2449
    %2456 = vmatprep.subr.mxu0 0.0
    %2457 = vmatpush1.msra.mxu0 0.0
    %2458 = vmatprep.subr.mxu0 0.0
    %2459 = vmatpush1.msra.mxu0 0.0
    %2460 = vmatprep.subr.mxu0 0.0
    %2461 = vmatpush1.msra.mxu0 0.0
    %2462 = vmatprep.subr.mxu0 0.0
    %2463 = vmatpush1.msra.mxu0 0.0
    %2464 = vmatprep.subr.mxu0 0.0
    %2465 = vmatpush1.msra.mxu0 0.0
    %2466 = vmatprep.subr.mxu0 0.0
    %2467 = vmatpush1.msra.mxu0 0.0
    %2468 = vmatprep.subr.mxu0 0.0
    %2469 = vmatpush1.msra.mxu0 0.0
    %2470 = vmatprep.subr.mxu0 0.0
    %2471 = vmatpush1.msra.mxu0 0.0
    %2472 = vmatprep.subr.mxu0 0.0
    %2473 = vmatpush1.msra.mxu0 0.0
    %2474 = vmatprep.subr.mxu0 0.0
    %2475 = vmatpush1.msra.mxu0 0.0
    %2476 = vmatprep.subr.mxu0 0.0
    %2477 = vmatpush1.msra.mxu0 0.0
    %2478 = vmatprep.subr.mxu0 0.0
    %2479 = vmatpush1.msra.mxu0 0.0
    %2480 = vmatprep.subr.mxu0 0.0
    %2481 = vmatpush1.msra.mxu0 0.0
    %2482 = vmatprep.subr.mxu0 0.0
    %2483 = vmatpush1.msra.mxu0 0.0
    %2484 = vmatprep.subr.mxu0 0.0
    %2485 = vmatpush1.msra.mxu0 0.0
    %2486 = vmatprep.subr.mxu0 0.0
    %2487 = vmatpush1.msra.mxu0 0.0
    %2488 = vmatprep.subr.mxu0 0.0
    %2489 = vmatpush1.msra.mxu0 0.0
    %2490 = vmatprep.subr.mxu0 0.0
    %2491 = vmatpush1.msra.mxu0 0.0
    %2492 = vmatprep.subr.mxu0 0.0
    %2493 = vmatpush1.msra.mxu0 0.0
    %2494 = vmatprep.subr.mxu0 0.0
    %2495 = vmatpush1.msra.mxu0 0.0
    %2496 = vmatprep.subr.mxu0 0.0
    %2497 = vmatpush1.msra.mxu0 0.0
    %2498 = vmatprep.subr.mxu0 0.0
    %2499 = vmatpush1.msra.mxu0 0.0
    %2500 = vmatprep.subr.mxu0 0.0
    %2501 = vmatpush1.msra.mxu0 0.0
    %2502 = vmatprep.subr.mxu0 0.0
    %2503 = vmatpush1.msra.mxu0 0.0
    %2504 = vmatprep.subr.mxu0 0.0
    %2505 = vmatpush1.msra.mxu0 0.0
    %2506 = vmatprep.subr.mxu0 0.0
    %2507 = vmatpush1.msra.mxu0 0.0
    %2508 = vmatprep.subr.mxu0 0.0
    %2509 = vmatpush1.msra.mxu0 0.0
    %2510 = vmatprep.subr.mxu0 0.0
    %2511 = vmatpush1.msra.mxu0 0.0
    %2512 = vmatprep.subr.mxu0 0.0
    %2513 = vmatpush1.msra.mxu0 0.0
    %2514 = vmatprep.subr.mxu0 0.0
    %2515 = vmatpush1.msra.mxu0 0.0
    %2516 = vmatprep.subr.mxu0 0.0
    %2517 = vmatpush1.msra.mxu0 0.0
    %2518 = vmatprep.mubr.f32.mxu0 0.0
    %2519 = vmatmul.mubr.f32.gmra.mrb[0].mxu0 %v2452
    %v2520 = vpop.f32.mrb[0].mxu0
    %v2521 = vadd.f32 0.0, %v2520
    %v2522 = vpop.f32.mrb[0].mxu0
    %2523 = vdwg.mxu0
    %v2525 = vsel %vm145, %v2521, 0
    %2527 = vmatprep.subr.mxu0 0.0
    %2528 = vmatpush1.msra.mxu0 %v483
    %2529 = vmatprep.subr.mxu0 0.0
    %2530 = vmatpush1.msra.mxu0 0.0
    %2531 = vmatprep.subr.mxu0 0.0
    %2532 = vmatpush1.msra.mxu0 0.0
    %2533 = vmatprep.subr.mxu0 0.0
    %2534 = vmatpush1.msra.mxu0 0.0
    %2535 = vmatprep.subr.mxu0 0.0
    %2536 = vmatpush1.msra.mxu0 0.0
    %2537 = vmatprep.subr.mxu0 0.0
    %2538 = vmatpush1.msra.mxu0 0.0
    %2539 = vmatprep.subr.mxu0 0.0
    %2540 = vmatpush1.msra.mxu0 0.0
    %2541 = vmatprep.subr.mxu0 0.0
    %2542 = vmatpush1.msra.mxu0 0.0
    %2543 = vmatprep.subr.mxu0 0.0
    %2544 = vmatpush1.msra.mxu0 0.0
    %2545 = vmatprep.subr.mxu0 0.0
    %2546 = vmatpush1.msra.mxu0 0.0
    %2547 = vmatprep.subr.mxu0 0.0
    %2548 = vmatpush1.msra.mxu0 0.0
    %2549 = vmatprep.subr.mxu0 0.0
    %2550 = vmatpush1.msra.mxu0 0.0
    %2551 = vmatprep.subr.mxu0 0.0
    %2552 = vmatpush1.msra.mxu0 0.0
    %2553 = vmatprep.subr.mxu0 0.0
    %2554 = vmatpush1.msra.mxu0 0.0
    %2555 = vmatprep.subr.mxu0 0.0
    %2556 = vmatpush1.msra.mxu0 0.0
    %2557 = vmatprep.subr.mxu0 0.0
    %2558 = vmatpush1.msra.mxu0 0.0
    %2559 = vmatprep.subr.mxu0 0.0
    %2560 = vmatpush1.msra.mxu0 0.0
    %2561 = vmatprep.subr.mxu0 0.0
    %2562 = vmatpush1.msra.mxu0 0.0
    %2563 = vmatprep.subr.mxu0 0.0
    %2564 = vmatpush1.msra.mxu0 0.0
    %2565 = vmatprep.subr.mxu0 0.0
    %2566 = vmatpush1.msra.mxu0 0.0
    %2567 = vmatprep.subr.mxu0 0.0
    %2568 = vmatpush1.msra.mxu0 0.0
    %2569 = vmatprep.subr.mxu0 0.0
    %2570 = vmatpush1.msra.mxu0 0.0
    %2571 = vmatprep.subr.mxu0 0.0
    %2572 = vmatpush1.msra.mxu0 0.0
    %2573 = vmatprep.subr.mxu0 0.0
    %2574 = vmatpush1.msra.mxu0 0.0
    %2575 = vmatprep.subr.mxu0 0.0
    %2576 = vmatpush1.msra.mxu0 0.0
    %2577 = vmatprep.subr.mxu0 0.0
    %2578 = vmatpush1.msra.mxu0 0.0
    %2579 = vmatprep.subr.mxu0 0.0
    %2580 = vmatpush1.msra.mxu0 0.0
    %2581 = vmatprep.subr.mxu0 0.0
    %2582 = vmatpush1.msra.mxu0 0.0
    %2583 = vmatprep.subr.mxu0 0.0
    %2584 = vmatpush1.msra.mxu0 0.0
    %2585 = vmatprep.subr.mxu0 0.0
    %2586 = vmatpush1.msra.mxu0 0.0
    %2587 = vmatprep.subr.mxu0 0.0
    %2588 = vmatpush1.msra.mxu0 0.0
    %2589 = vmatprep.subr.mxu0 0.0
    %2590 = vmatpush1.msra.mxu0 0.0
    %2591 = vmatprep.mubr.f32.mxu0 0.0
    %2592 = vmatmul.mubr.f32.gmra.mrb[0].mxu0 %v2525
    %v2593 = vpop.f32.mrb[0].mxu0
    %v2594 = vadd.f32 0.0, %v2593
    %v2595 = vpop.f32.mrb[0].mxu0
    %2596 = vdwg.mxu0
    %v2598 = vsel %vm145, %v2355, 0
    %2600 = vmatprep.subr.mxu0 0.0
    %2601 = vmatpush1.msra.mxu0 %v560
    %2602 = vmatprep.subr.mxu0 0.0
    %2603 = vmatpush1.msra.mxu0 0.0
    %2604 = vmatprep.subr.mxu0 0.0
    %2605 = vmatpush1.msra.mxu0 0.0
    %2606 = vmatprep.subr.mxu0 0.0
    %2607 = vmatpush1.msra.mxu0 0.0
    %2608 = vmatprep.subr.mxu0 0.0
    %2609 = vmatpush1.msra.mxu0 0.0
    %2610 = vmatprep.subr.mxu0 0.0
    %2611 = vmatpush1.msra.mxu0 0.0
    %2612 = vmatprep.subr.mxu0 0.0
    %2613 = vmatpush1.msra.mxu0 0.0
    %2614 = vmatprep.subr.mxu0 0.0
    %2615 = vmatpush1.msra.mxu0 0.0
    %2616 = vmatprep.subr.mxu0 0.0
    %2617 = vmatpush1.msra.mxu0 0.0
    %2618 = vmatprep.subr.mxu0 0.0
    %2619 = vmatpush1.msra.mxu0 0.0
    %2620 = vmatprep.subr.mxu0 0.0
    %2621 = vmatpush1.msra.mxu0 0.0
    %2622 = vmatprep.subr.mxu0 0.0
    %2623 = vmatpush1.msra.mxu0 0.0
    %2624 = vmatprep.subr.mxu0 0.0
    %2625 = vmatpush1.msra.mxu0 0.0
    %2626 = vmatprep.subr.mxu0 0.0
    %2627 = vmatpush1.msra.mxu0 0.0
    %2628 = vmatprep.subr.mxu0 0.0
    %2629 = vmatpush1.msra.mxu0 0.0
    %2630 = vmatprep.subr.mxu0 0.0
    %2631 = vmatpush1.msra.mxu0 0.0
    %2632 = vmatprep.subr.mxu0 0.0
    %2633 = vmatpush1.msra.mxu0 0.0
    %2634 = vmatprep.subr.mxu0 0.0
    %2635 = vmatpush1.msra.mxu0 0.0
    %2636 = vmatprep.subr.mxu0 0.0
    %2637 = vmatpush1.msra.mxu0 0.0
    %2638 = vmatprep.subr.mxu0 0.0
    %2639 = vmatpush1.msra.mxu0 0.0
    %2640 = vmatprep.subr.mxu0 0.0
    %2641 = vmatpush1.msra.mxu0 0.0
    %2642 = vmatprep.subr.mxu0 0.0
    %2643 = vmatpush1.msra.mxu0 0.0
    %2644 = vmatprep.subr.mxu0 0.0
    %2645 = vmatpush1.msra.mxu0 0.0
    %2646 = vmatprep.subr.mxu0 0.0
    %2647 = vmatpush1.msra.mxu0 0.0
    %2648 = vmatprep.subr.mxu0 0.0
    %2649 = vmatpush1.msra.mxu0 0.0
    %2650 = vmatprep.subr.mxu0 0.0
    %2651 = vmatpush1.msra.mxu0 0.0
    %2652 = vmatprep.subr.mxu0 0.0
    %2653 = vmatpush1.msra.mxu0 0.0
    %2654 = vmatprep.subr.mxu0 0.0
    %2655 = vmatpush1.msra.mxu0 0.0
    %2656 = vmatprep.subr.mxu0 0.0
    %2657 = vmatpush1.msra.mxu0 0.0
    %2658 = vmatprep.subr.mxu0 0.0
    %2659 = vmatpush1.msra.mxu0 0.0
    %2660 = vmatprep.subr.mxu0 0.0
    %2661 = vmatpush1.msra.mxu0 0.0
    %2662 = vmatprep.subr.mxu0 0.0
    %2663 = vmatpush1.msra.mxu0 0.0
    %2664 = vmatprep.mubr.f32.mxu0 0.0
    %2665 = vmatmul.mubr.f32.gmra.mrb[0].mxu0 %v2598
    %v2666 = vpop.f32.mrb[0].mxu0
    %v2667 = vadd.f32 %v2594, %v2666
    %v2668 = vpop.f32.mrb[0].mxu0
    %2669 = vdwg.mxu0
    %2670 = vrot.lane.b32.xlu0 %v139, 120
    %v2671 = vpop.permute.xlu0 %2670
    %2672 = vrot.lane.b32.xlu0 %v139, 88
    %v2673 = vpop.permute.xlu0 %2672
    %v2674 = vsel %vm145, %v2671, 0
    %v2676 = vsel %vm145, %v2673, 0
    %2678 = vmatprep.subr.mxu0 0.0
    %2679 = vmatpush1.xpose.msra.mxu0 %v2676
    %2680 = vmatprep.subr.mxu0 0.0
    %2681 = vmatpush1.xpose.msra.mxu0 0.0
    %2682 = vmatprep.subr.mxu0 0.0
    %2683 = vmatpush1.xpose.msra.mxu0 0.0
    %2684 = vmatprep.subr.mxu0 0.0
    %2685 = vmatpush1.xpose.msra.mxu0 0.0
    %2686 = vmatprep.subr.mxu0 0.0
    %2687 = vmatpush1.xpose.msra.mxu0 0.0
    %2688 = vmatprep.subr.mxu0 0.0
    %2689 = vmatpush1.xpose.msra.mxu0 0.0
    %2690 = vmatprep.subr.mxu0 0.0
    %2691 = vmatpush1.xpose.msra.mxu0 0.0
    %2692 = vmatprep.subr.mxu0 0.0
    %2693 = vmatpush1.xpose.msra.mxu0 0.0
    %2694 = vmatprep.subr.mxu0 0.0
    %2695 = vmatpush1.xpose.msra.mxu0 0.0
    %2696 = vmatprep.subr.mxu0 0.0
    %2697 = vmatpush1.xpose.msra.mxu0 0.0
    %2698 = vmatprep.subr.mxu0 0.0
    %2699 = vmatpush1.xpose.msra.mxu0 0.0
    %2700 = vmatprep.subr.mxu0 0.0
    %2701 = vmatpush1.xpose.msra.mxu0 0.0
    %2702 = vmatprep.subr.mxu0 0.0
    %2703 = vmatpush1.xpose.msra.mxu0 0.0
    %2704 = vmatprep.subr.mxu0 0.0
    %2705 = vmatpush1.xpose.msra.mxu0 0.0
    %2706 = vmatprep.subr.mxu0 0.0
    %2707 = vmatpush1.xpose.msra.mxu0 0.0
    %2708 = vmatprep.subr.mxu0 0.0
    %2709 = vmatpush1.xpose.msra.mxu0 0.0
    %2710 = vmatprep.subr.mxu0 0.0
    %2711 = vmatpush1.xpose.msra.mxu0 0.0
    %2712 = vmatprep.subr.mxu0 0.0
    %2713 = vmatpush1.xpose.msra.mxu0 0.0
    %2714 = vmatprep.subr.mxu0 0.0
    %2715 = vmatpush1.xpose.msra.mxu0 0.0
    %2716 = vmatprep.subr.mxu0 0.0
    %2717 = vmatpush1.xpose.msra.mxu0 0.0
    %2718 = vmatprep.subr.mxu0 0.0
    %2719 = vmatpush1.xpose.msra.mxu0 0.0
    %2720 = vmatprep.subr.mxu0 0.0
    %2721 = vmatpush1.xpose.msra.mxu0 0.0
    %2722 = vmatprep.subr.mxu0 0.0
    %2723 = vmatpush1.xpose.msra.mxu0 0.0
    %2724 = vmatprep.subr.mxu0 0.0
    %2725 = vmatpush1.xpose.msra.mxu0 0.0
    %2726 = vmatprep.subr.mxu0 0.0
    %2727 = vmatpush1.xpose.msra.mxu0 0.0
    %2728 = vmatprep.subr.mxu0 0.0
    %2729 = vmatpush1.xpose.msra.mxu0 0.0
    %2730 = vmatprep.subr.mxu0 0.0
    %2731 = vmatpush1.xpose.msra.mxu0 0.0
    %2732 = vmatprep.subr.mxu0 0.0
    %2733 = vmatpush1.xpose.msra.mxu0 0.0
    %2734 = vmatprep.subr.mxu0 0.0
    %2735 = vmatpush1.xpose.msra.mxu0 0.0
    %2736 = vmatprep.subr.mxu0 0.0
    %2737 = vmatpush1.xpose.msra.mxu0 0.0
    %2738 = vmatprep.subr.mxu0 0.0
    %2739 = vmatpush1.xpose.msra.mxu0 0.0
    %2740 = vmatprep.subr.mxu0 0.0
    %2741 = vmatpush1.xpose.msra.mxu0 0.0
    %2742 = vmatprep.mubr.f32.mxu0 0.0
    %2743 = vmatmul.mubr.f32.gmra.mrb[0].mxu0 %v2674
    %v2744 = vpop.f32.mrb[0].mxu0
    %v2745 = vadd.f32 0.0, %v2744
    %v2746 = vpop.f32.mrb[0].mxu0
    %2747 = vdwg.mxu0
    %v2748 = vmul.f32 %v2745, 0.5
    %v2749 = vsel %vm221, %v2748, -inf
    %2750 = vmax.xlane.f32.xlu0 %v2749
    %v2751 = vpop.xlane.xlu0 %2750
    %v2752 = vsub.f32 %v2748, %v2751
    %v2753 = vmul.f32 %v2752, 1.442695
    %v2754 = vpow.pop %v2753
    %v2755 = vsel %vm221, %v2754, 0.0
    %2756 = vadd.xlane.f32.xlu0 %v2755
    %v2757 = vpop.xlane.xlu0 %2756
    %v2758 = vrcp.pop %v2757
    %v2759 = vmul.f32 %v2754, %v2758
    %2760 = vrot.lane.b32.xlu0 %v139, 56
    %v2761 = vpop.permute.xlu0 %2760
    %v2764 = vsel %vm221, %v2759, 0
    %2766 = vmatprep.subr.mxu0 0.0
    %2767 = vmatpush1.msra.mxu0 %v2761
    %2768 = vmatprep.subr.mxu0 0.0
    %2769 = vmatpush1.msra.mxu0 0.0
    %2770 = vmatprep.subr.mxu0 0.0
    %2771 = vmatpush1.msra.mxu0 0.0
    %2772 = vmatprep.subr.mxu0 0.0
    %2773 = vmatpush1.msra.mxu0 0.0
    %2774 = vmatprep.subr.mxu0 0.0
    %2775 = vmatpush1.msra.mxu0 0.0
    %2776 = vmatprep.subr.mxu0 0.0
    %2777 = vmatpush1.msra.mxu0 0.0
    %2778 = vmatprep.subr.mxu0 0.0
    %2779 = vmatpush1.msra.mxu0 0.0
    %2780 = vmatprep.subr.mxu0 0.0
    %2781 = vmatpush1.msra.mxu0 0.0
    %2782 = vmatprep.subr.mxu0 0.0
    %2783 = vmatpush1.msra.mxu0 0.0
    %2784 = vmatprep.subr.mxu0 0.0
    %2785 = vmatpush1.msra.mxu0 0.0
    %2786 = vmatprep.subr.mxu0 0.0
    %2787 = vmatpush1.msra.mxu0 0.0
    %2788 = vmatprep.subr.mxu0 0.0
    %2789 = vmatpush1.msra.mxu0 0.0
    %2790 = vmatprep.subr.mxu0 0.0
    %2791 = vmatpush1.msra.mxu0 0.0
    %2792 = vmatprep.subr.mxu0 0.0
    %2793 = vmatpush1.msra.mxu0 0.0
    %2794 = vmatprep.subr.mxu0 0.0
    %2795 = vmatpush1.msra.mxu0 0.0
    %2796 = vmatprep.subr.mxu0 0.0
    %2797 = vmatpush1.msra.mxu0 0.0
    %2798 = vmatprep.subr.mxu0 0.0
    %2799 = vmatpush1.msra.mxu0 0.0
    %2800 = vmatprep.subr.mxu0 0.0
    %2801 = vmatpush1.msra.mxu0 0.0
    %2802 = vmatprep.subr.mxu0 0.0
    %2803 = vmatpush1.msra.mxu0 0.0
    %2804 = vmatprep.subr.mxu0 0.0
    %2805 = vmatpush1.msra.mxu0 0.0
    %2806 = vmatprep.subr.mxu0 0.0
    %2807 = vmatpush1.msra.mxu0 0.0
    %2808 = vmatprep.subr.mxu0 0.0
    %2809 = vmatpush1.msra.mxu0 0.0
    %2810 = vmatprep.subr.mxu0 0.0
    %2811 = vmatpush1.msra.mxu0 0.0
    %2812 = vmatprep.subr.mxu0 0.0
    %2813 = vmatpush1.msra.mxu0 0.0
    %2814 = vmatprep.subr.mxu0 0.0
    %2815 = vmatpush1.msra.mxu0 0.0
    %2816 = vmatprep.subr.mxu0 0.0
    %2817 = vmatpush1.msra.mxu0 0.0
    %2818 = vmatprep.subr.mxu0 0.0
    %2819 = vmatpush1.msra.mxu0 0.0
    %2820 = vmatprep.subr.mxu0 0.0
    %2821 = vmatpush1.msra.mxu0 0.0
    %2822 = vmatprep.subr.mxu0 0.0
    %2823 = vmatpush1.msra.mxu0 0.0
    %2824 = vmatprep.subr.mxu0 0.0
    %2825 = vmatpush1.msra.mxu0 0.0
    %2826 = vmatprep.subr.mxu0 0.0
    %2827 = vmatpush1.msra.mxu0 0.0
    %2828 = vmatprep.subr.mxu0 0.0
    %2829 = vmatpush1.msra.mxu0 0.0
    %2830 = vmatprep.mubr.f32.mxu0 0.0
    %2831 = vmatmul.mubr.f32.gmra.mrb[0].mxu0 %v2764
    %v2832 = vpop.f32.mrb[0].mxu0
    %v2833 = vadd.f32 0.0, %v2832
    %v2834 = vpop.f32.mrb[0].mxu0
    %2835 = vdwg.mxu0
    %v2837 = vsel %vm145, %v2833, 0
    %2839 = vmatprep.subr.mxu0 0.0
    %2840 = vmatpush1.msra.mxu0 %v804
    %2841 = vmatprep.subr.mxu0 0.0
    %2842 = vmatpush1.msra.mxu0 0.0
    %2843 = vmatprep.subr.mxu0 0.0
    %2844 = vmatpush1.msra.mxu0 0.0
    %2845 = vmatprep.subr.mxu0 0.0
    %2846 = vmatpush1.msra.mxu0 0.0
    %2847 = vmatprep.subr.mxu0 0.0
    %2848 = vmatpush1.msra.mxu0 0.0
    %2849 = vmatprep.subr.mxu0 0.0
    %2850 = vmatpush1.msra.mxu0 0.0
    %2851 = vmatprep.subr.mxu0 0.0
    %2852 = vmatpush1.msra.mxu0 0.0
    %2853 = vmatprep.subr.mxu0 0.0
    %2854 = vmatpush1.msra.mxu0 0.0
    %2855 = vmatprep.subr.mxu0 0.0
    %2856 = vmatpush1.msra.mxu0 0.0
    %2857 = vmatprep.subr.mxu0 0.0
    %2858 = vmatpush1.msra.mxu0 0.0
    %2859 = vmatprep.subr.mxu0 0.0
    %2860 = vmatpush1.msra.mxu0 0.0
    %2861 = vmatprep.subr.mxu0 0.0
    %2862 = vmatpush1.msra.mxu0 0.0
    %2863 = vmatprep.subr.mxu0 0.0
    %2864 = vmatpush1.msra.mxu0 0.0
    %2865 = vmatprep.subr.mxu0 0.0
    %2866 = vmatpush1.msra.mxu0 0.0
    %2867 = vmatprep.subr.mxu0 0.0
    %2868 = vmatpush1.msra.mxu0 0.0
    %2869 = vmatprep.subr.mxu0 0.0
    %2870 = vmatpush1.msra.mxu0 0.0
    %2871 = vmatprep.subr.mxu0 0.0
    %2872 = vmatpush1.msra.mxu0 0.0
    %2873 = vmatprep.subr.mxu0 0.0
    %2874 = vmatpush1.msra.mxu0 0.0
    %2875 = vmatprep.subr.mxu0 0.0
    %2876 = vmatpush1.msra.mxu0 0.0
    %2877 = vmatprep.subr.mxu0 0.0
    %2878 = vmatpush1.msra.mxu0 0.0
    %2879 = vmatprep.subr.mxu0 0.0
    %2880 = vmatpush1.msra.mxu0 0.0
    %2881 = vmatprep.subr.mxu0 0.0
    %2882 = vmatpush1.msra.mxu0 0.0
    %2883 = vmatprep.subr.mxu0 0.0
    %2884 = vmatpush1.msra.mxu0 0.0
    %2885 = vmatprep.subr.mxu0 0.0
    %2886 = vmatpush1.msra.mxu0 0.0
    %2887 = vmatprep.subr.mxu0 0.0
    %2888 = vmatpush1.msra.mxu0 0.0
    %2889 = vmatprep.subr.mxu0 0.0
    %2890 = vmatpush1.msra.mxu0 0.0
    %2891 = vmatprep.subr.mxu0 0.0
    %2892 = vmatpush1.msra.mxu0 0.0
    %2893 = vmatprep.subr.mxu0 0.0
    %2894 = vmatpush1.msra.mxu0 0.0
    %2895 = vmatprep.subr.mxu0 0.0
    %2896 = vmatpush1.msra.mxu0 0.0
    %2897 = vmatprep.subr.mxu0 0.0
    %2898 = vmatpush1.msra.mxu0 0.0
    %2899 = vmatprep.subr.mxu0 0.0
    %2900 = vmatpush1.msra.mxu0 0.0
    %2901 = vmatprep.subr.mxu0 0.0
    %2902 = vmatpush1.msra.mxu0 0.0
    %2903 = vmatprep.mubr.f32.mxu0 0.0
    %2904 = vmatmul.mubr.f32.gmra.mrb[0].mxu0 %v2837
    %v2905 = vpop.f32.mrb[0].mxu0
    %v2906 = vadd.f32 0.0, %v2905
    %v2907 = vpop.f32.mrb[0].mxu0
    %2908 = vdwg.mxu0
    %v2909 = vadd.f32 %v2667, %v2906
    %2910 = vrot.lane.b32.xlu0 %v139, 116
    %v2911 = vpop.permute.xlu0 %2910
    %2912 = vrot.lane.b32.xlu0 %v139, 84
    %v2913 = vpop.permute.xlu0 %2912
    %v2914 = vsel %vm145, %v2911, 0
    %v2916 = vsel %vm145, %v2913, 0
    %2918 = vmatprep.subr.mxu0 0.0
    %2919 = vmatpush1.xpose.msra.mxu0 %v2916
    %2920 = vmatprep.subr.mxu0 0.0
    %2921 = vmatpush1.xpose.msra.mxu0 0.0
    %2922 = vmatprep.subr.mxu0 0.0
    %2923 = vmatpush1.xpose.msra.mxu0 0.0
    %2924 = vmatprep.subr.mxu0 0.0
    %2925 = vmatpush1.xpose.msra.mxu0 0.0
    %2926 = vmatprep.subr.mxu0 0.0
    %2927 = vmatpush1.xpose.msra.mxu0 0.0
    %2928 = vmatprep.subr.mxu0 0.0
    %2929 = vmatpush1.xpose.msra.mxu0 0.0
    %2930 = vmatprep.subr.mxu0 0.0
    %2931 = vmatpush1.xpose.msra.mxu0 0.0
    %2932 = vmatprep.subr.mxu0 0.0
    %2933 = vmatpush1.xpose.msra.mxu0 0.0
    %2934 = vmatprep.subr.mxu0 0.0
    %2935 = vmatpush1.xpose.msra.mxu0 0.0
    %2936 = vmatprep.subr.mxu0 0.0
    %2937 = vmatpush1.xpose.msra.mxu0 0.0
    %2938 = vmatprep.subr.mxu0 0.0
    %2939 = vmatpush1.xpose.msra.mxu0 0.0
    %2940 = vmatprep.subr.mxu0 0.0
    %2941 = vmatpush1.xpose.msra.mxu0 0.0
    %2942 = vmatprep.subr.mxu0 0.0
    %2943 = vmatpush1.xpose.msra.mxu0 0.0
    %2944 = vmatprep.subr.mxu0 0.0
    %2945 = vmatpush1.xpose.msra.mxu0 0.0
    %2946 = vmatprep.subr.mxu0 0.0
    %2947 = vmatpush1.xpose.msra.mxu0 0.0
    %2948 = vmatprep.subr.mxu0 0.0
    %2949 = vmatpush1.xpose.msra.mxu0 0.0
    %2950 = vmatprep.subr.mxu0 0.0
    %2951 = vmatpush1.xpose.msra.mxu0 0.0
    %2952 = vmatprep.subr.mxu0 0.0
    %2953 = vmatpush1.xpose.msra.mxu0 0.0
    %2954 = vmatprep.subr.mxu0 0.0
    %2955 = vmatpush1.xpose.msra.mxu0 0.0
    %2956 = vmatprep.subr.mxu0 0.0
    %2957 = vmatpush1.xpose.msra.mxu0 0.0
    %2958 = vmatprep.subr.mxu0 0.0
    %2959 = vmatpush1.xpose.msra.mxu0 0.0
    %2960 = vmatprep.subr.mxu0 0.0
    %2961 = vmatpush1.xpose.msra.mxu0 0.0
    %2962 = vmatprep.subr.mxu0 0.0
    %2963 = vmatpush1.xpose.msra.mxu0 0.0
    %2964 = vmatprep.subr.mxu0 0.0
    %2965 = vmatpush1.xpose.msra.mxu0 0.0
    %2966 = vmatprep.subr.mxu0 0.0
    %2967 = vmatpush1.xpose.msra.mxu0 0.0
    %2968 = vmatprep.subr.mxu0 0.0
    %2969 = vmatpush1.xpose.msra.mxu0 0.0
    %2970 = vmatprep.subr.mxu0 0.0
    %2971 = vmatpush1.xpose.msra.mxu0 0.0
    %2972 = vmatprep.subr.mxu0 0.0
    %2973 = vmatpush1.xpose.msra.mxu0 0.0
    %2974 = vmatprep.subr.mxu0 0.0
    %2975 = vmatpush1.xpose.msra.mxu0 0.0
    %2976 = vmatprep.subr.mxu0 0.0
    %2977 = vmatpush1.xpose.msra.mxu0 0.0
    %2978 = vmatprep.subr.mxu0 0.0
    %2979 = vmatpush1.xpose.msra.mxu0 0.0
    %2980 = vmatprep.subr.mxu0 0.0
    %2981 = vmatpush1.xpose.msra.mxu0 0.0
    %2982 = vmatprep.mubr.f32.mxu0 0.0
    %2983 = vmatmul.mubr.f32.gmra.mrb[0].mxu0 %v2914
    %v2984 = vpop.f32.mrb[0].mxu0
    %v2985 = vadd.f32 0.0, %v2984
    %v2986 = vpop.f32.mrb[0].mxu0
    %2987 = vdwg.mxu0
    %v2988 = vmul.f32 %v2985, 0.5
    %v2989 = vsel %vm221, %v2988, -inf
    %2990 = vmax.xlane.f32.xlu0 %v2989
    %v2991 = vpop.xlane.xlu0 %2990
    %v2992 = vsub.f32 %v2988, %v2991
    %v2993 = vmul.f32 %v2992, 1.442695
    %v2994 = vpow.pop %v2993
    %v2995 = vsel %vm221, %v2994, 0.0
    %2996 = vadd.xlane.f32.xlu0 %v2995
    %v2997 = vpop.xlane.xlu0 %2996
    %v2998 = vrcp.pop %v2997
    %v2999 = vmul.f32 %v2994, %v2998
    %3000 = vrot.lane.b32.xlu0 %v139, 52
    %v3001 = vpop.permute.xlu0 %3000
    %v3004 = vsel %vm221, %v2999, 0
    %3006 = vmatprep.subr.mxu0 0.0
    %3007 = vmatpush1.msra.mxu0 %v3001
    %3008 = vmatprep.subr.mxu0 0.0
    %3009 = vmatpush1.msra.mxu0 0.0
    %3010 = vmatprep.subr.mxu0 0.0
    %3011 = vmatpush1.msra.mxu0 0.0
    %3012 = vmatprep.subr.mxu0 0.0
    %3013 = vmatpush1.msra.mxu0 0.0
    %3014 = vmatprep.subr.mxu0 0.0
    %3015 = vmatpush1.msra.mxu0 0.0
    %3016 = vmatprep.subr.mxu0 0.0
    %3017 = vmatpush1.msra.mxu0 0.0
    %3018 = vmatprep.subr.mxu0 0.0
    %3019 = vmatpush1.msra.mxu0 0.0
    %3020 = vmatprep.subr.mxu0 0.0
    %3021 = vmatpush1.msra.mxu0 0.0
    %3022 = vmatprep.subr.mxu0 0.0
    %3023 = vmatpush1.msra.mxu0 0.0
    %3024 = vmatprep.subr.mxu0 0.0
    %3025 = vmatpush1.msra.mxu0 0.0
    %3026 = vmatprep.subr.mxu0 0.0
    %3027 = vmatpush1.msra.mxu0 0.0
    %3028 = vmatprep.subr.mxu0 0.0
    %3029 = vmatpush1.msra.mxu0 0.0
    %3030 = vmatprep.subr.mxu0 0.0
    %3031 = vmatpush1.msra.mxu0 0.0
    %3032 = vmatprep.subr.mxu0 0.0
    %3033 = vmatpush1.msra.mxu0 0.0
    %3034 = vmatprep.subr.mxu0 0.0
    %3035 = vmatpush1.msra.mxu0 0.0
    %3036 = vmatprep.subr.mxu0 0.0
    %3037 = vmatpush1.msra.mxu0 0.0
    %3038 = vmatprep.subr.mxu0 0.0
    %3039 = vmatpush1.msra.mxu0 0.0
    %3040 = vmatprep.subr.mxu0 0.0
    %3041 = vmatpush1.msra.mxu0 0.0
    %3042 = vmatprep.subr.mxu0 0.0
    %3043 = vmatpush1.msra.mxu0 0.0
    %3044 = vmatprep.subr.mxu0 0.0
    %3045 = vmatpush1.msra.mxu0 0.0
    %3046 = vmatprep.subr.mxu0 0.0
    %3047 = vmatpush1.msra.mxu0 0.0
    %3048 = vmatprep.subr.mxu0 0.0
    %3049 = vmatpush1.msra.mxu0 0.0
    %3050 = vmatprep.subr.mxu0 0.0
    %3051 = vmatpush1.msra.mxu0 0.0
    %3052 = vmatprep.subr.mxu0 0.0
    %3053 = vmatpush1.msra.mxu0 0.0
    %3054 = vmatprep.subr.mxu0 0.0
    %3055 = vmatpush1.msra.mxu0 0.0
    %3056 = vmatprep.subr.mxu0 0.0
    %3057 = vmatpush1.msra.mxu0 0.0
    %3058 = vmatprep.subr.mxu0 0.0
    %3059 = vmatpush1.msra.mxu0 0.0
    %3060 = vmatprep.subr.mxu0 0.0
    %3061 = vmatpush1.msra.mxu0 0.0
    %3062 = vmatprep.subr.mxu0 0.0
    %3063 = vmatpush1.msra.mxu0 0.0
    %3064 = vmatprep.subr.mxu0 0.0
    %3065 = vmatpush1.msra.mxu0 0.0
    %3066 = vmatprep.subr.mxu0 0.0
    %3067 = vmatpush1.msra.mxu0 0.0
    %3068 = vmatprep.subr.mxu0 0.0
    %3069 = vmatpush1.msra.mxu0 0.0
    %3070 = vmatprep.mubr.f32.mxu0 0.0
    %3071 = vmatmul.mubr.f32.gmra.mrb[0].mxu0 %v3004
    %v3072 = vpop.f32.mrb[0].mxu0
    %v3073 = vadd.f32 0.0, %v3072
    %v3074 = vpop.f32.mrb[0].mxu0
    %3075 = vdwg.mxu0
    %v3077 = vsel %vm145, %v3073, 0
    %3079 = vmatprep.subr.mxu0 0.0
    %3080 = vmatpush1.msra.mxu0 %v1049
    %3081 = vmatprep.subr.mxu0 0.0
    %3082 = vmatpush1.msra.mxu0 0.0
    %3083 = vmatprep.subr.mxu0 0.0
    %3084 = vmatpush1.msra.mxu0 0.0
    %3085 = vmatprep.subr.mxu0 0.0
    %3086 = vmatpush1.msra.mxu0 0.0
    %3087 = vmatprep.subr.mxu0 0.0
    %3088 = vmatpush1.msra.mxu0 0.0
    %3089 = vmatprep.subr.mxu0 0.0
    %3090 = vmatpush1.msra.mxu0 0.0
    %3091 = vmatprep.subr.mxu0 0.0
    %3092 = vmatpush1.msra.mxu0 0.0
    %3093 = vmatprep.subr.mxu0 0.0
    %3094 = vmatpush1.msra.mxu0 0.0
    %3095 = vmatprep.subr.mxu0 0.0
    %3096 = vmatpush1.msra.mxu0 0.0
    %3097 = vmatprep.subr.mxu0 0.0
    %3098 = vmatpush1.msra.mxu0 0.0
    %3099 = vmatprep.subr.mxu0 0.0
    %3100 = vmatpush1.msra.mxu0 0.0
    %3101 = vmatprep.subr.mxu0 0.0
    %3102 = vmatpush1.msra.mxu0 0.0
    %3103 = vmatprep.subr.mxu0 0.0
    %3104 = vmatpush1.msra.mxu0 0.0
    %3105 = vmatprep.subr.mxu0 0.0
    %3106 = vmatpush1.msra.mxu0 0.0
    %3107 = vmatprep.subr.mxu0 0.0
    %3108 = vmatpush1.msra.mxu0 0.0
    %3109 = vmatprep.subr.mxu0 0.0
    %3110 = vmatpush1.msra.mxu0 0.0
    %3111 = vmatprep.subr.mxu0 0.0
    %3112 = vmatpush1.msra.mxu0 0.0
    %3113 = vmatprep.subr.mxu0 0.0
    %3114 = vmatpush1.msra.mxu0 0.0
    %3115 = vmatprep.subr.mxu0 0.0
    %3116 = vmatpush1.msra.mxu0 0.0
    %3117 = vmatprep.subr.mxu0 0.0
    %3118 = vmatpush1.msra.mxu0 0.0
    %3119 = vmatprep.subr.mxu0 0.0
    %3120 = vmatpush1.msra.mxu0 0.0
    %3121 = vmatprep.subr.mxu0 0.0
    %3122 = vmatpush1.msra.mxu0 0.0
    %3123 = vmatprep.subr.mxu0 0.0
    %3124 = vmatpush1.msra.mxu0 0.0
    %3125 = vmatprep.subr.mxu0 0.0
    %3126 = vmatpush1.msra.mxu0 0.0
    %3127 = vmatprep.subr.mxu0 0.0
    %3128 = vmatpush1.msra.mxu0 0.0
    %3129 = vmatprep.subr.mxu0 0.0
    %3130 = vmatpush1.msra.mxu0 0.0
    %3131 = vmatprep.subr.mxu0 0.0
    %3132 = vmatpush1.msra.mxu0 0.0
    %3133 = vmatprep.subr.mxu0 0.0
    %3134 = vmatpush1.msra.mxu0 0.0
    %3135 = vmatprep.subr.mxu0 0.0
    %3136 = vmatpush1.msra.mxu0 0.0
    %3137 = vmatprep.subr.mxu0 0.0
    %3138 = vmatpush1.msra.mxu0 0.0
    %3139 = vmatprep.subr.mxu0 0.0
    %3140 = vmatpush1.msra.mxu0 0.0
    %3141 = vmatprep.subr.mxu0 0.0
    %3142 = vmatpush1.msra.mxu0 0.0
    %3143 = vmatprep.mubr.f32.mxu0 0.0
    %3144 = vmatmul.mubr.f32.gmra.mrb[0].mxu0 %v3077
    %v3145 = vpop.f32.mrb[0].mxu0
    %v3146 = vadd.f32 0.0, %v3145
    %v3147 = vpop.f32.mrb[0].mxu0
    %3148 = vdwg.mxu0
    %v3149 = vadd.f32 %v2909, %v3146
    %3150 = vrot.lane.b32.xlu0 %v139, 112
    %v3151 = vpop.permute.xlu0 %3150
    %3152 = vrot.lane.b32.xlu0 %v139, 80
    %v3153 = vpop.permute.xlu0 %3152
    %v3154 = vsel %vm145, %v3151, 0
    %v3156 = vsel %vm145, %v3153, 0
    %3158 = vmatprep.subr.mxu0 0.0
    %3159 = vmatpush1.xpose.msra.mxu0 %v3156
    %3160 = vmatprep.subr.mxu0 0.0
    %3161 = vmatpush1.xpose.msra.mxu0 0.0
    %3162 = vmatprep.subr.mxu0 0.0
    %3163 = vmatpush1.xpose.msra.mxu0 0.0
    %3164 = vmatprep.subr.mxu0 0.0
    %3165 = vmatpush1.xpose.msra.mxu0 0.0
    %3166 = vmatprep.subr.mxu0 0.0
    %3167 = vmatpush1.xpose.msra.mxu0 0.0
    %3168 = vmatprep.subr.mxu0 0.0
    %3169 = vmatpush1.xpose.msra.mxu0 0.0
    %3170 = vmatprep.subr.mxu0 0.0
    %3171 = vmatpush1.xpose.msra.mxu0 0.0
    %3172 = vmatprep.subr.mxu0 0.0
    %3173 = vmatpush1.xpose.msra.mxu0 0.0
    %3174 = vmatprep.subr.mxu0 0.0
    %3175 = vmatpush1.xpose.msra.mxu0 0.0
    %3176 = vmatprep.subr.mxu0 0.0
    %3177 = vmatpush1.xpose.msra.mxu0 0.0
    %3178 = vmatprep.subr.mxu0 0.0
    %3179 = vmatpush1.xpose.msra.mxu0 0.0
    %3180 = vmatprep.subr.mxu0 0.0
    %3181 = vmatpush1.xpose.msra.mxu0 0.0
    %3182 = vmatprep.subr.mxu0 0.0
    %3183 = vmatpush1.xpose.msra.mxu0 0.0
    %3184 = vmatprep.subr.mxu0 0.0
    %3185 = vmatpush1.xpose.msra.mxu0 0.0
    %3186 = vmatprep.subr.mxu0 0.0
    %3187 = vmatpush1.xpose.msra.mxu0 0.0
    %3188 = vmatprep.subr.mxu0 0.0
    %3189 = vmatpush1.xpose.msra.mxu0 0.0
    %3190 = vmatprep.subr.mxu0 0.0
    %3191 = vmatpush1.xpose.msra.mxu0 0.0
    %3192 = vmatprep.subr.mxu0 0.0
    %3193 = vmatpush1.xpose.msra.mxu0 0.0
    %3194 = vmatprep.subr.mxu0 0.0
    %3195 = vmatpush1.xpose.msra.mxu0 0.0
    %3196 = vmatprep.subr.mxu0 0.0
    %3197 = vmatpush1.xpose.msra.mxu0 0.0
    %3198 = vmatprep.subr.mxu0 0.0
    %3199 = vmatpush1.xpose.msra.mxu0 0.0
    %3200 = vmatprep.subr.mxu0 0.0
    %3201 = vmatpush1.xpose.msra.mxu0 0.0
    %3202 = vmatprep.subr.mxu0 0.0
    %3203 = vmatpush1.xpose.msra.mxu0 0.0
    %3204 = vmatprep.subr.mxu0 0.0
    %3205 = vmatpush1.xpose.msra.mxu0 0.0
    %3206 = vmatprep.subr.mxu0 0.0
    %3207 = vmatpush1.xpose.msra.mxu0 0.0
    %3208 = vmatprep.subr.mxu0 0.0
    %3209 = vmatpush1.xpose.msra.mxu0 0.0
    %3210 = vmatprep.subr.mxu0 0.0
    %3211 = vmatpush1.xpose.msra.mxu0 0.0
    %3212 = vmatprep.subr.mxu0 0.0
    %3213 = vmatpush1.xpose.msra.mxu0 0.0
    %3214 = vmatprep.subr.mxu0 0.0
    %3215 = vmatpush1.xpose.msra.mxu0 0.0
    %3216 = vmatprep.subr.mxu0 0.0
    %3217 = vmatpush1.xpose.msra.mxu0 0.0
    %3218 = vmatprep.subr.mxu0 0.0
    %3219 = vmatpush1.xpose.msra.mxu0 0.0
    %3220 = vmatprep.subr.mxu0 0.0
    %3221 = vmatpush1.xpose.msra.mxu0 0.0
    %3222 = vmatprep.mubr.f32.mxu0 0.0
    %3223 = vmatmul.mubr.f32.gmra.mrb[0].mxu0 %v3154
    %v3224 = vpop.f32.mrb[0].mxu0
    %v3225 = vadd.f32 0.0, %v3224
    %v3226 = vpop.f32.mrb[0].mxu0
    %3227 = vdwg.mxu0
    %v3228 = vmul.f32 %v3225, 0.5
    %v3229 = vsel %vm221, %v3228, -inf
    %3230 = vmax.xlane.f32.xlu0 %v3229
    %v3231 = vpop.xlane.xlu0 %3230
    %v3232 = vsub.f32 %v3228, %v3231
    %v3233 = vmul.f32 %v3232, 1.442695
    %v3234 = vpow.pop %v3233
    %v3235 = vsel %vm221, %v3234, 0.0
    %3236 = vadd.xlane.f32.xlu0 %v3235
    %v3237 = vpop.xlane.xlu0 %3236
    %v3238 = vrcp.pop %v3237
    %v3239 = vmul.f32 %v3234, %v3238
    %3240 = vrot.lane.b32.xlu0 %v139, 48
    %v3241 = vpop.permute.xlu0 %3240
    %v3244 = vsel %vm221, %v3239, 0
    %3246 = vmatprep.subr.mxu0 0.0
    %3247 = vmatpush1.msra.mxu0 %v3241
    %3248 = vmatprep.subr.mxu0 0.0
    %3249 = vmatpush1.msra.mxu0 0.0
    %3250 = vmatprep.subr.mxu0 0.0
    %3251 = vmatpush1.msra.mxu0 0.0
    %3252 = vmatprep.subr.mxu0 0.0
    %3253 = vmatpush1.msra.mxu0 0.0
    %3254 = vmatprep.subr.mxu0 0.0
    %3255 = vmatpush1.msra.mxu0 0.0
    %3256 = vmatprep.subr.mxu0 0.0
    %3257 = vmatpush1.msra.mxu0 0.0
    %3258 = vmatprep.subr.mxu0 0.0
    %3259 = vmatpush1.msra.mxu0 0.0
    %3260 = vmatprep.subr.mxu0 0.0
    %3261 = vmatpush1.msra.mxu0 0.0
    %3262 = vmatprep.subr.mxu0 0.0
    %3263 = vmatpush1.msra.mxu0 0.0
    %3264 = vmatprep.subr.mxu0 0.0
    %3265 = vmatpush1.msra.mxu0 0.0
    %3266 = vmatprep.subr.mxu0 0.0
    %3267 = vmatpush1.msra.mxu0 0.0
    %3268 = vmatprep.subr.mxu0 0.0
    %3269 = vmatpush1.msra.mxu0 0.0
    %3270 = vmatprep.subr.mxu0 0.0
    %3271 = vmatpush1.msra.mxu0 0.0
    %3272 = vmatprep.subr.mxu0 0.0
    %3273 = vmatpush1.msra.mxu0 0.0
    %3274 = vmatprep.subr.mxu0 0.0
    %3275 = vmatpush1.msra.mxu0 0.0
    %3276 = vmatprep.subr.mxu0 0.0
    %3277 = vmatpush1.msra.mxu0 0.0
    %3278 = vmatprep.subr.mxu0 0.0
    %3279 = vmatpush1.msra.mxu0 0.0
    %3280 = vmatprep.subr.mxu0 0.0
    %3281 = vmatpush1.msra.mxu0 0.0
    %3282 = vmatprep.subr.mxu0 0.0
    %3283 = vmatpush1.msra.mxu0 0.0
    %3284 = vmatprep.subr.mxu0 0.0
    %3285 = vmatpush1.msra.mxu0 0.0
    %3286 = vmatprep.subr.mxu0 0.0
    %3287 = vmatpush1.msra.mxu0 0.0
    %3288 = vmatprep.subr.mxu0 0.0
    %3289 = vmatpush1.msra.mxu0 0.0
    %3290 = vmatprep.subr.mxu0 0.0
    %3291 = vmatpush1.msra.mxu0 0.0
    %3292 = vmatprep.subr.mxu0 0.0
    %3293 = vmatpush1.msra.mxu0 0.0
    %3294 = vmatprep.subr.mxu0 0.0
    %3295 = vmatpush1.msra.mxu0 0.0
    %3296 = vmatprep.subr.mxu0 0.0
    %3297 = vmatpush1.msra.mxu0 0.0
    %3298 = vmatprep.subr.mxu0 0.0
    %3299 = vmatpush1.msra.mxu0 0.0
    %3300 = vmatprep.subr.mxu0 0.0
    %3301 = vmatpush1.msra.mxu0 0.0
    %3302 = vmatprep.subr.mxu0 0.0
    %3303 = vmatpush1.msra.mxu0 0.0
    %3304 = vmatprep.subr.mxu0 0.0
    %3305 = vmatpush1.msra.mxu0 0.0
    %3306 = vmatprep.subr.mxu0 0.0
    %3307 = vmatpush1.msra.mxu0 0.0
    %3308 = vmatprep.subr.mxu0 0.0
    %3309 = vmatpush1.msra.mxu0 0.0
    %3310 = vmatprep.mubr.f32.mxu0 0.0
    %3311 = vmatmul.mubr.f32.gmra.mrb[0].mxu0 %v3244
    %v3312 = vpop.f32.mrb[0].mxu0
    %v3313 = vadd.f32 0.0, %v3312
    %v3314 = vpop.f32.mrb[0].mxu0
    %3315 = vdwg.mxu0
    %v3317 = vsel %vm145, %v3313, 0
    %3319 = vmatprep.subr.mxu0 0.0
    %3320 = vmatpush1.msra.mxu0 %v1294
    %3321 = vmatprep.subr.mxu0 0.0
    %3322 = vmatpush1.msra.mxu0 0.0
    %3323 = vmatprep.subr.mxu0 0.0
    %3324 = vmatpush1.msra.mxu0 0.0
    %3325 = vmatprep.subr.mxu0 0.0
    %3326 = vmatpush1.msra.mxu0 0.0
    %3327 = vmatprep.subr.mxu0 0.0
    %3328 = vmatpush1.msra.mxu0 0.0
    %3329 = vmatprep.subr.mxu0 0.0
    %3330 = vmatpush1.msra.mxu0 0.0
    %3331 = vmatprep.subr.mxu0 0.0
    %3332 = vmatpush1.msra.mxu0 0.0
    %3333 = vmatprep.subr.mxu0 0.0
    %3334 = vmatpush1.msra.mxu0 0.0
    %3335 = vmatprep.subr.mxu0 0.0
    %3336 = vmatpush1.msra.mxu0 0.0
    %3337 = vmatprep.subr.mxu0 0.0
    %3338 = vmatpush1.msra.mxu0 0.0
    %3339 = vmatprep.subr.mxu0 0.0
    %3340 = vmatpush1.msra.mxu0 0.0
    %3341 = vmatprep.subr.mxu0 0.0
    %3342 = vmatpush1.msra.mxu0 0.0
    %3343 = vmatprep.subr.mxu0 0.0
    %3344 = vmatpush1.msra.mxu0 0.0
    %3345 = vmatprep.subr.mxu0 0.0
    %3346 = vmatpush1.msra.mxu0 0.0
    %3347 = vmatprep.subr.mxu0 0.0
    %3348 = vmatpush1.msra.mxu0 0.0
    %3349 = vmatprep.subr.mxu0 0.0
    %3350 = vmatpush1.msra.mxu0 0.0
    %3351 = vmatprep.subr.mxu0 0.0
    %3352 = vmatpush1.msra.mxu0 0.0
    %3353 = vmatprep.subr.mxu0 0.0
    %3354 = vmatpush1.msra.mxu0 0.0
    %3355 = vmatprep.subr.mxu0 0.0
    %3356 = vmatpush1.msra.mxu0 0.0
    %3357 = vmatprep.subr.mxu0 0.0
    %3358 = vmatpush1.msra.mxu0 0.0
    %3359 = vmatprep.subr.mxu0 0.0
    %3360 = vmatpush1.msra.mxu0 0.0
    %3361 = vmatprep.subr.mxu0 0.0
    %3362 = vmatpush1.msra.mxu0 0.0
    %3363 = vmatprep.subr.mxu0 0.0
    %3364 = vmatpush1.msra.mxu0 0.0
    %3365 = vmatprep.subr.mxu0 0.0
    %3366 = vmatpush1.msra.mxu0 0.0
    %3367 = vmatprep.subr.mxu0 0.0
    %3368 = vmatpush1.msra.mxu0 0.0
    %3369 = vmatprep.subr.mxu0 0.0
    %3370 = vmatpush1.msra.mxu0 0.0
    %3371 = vmatprep.subr.mxu0 0.0
    %3372 = vmatpush1.msra.mxu0 0.0
    %3373 = vmatprep.subr.mxu0 0.0
    %3374 = vmatpush1.msra.mxu0 0.0
    %3375 = vmatprep.subr.mxu0 0.0
    %3376 = vmatpush1.msra.mxu0 0.0
    %3377 = vmatprep.subr.mxu0 0.0
    %3378 = vmatpush1.msra.mxu0 0.0
    %3379 = vmatprep.subr.mxu0 0.0
    %3380 = vmatpush1.msra.mxu0 0.0
    %3381 = vmatprep.subr.mxu0 0.0
    %3382 = vmatpush1.msra.mxu0 0.0
    %3383 = vmatprep.mubr.f32.mxu0 0.0
    %3384 = vmatmul.mubr.f32.gmra.mrb[0].mxu0 %v3317
    %v3385 = vpop.f32.mrb[0].mxu0
    %v3386 = vadd.f32 0.0, %v3385
    %v3387 = vpop.f32.mrb[0].mxu0
    %3388 = vdwg.mxu0
    %v3389 = vadd.f32 %v3149, %v3386
    %3390 = vrot.lane.b32.xlu0 %v139, 108
    %v3391 = vpop.permute.xlu0 %3390
    %3392 = vrot.lane.b32.xlu0 %v139, 76
    %v3393 = vpop.permute.xlu0 %3392
    %v3394 = vsel %vm145, %v3391, 0
    %v3396 = vsel %vm145, %v3393, 0
    %3398 = vmatprep.subr.mxu0 0.0
    %3399 = vmatpush1.xpose.msra.mxu0 %v3396
    %3400 = vmatprep.subr.mxu0 0.0
    %3401 = vmatpush1.xpose.msra.mxu0 0.0
    %3402 = vmatprep.subr.mxu0 0.0
    %3403 = vmatpush1.xpose.msra.mxu0 0.0
    %3404 = vmatprep.subr.mxu0 0.0
    %3405 = vmatpush1.xpose.msra.mxu0 0.0
    %3406 = vmatprep.subr.mxu0 0.0
    %3407 = vmatpush1.xpose.msra.mxu0 0.0
    %3408 = vmatprep.subr.mxu0 0.0
    %3409 = vmatpush1.xpose.msra.mxu0 0.0
    %3410 = vmatprep.subr.mxu0 0.0
    %3411 = vmatpush1.xpose.msra.mxu0 0.0
    %3412 = vmatprep.subr.mxu0 0.0
    %3413 = vmatpush1.xpose.msra.mxu0 0.0
    %3414 = vmatprep.subr.mxu0 0.0
    %3415 = vmatpush1.xpose.msra.mxu0 0.0
    %3416 = vmatprep.subr.mxu0 0.0
    %3417 = vmatpush1.xpose.msra.mxu0 0.0
    %3418 = vmatprep.subr.mxu0 0.0
    %3419 = vmatpush1.xpose.msra.mxu0 0.0
    %3420 = vmatprep.subr.mxu0 0.0
    %3421 = vmatpush1.xpose.msra.mxu0 0.0
    %3422 = vmatprep.subr.mxu0 0.0
    %3423 = vmatpush1.xpose.msra.mxu0 0.0
    %3424 = vmatprep.subr.mxu0 0.0
    %3425 = vmatpush1.xpose.msra.mxu0 0.0
    %3426 = vmatprep.subr.mxu0 0.0
    %3427 = vmatpush1.xpose.msra.mxu0 0.0
    %3428 = vmatprep.subr.mxu0 0.0
    %3429 = vmatpush1.xpose.msra.mxu0 0.0
    %3430 = vmatprep.subr.mxu0 0.0
    %3431 = vmatpush1.xpose.msra.mxu0 0.0
    %3432 = vmatprep.subr.mxu0 0.0
    %3433 = vmatpush1.xpose.msra.mxu0 0.0
    %3434 = vmatprep.subr.mxu0 0.0
    %3435 = vmatpush1.xpose.msra.mxu0 0.0
    %3436 = vmatprep.subr.mxu0 0.0
    %3437 = vmatpush1.xpose.msra.mxu0 0.0
    %3438 = vmatprep.subr.mxu0 0.0
    %3439 = vmatpush1.xpose.msra.mxu0 0.0
    %3440 = vmatprep.subr.mxu0 0.0
    %3441 = vmatpush1.xpose.msra.mxu0 0.0
    %3442 = vmatprep.subr.mxu0 0.0
    %3443 = vmatpush1.xpose.msra.mxu0 0.0
    %3444 = vmatprep.subr.mxu0 0.0
    %3445 = vmatpush1.xpose.msra.mxu0 0.0
    %3446 = vmatprep.subr.mxu0 0.0
    %3447 = vmatpush1.xpose.msra.mxu0 0.0
    %3448 = vmatprep.subr.mxu0 0.0
    %3449 = vmatpush1.xpose.msra.mxu0 0.0
    %3450 = vmatprep.subr.mxu0 0.0
    %3451 = vmatpush1.xpose.msra.mxu0 0.0
    %3452 = vmatprep.subr.mxu0 0.0
    %3453 = vmatpush1.xpose.msra.mxu0 0.0
    %3454 = vmatprep.subr.mxu0 0.0
    %3455 = vmatpush1.xpose.msra.mxu0 0.0
    %3456 = vmatprep.subr.mxu0 0.0
    %3457 = vmatpush1.xpose.msra.mxu0 0.0
    %3458 = vmatprep.subr.mxu0 0.0
    %3459 = vmatpush1.xpose.msra.mxu0 0.0
    %3460 = vmatprep.subr.mxu0 0.0
    %3461 = vmatpush1.xpose.msra.mxu0 0.0
    %3462 = vmatprep.mubr.f32.mxu0 0.0
    %3463 = vmatmul.mubr.f32.gmra.mrb[0].mxu0 %v3394
    %v3464 = vpop.f32.mrb[0].mxu0
    %v3465 = vadd.f32 0.0, %v3464
    %v3466 = vpop.f32.mrb[0].mxu0
    %3467 = vdwg.mxu0
    %v3468 = vmul.f32 %v3465, 0.5
    %v3469 = vsel %vm221, %v3468, -inf
    %3470 = vmax.xlane.f32.xlu0 %v3469
    %v3471 = vpop.xlane.xlu0 %3470
    %v3472 = vsub.f32 %v3468, %v3471
    %v3473 = vmul.f32 %v3472, 1.442695
    %v3474 = vpow.pop %v3473
    %v3475 = vsel %vm221, %v3474, 0.0
    %3476 = vadd.xlane.f32.xlu0 %v3475
    %v3477 = vpop.xlane.xlu0 %3476
    %v3478 = vrcp.pop %v3477
    %v3479 = vmul.f32 %v3474, %v3478
    %3480 = vrot.lane.b32.xlu0 %v139, 44
    %v3481 = vpop.permute.xlu0 %3480
    %v3484 = vsel %vm221, %v3479, 0
    %3486 = vmatprep.subr.mxu0 0.0
    %3487 = vmatpush1.msra.mxu0 %v3481
    %3488 = vmatprep.subr.mxu0 0.0
    %3489 = vmatpush1.msra.mxu0 0.0
    %3490 = vmatprep.subr.mxu0 0.0
    %3491 = vmatpush1.msra.mxu0 0.0
    %3492 = vmatprep.subr.mxu0 0.0
    %3493 = vmatpush1.msra.mxu0 0.0
    %3494 = vmatprep.subr.mxu0 0.0
    %3495 = vmatpush1.msra.mxu0 0.0
    %3496 = vmatprep.subr.mxu0 0.0
    %3497 = vmatpush1.msra.mxu0 0.0
    %3498 = vmatprep.subr.mxu0 0.0
    %3499 = vmatpush1.msra.mxu0 0.0
    %3500 = vmatprep.subr.mxu0 0.0
    %3501 = vmatpush1.msra.mxu0 0.0
    %3502 = vmatprep.subr.mxu0 0.0
    %3503 = vmatpush1.msra.mxu0 0.0
    %3504 = vmatprep.subr.mxu0 0.0
    %3505 = vmatpush1.msra.mxu0 0.0
    %3506 = vmatprep.subr.mxu0 0.0
    %3507 = vmatpush1.msra.mxu0 0.0
    %3508 = vmatprep.subr.mxu0 0.0
    %3509 = vmatpush1.msra.mxu0 0.0
    %3510 = vmatprep.subr.mxu0 0.0
    %3511 = vmatpush1.msra.mxu0 0.0
    %3512 = vmatprep.subr.mxu0 0.0
    %3513 = vmatpush1.msra.mxu0 0.0
    %3514 = vmatprep.subr.mxu0 0.0
    %3515 = vmatpush1.msra.mxu0 0.0
    %3516 = vmatprep.subr.mxu0 0.0
    %3517 = vmatpush1.msra.mxu0 0.0
    %3518 = vmatprep.subr.mxu0 0.0
    %3519 = vmatpush1.msra.mxu0 0.0
    %3520 = vmatprep.subr.mxu0 0.0
    %3521 = vmatpush1.msra.mxu0 0.0
    %3522 = vmatprep.subr.mxu0 0.0
    %3523 = vmatpush1.msra.mxu0 0.0
    %3524 = vmatprep.subr.mxu0 0.0
    %3525 = vmatpush1.msra.mxu0 0.0
    %3526 = vmatprep.subr.mxu0 0.0
    %3527 = vmatpush1.msra.mxu0 0.0
    %3528 = vmatprep.subr.mxu0 0.0
    %3529 = vmatpush1.msra.mxu0 0.0
    %3530 = vmatprep.subr.mxu0 0.0
    %3531 = vmatpush1.msra.mxu0 0.0
    %3532 = vmatprep.subr.mxu0 0.0
    %3533 = vmatpush1.msra.mxu0 0.0
    %3534 = vmatprep.subr.mxu0 0.0
    %3535 = vmatpush1.msra.mxu0 0.0
    %3536 = vmatprep.subr.mxu0 0.0
    %3537 = vmatpush1.msra.mxu0 0.0
    %3538 = vmatprep.subr.mxu0 0.0
    %3539 = vmatpush1.msra.mxu0 0.0
    %3540 = vmatprep.subr.mxu0 0.0
    %3541 = vmatpush1.msra.mxu0 0.0
    %3542 = vmatprep.subr.mxu0 0.0
    %3543 = vmatpush1.msra.mxu0 0.0
    %3544 = vmatprep.subr.mxu0 0.0
    %3545 = vmatpush1.msra.mxu0 0.0
    %3546 = vmatprep.subr.mxu0 0.0
    %3547 = vmatpush1.msra.mxu0 0.0
    %3548 = vmatprep.subr.mxu0 0.0
    %3549 = vmatpush1.msra.mxu0 0.0
    %3550 = vmatprep.mubr.f32.mxu0 0.0
    %3551 = vmatmul.mubr.f32.gmra.mrb[0].mxu0 %v3484
    %v3552 = vpop.f32.mrb[0].mxu0
    %v3553 = vadd.f32 0.0, %v3552
    %v3554 = vpop.f32.mrb[0].mxu0
    %3555 = vdwg.mxu0
    %v3557 = vsel %vm145, %v3553, 0
    %3559 = vmatprep.subr.mxu0 0.0
    %3560 = vmatpush1.msra.mxu0 %v1539
    %3561 = vmatprep.subr.mxu0 0.0
    %3562 = vmatpush1.msra.mxu0 0.0
    %3563 = vmatprep.subr.mxu0 0.0
    %3564 = vmatpush1.msra.mxu0 0.0
    %3565 = vmatprep.subr.mxu0 0.0
    %3566 = vmatpush1.msra.mxu0 0.0
    %3567 = vmatprep.subr.mxu0 0.0
    %3568 = vmatpush1.msra.mxu0 0.0
    %3569 = vmatprep.subr.mxu0 0.0
    %3570 = vmatpush1.msra.mxu0 0.0
    %3571 = vmatprep.subr.mxu0 0.0
    %3572 = vmatpush1.msra.mxu0 0.0
    %3573 = vmatprep.subr.mxu0 0.0
    %3574 = vmatpush1.msra.mxu0 0.0
    %3575 = vmatprep.subr.mxu0 0.0
    %3576 = vmatpush1.msra.mxu0 0.0
    %3577 = vmatprep.subr.mxu0 0.0
    %3578 = vmatpush1.msra.mxu0 0.0
    %3579 = vmatprep.subr.mxu0 0.0
    %3580 = vmatpush1.msra.mxu0 0.0
    %3581 = vmatprep.subr.mxu0 0.0
    %3582 = vmatpush1.msra.mxu0 0.0
    %3583 = vmatprep.subr.mxu0 0.0
    %3584 = vmatpush1.msra.mxu0 0.0
    %3585 = vmatprep.subr.mxu0 0.0
    %3586 = vmatpush1.msra.mxu0 0.0
    %3587 = vmatprep.subr.mxu0 0.0
    %3588 = vmatpush1.msra.mxu0 0.0
    %3589 = vmatprep.subr.mxu0 0.0
    %3590 = vmatpush1.msra.mxu0 0.0
    %3591 = vmatprep.subr.mxu0 0.0
    %3592 = vmatpush1.msra.mxu0 0.0
    %3593 = vmatprep.subr.mxu0 0.0
    %3594 = vmatpush1.msra.mxu0 0.0
    %3595 = vmatprep.subr.mxu0 0.0
    %3596 = vmatpush1.msra.mxu0 0.0
    %3597 = vmatprep.subr.mxu0 0.0
    %3598 = vmatpush1.msra.mxu0 0.0
    %3599 = vmatprep.subr.mxu0 0.0
    %3600 = vmatpush1.msra.mxu0 0.0
    %3601 = vmatprep.subr.mxu0 0.0
    %3602 = vmatpush1.msra.mxu0 0.0
    %3603 = vmatprep.subr.mxu0 0.0
    %3604 = vmatpush1.msra.mxu0 0.0
    %3605 = vmatprep.subr.mxu0 0.0
    %3606 = vmatpush1.msra.mxu0 0.0
    %3607 = vmatprep.subr.mxu0 0.0
    %3608 = vmatpush1.msra.mxu0 0.0
    %3609 = vmatprep.subr.mxu0 0.0
    %3610 = vmatpush1.msra.mxu0 0.0
    %3611 = vmatprep.subr.mxu0 0.0
    %3612 = vmatpush1.msra.mxu0 0.0
    %3613 = vmatprep.subr.mxu0 0.0
    %3614 = vmatpush1.msra.mxu0 0.0
    %3615 = vmatprep.subr.mxu0 0.0
    %3616 = vmatpush1.msra.mxu0 0.0
    %3617 = vmatprep.subr.mxu0 0.0
    %3618 = vmatpush1.msra.mxu0 0.0
    %3619 = vmatprep.subr.mxu0 0.0
    %3620 = vmatpush1.msra.mxu0 0.0
    %3621 = vmatprep.subr.mxu0 0.0
    %3622 = vmatpush1.msra.mxu0 0.0
    %3623 = vmatprep.mubr.f32.mxu0 0.0
    %3624 = vmatmul.mubr.f32.gmra.mrb[0].mxu0 %v3557
    %v3625 = vpop.f32.mrb[0].mxu0
    %v3626 = vadd.f32 0.0, %v3625
    %v3627 = vpop.f32.mrb[0].mxu0
    %3628 = vdwg.mxu0
    %v3629 = vadd.f32 %v3389, %v3626
    %3630 = vrot.lane.b32.xlu0 %v139, 104
    %v3631 = vpop.permute.xlu0 %3630
    %3632 = vrot.lane.b32.xlu0 %v139, 72
    %v3633 = vpop.permute.xlu0 %3632
    %v3634 = vsel %vm145, %v3631, 0
    %v3636 = vsel %vm145, %v3633, 0
    %3638 = vmatprep.subr.mxu0 0.0
    %3639 = vmatpush1.xpose.msra.mxu0 %v3636
    %3640 = vmatprep.subr.mxu0 0.0
    %3641 = vmatpush1.xpose.msra.mxu0 0.0
    %3642 = vmatprep.subr.mxu0 0.0
    %3643 = vmatpush1.xpose.msra.mxu0 0.0
    %3644 = vmatprep.subr.mxu0 0.0
    %3645 = vmatpush1.xpose.msra.mxu0 0.0
    %3646 = vmatprep.subr.mxu0 0.0
    %3647 = vmatpush1.xpose.msra.mxu0 0.0
    %3648 = vmatprep.subr.mxu0 0.0
    %3649 = vmatpush1.xpose.msra.mxu0 0.0
    %3650 = vmatprep.subr.mxu0 0.0
    %3651 = vmatpush1.xpose.msra.mxu0 0.0
    %3652 = vmatprep.subr.mxu0 0.0
    %3653 = vmatpush1.xpose.msra.mxu0 0.0
    %3654 = vmatprep.subr.mxu0 0.0
    %3655 = vmatpush1.xpose.msra.mxu0 0.0
    %3656 = vmatprep.subr.mxu0 0.0
    %3657 = vmatpush1.xpose.msra.mxu0 0.0
    %3658 = vmatprep.subr.mxu0 0.0
    %3659 = vmatpush1.xpose.msra.mxu0 0.0
    %3660 = vmatprep.subr.mxu0 0.0
    %3661 = vmatpush1.xpose.msra.mxu0 0.0
    %3662 = vmatprep.subr.mxu0 0.0
    %3663 = vmatpush1.xpose.msra.mxu0 0.0
    %3664 = vmatprep.subr.mxu0 0.0
    %3665 = vmatpush1.xpose.msra.mxu0 0.0
    %3666 = vmatprep.subr.mxu0 0.0
    %3667 = vmatpush1.xpose.msra.mxu0 0.0
    %3668 = vmatprep.subr.mxu0 0.0
    %3669 = vmatpush1.xpose.msra.mxu0 0.0
    %3670 = vmatprep.subr.mxu0 0.0
    %3671 = vmatpush1.xpose.msra.mxu0 0.0
    %3672 = vmatprep.subr.mxu0 0.0
    %3673 = vmatpush1.xpose.msra.mxu0 0.0
    %3674 = vmatprep.subr.mxu0 0.0
    %3675 = vmatpush1.xpose.msra.mxu0 0.0
    %3676 = vmatprep.subr.mxu0 0.0
    %3677 = vmatpush1.xpose.msra.mxu0 0.0
    %3678 = vmatprep.subr.mxu0 0.0
    %3679 = vmatpush1.xpose.msra.mxu0 0.0
    %3680 = vmatprep.subr.mxu0 0.0
    %3681 = vmatpush1.xpose.msra.mxu0 0.0
    %3682 = vmatprep.subr.mxu0 0.0
    %3683 = vmatpush1.xpose.msra.mxu0 0.0
    %3684 = vmatprep.subr.mxu0 0.0
    %3685 = vmatpush1.xpose.msra.mxu0 0.0
    %3686 = vmatprep.subr.mxu0 0.0
    %3687 = vmatpush1.xpose.msra.mxu0 0.0
    %3688 = vmatprep.subr.mxu0 0.0
    %3689 = vmatpush1.xpose.msra.mxu0 0.0
    %3690 = vmatprep.subr.mxu0 0.0
    %3691 = vmatpush1.xpose.msra.mxu0 0.0
    %3692 = vmatprep.subr.mxu0 0.0
    %3693 = vmatpush1.xpose.msra.mxu0 0.0
    %3694 = vmatprep.subr.mxu0 0.0
    %3695 = vmatpush1.xpose.msra.mxu0 0.0
    %3696 = vmatprep.subr.mxu0 0.0
    %3697 = vmatpush1.xpose.msra.mxu0 0.0
    %3698 = vmatprep.subr.mxu0 0.0
    %3699 = vmatpush1.xpose.msra.mxu0 0.0
    %3700 = vmatprep.subr.mxu0 0.0
    %3701 = vmatpush1.xpose.msra.mxu0 0.0
    %3702 = vmatprep.mubr.f32.mxu0 0.0
    %3703 = vmatmul.mubr.f32.gmra.mrb[0].mxu0 %v3634
    %v3704 = vpop.f32.mrb[0].mxu0
    %v3705 = vadd.f32 0.0, %v3704
    %v3706 = vpop.f32.mrb[0].mxu0
    %3707 = vdwg.mxu0
    %v3708 = vmul.f32 %v3705, 0.5
    %v3709 = vsel %vm221, %v3708, -inf
    %3710 = vmax.xlane.f32.xlu0 %v3709
    %v3711 = vpop.xlane.xlu0 %3710
    %v3712 = vsub.f32 %v3708, %v3711
    %v3713 = vmul.f32 %v3712, 1.442695
    %v3714 = vpow.pop %v3713
    %v3715 = vsel %vm221, %v3714, 0.0
    %3716 = vadd.xlane.f32.xlu0 %v3715
    %v3717 = vpop.xlane.xlu0 %3716
    %v3718 = vrcp.pop %v3717
    %v3719 = vmul.f32 %v3714, %v3718
    %3720 = vrot.lane.b32.xlu0 %v139, 40
    %v3721 = vpop.permute.xlu0 %3720
    %v3724 = vsel %vm221, %v3719, 0
    %3726 = vmatprep.subr.mxu0 0.0
    %3727 = vmatpush1.msra.mxu0 %v3721
    %3728 = vmatprep.subr.mxu0 0.0
    %3729 = vmatpush1.msra.mxu0 0.0
    %3730 = vmatprep.subr.mxu0 0.0
    %3731 = vmatpush1.msra.mxu0 0.0
    %3732 = vmatprep.subr.mxu0 0.0
    %3733 = vmatpush1.msra.mxu0 0.0
    %3734 = vmatprep.subr.mxu0 0.0
    %3735 = vmatpush1.msra.mxu0 0.0
    %3736 = vmatprep.subr.mxu0 0.0
    %3737 = vmatpush1.msra.mxu0 0.0
    %3738 = vmatprep.subr.mxu0 0.0
    %3739 = vmatpush1.msra.mxu0 0.0
    %3740 = vmatprep.subr.mxu0 0.0
    %3741 = vmatpush1.msra.mxu0 0.0
    %3742 = vmatprep.subr.mxu0 0.0
    %3743 = vmatpush1.msra.mxu0 0.0
    %3744 = vmatprep.subr.mxu0 0.0
    %3745 = vmatpush1.msra.mxu0 0.0
    %3746 = vmatprep.subr.mxu0 0.0
    %3747 = vmatpush1.msra.mxu0 0.0
    %3748 = vmatprep.subr.mxu0 0.0
    %3749 = vmatpush1.msra.mxu0 0.0
    %3750 = vmatprep.subr.mxu0 0.0
    %3751 = vmatpush1.msra.mxu0 0.0
    %3752 = vmatprep.subr.mxu0 0.0
    %3753 = vmatpush1.msra.mxu0 0.0
    %3754 = vmatprep.subr.mxu0 0.0
    %3755 = vmatpush1.msra.mxu0 0.0
    %3756 = vmatprep.subr.mxu0 0.0
    %3757 = vmatpush1.msra.mxu0 0.0
    %3758 = vmatprep.subr.mxu0 0.0
    %3759 = vmatpush1.msra.mxu0 0.0
    %3760 = vmatprep.subr.mxu0 0.0
    %3761 = vmatpush1.msra.mxu0 0.0
    %3762 = vmatprep.subr.mxu0 0.0
    %3763 = vmatpush1.msra.mxu0 0.0
    %3764 = vmatprep.subr.mxu0 0.0
    %3765 = vmatpush1.msra.mxu0 0.0
    %3766 = vmatprep.subr.mxu0 0.0
    %3767 = vmatpush1.msra.mxu0 0.0
    %3768 = vmatprep.subr.mxu0 0.0
    %3769 = vmatpush1.msra.mxu0 0.0
    %3770 = vmatprep.subr.mxu0 0.0
    %3771 = vmatpush1.msra.mxu0 0.0
    %3772 = vmatprep.subr.mxu0 0.0
    %3773 = vmatpush1.msra.mxu0 0.0
    %3774 = vmatprep.subr.mxu0 0.0
    %3775 = vmatpush1.msra.mxu0 0.0
    %3776 = vmatprep.subr.mxu0 0.0
    %3777 = vmatpush1.msra.mxu0 0.0
    %3778 = vmatprep.subr.mxu0 0.0
    %3779 = vmatpush1.msra.mxu0 0.0
    %3780 = vmatprep.subr.mxu0 0.0
    %3781 = vmatpush1.msra.mxu0 0.0
    %3782 = vmatprep.subr.mxu0 0.0
    %3783 = vmatpush1.msra.mxu0 0.0
    %3784 = vmatprep.subr.mxu0 0.0
    %3785 = vmatpush1.msra.mxu0 0.0
    %3786 = vmatprep.subr.mxu0 0.0
    %3787 = vmatpush1.msra.mxu0 0.0
    %3788 = vmatprep.subr.mxu0 0.0
    %3789 = vmatpush1.msra.mxu0 0.0
    %3790 = vmatprep.mubr.f32.mxu0 0.0
    %3791 = vmatmul.mubr.f32.gmra.mrb[0].mxu0 %v3724
    %v3792 = vpop.f32.mrb[0].mxu0
    %v3793 = vadd.f32 0.0, %v3792
    %v3794 = vpop.f32.mrb[0].mxu0
    %3795 = vdwg.mxu0
    %v3797 = vsel %vm145, %v3793, 0
    %3799 = vmatprep.subr.mxu0 0.0
    %3800 = vmatpush1.msra.mxu0 %v1784
    %3801 = vmatprep.subr.mxu0 0.0
    %3802 = vmatpush1.msra.mxu0 0.0
    %3803 = vmatprep.subr.mxu0 0.0
    %3804 = vmatpush1.msra.mxu0 0.0
    %3805 = vmatprep.subr.mxu0 0.0
    %3806 = vmatpush1.msra.mxu0 0.0
    %3807 = vmatprep.subr.mxu0 0.0
    %3808 = vmatpush1.msra.mxu0 0.0
    %3809 = vmatprep.subr.mxu0 0.0
    %3810 = vmatpush1.msra.mxu0 0.0
    %3811 = vmatprep.subr.mxu0 0.0
    %3812 = vmatpush1.msra.mxu0 0.0
    %3813 = vmatprep.subr.mxu0 0.0
    %3814 = vmatpush1.msra.mxu0 0.0
    %3815 = vmatprep.subr.mxu0 0.0
    %3816 = vmatpush1.msra.mxu0 0.0
    %3817 = vmatprep.subr.mxu0 0.0
    %3818 = vmatpush1.msra.mxu0 0.0
    %3819 = vmatprep.subr.mxu0 0.0
    %3820 = vmatpush1.msra.mxu0 0.0
    %3821 = vmatprep.subr.mxu0 0.0
    %3822 = vmatpush1.msra.mxu0 0.0
    %3823 = vmatprep.subr.mxu0 0.0
    %3824 = vmatpush1.msra.mxu0 0.0
    %3825 = vmatprep.subr.mxu0 0.0
    %3826 = vmatpush1.msra.mxu0 0.0
    %3827 = vmatprep.subr.mxu0 0.0
    %3828 = vmatpush1.msra.mxu0 0.0
    %3829 = vmatprep.subr.mxu0 0.0
    %3830 = vmatpush1.msra.mxu0 0.0
    %3831 = vmatprep.subr.mxu0 0.0
    %3832 = vmatpush1.msra.mxu0 0.0
    %3833 = vmatprep.subr.mxu0 0.0
    %3834 = vmatpush1.msra.mxu0 0.0
    %3835 = vmatprep.subr.mxu0 0.0
    %3836 = vmatpush1.msra.mxu0 0.0
    %3837 = vmatprep.subr.mxu0 0.0
    %3838 = vmatpush1.msra.mxu0 0.0
    %3839 = vmatprep.subr.mxu0 0.0
    %3840 = vmatpush1.msra.mxu0 0.0
    %3841 = vmatprep.subr.mxu0 0.0
    %3842 = vmatpush1.msra.mxu0 0.0
    %3843 = vmatprep.subr.mxu0 0.0
    %3844 = vmatpush1.msra.mxu0 0.0
    %3845 = vmatprep.subr.mxu0 0.0
    %3846 = vmatpush1.msra.mxu0 0.0
    %3847 = vmatprep.subr.mxu0 0.0
    %3848 = vmatpush1.msra.mxu0 0.0
    %3849 = vmatprep.subr.mxu0 0.0
    %3850 = vmatpush1.msra.mxu0 0.0
    %3851 = vmatprep.subr.mxu0 0.0
    %3852 = vmatpush1.msra.mxu0 0.0
    %3853 = vmatprep.subr.mxu0 0.0
    %3854 = vmatpush1.msra.mxu0 0.0
    %3855 = vmatprep.subr.mxu0 0.0
    %3856 = vmatpush1.msra.mxu0 0.0
    %3857 = vmatprep.subr.mxu0 0.0
    %3858 = vmatpush1.msra.mxu0 0.0
    %3859 = vmatprep.subr.mxu0 0.0
    %3860 = vmatpush1.msra.mxu0 0.0
    %3861 = vmatprep.subr.mxu0 0.0
    %3862 = vmatpush1.msra.mxu0 0.0
    %3863 = vmatprep.mubr.f32.mxu0 0.0
    %3864 = vmatmul.mubr.f32.gmra.mrb[0].mxu0 %v3797
    %v3865 = vpop.f32.mrb[0].mxu0
    %v3866 = vadd.f32 0.0, %v3865
    %v3867 = vpop.f32.mrb[0].mxu0
    %3868 = vdwg.mxu0
    %v3869 = vadd.f32 %v3629, %v3866
    %3870 = vrot.lane.b32.xlu0 %v139, 100
    %v3871 = vpop.permute.xlu0 %3870
    %3872 = vrot.lane.b32.xlu0 %v139, 68
    %v3873 = vpop.permute.xlu0 %3872
    %v3874 = vsel %vm145, %v3871, 0
    %v3876 = vsel %vm145, %v3873, 0
    %3878 = vmatprep.subr.mxu0 0.0
    %3879 = vmatpush1.xpose.msra.mxu0 %v3876
    %3880 = vmatprep.subr.mxu0 0.0
    %3881 = vmatpush1.xpose.msra.mxu0 0.0
    %3882 = vmatprep.subr.mxu0 0.0
    %3883 = vmatpush1.xpose.msra.mxu0 0.0
    %3884 = vmatprep.subr.mxu0 0.0
    %3885 = vmatpush1.xpose.msra.mxu0 0.0
    %3886 = vmatprep.subr.mxu0 0.0
    %3887 = vmatpush1.xpose.msra.mxu0 0.0
    %3888 = vmatprep.subr.mxu0 0.0
    %3889 = vmatpush1.xpose.msra.mxu0 0.0
    %3890 = vmatprep.subr.mxu0 0.0
    %3891 = vmatpush1.xpose.msra.mxu0 0.0
    %3892 = vmatprep.subr.mxu0 0.0
    %3893 = vmatpush1.xpose.msra.mxu0 0.0
    %3894 = vmatprep.subr.mxu0 0.0
    %3895 = vmatpush1.xpose.msra.mxu0 0.0
    %3896 = vmatprep.subr.mxu0 0.0
    %3897 = vmatpush1.xpose.msra.mxu0 0.0
    %3898 = vmatprep.subr.mxu0 0.0
    %3899 = vmatpush1.xpose.msra.mxu0 0.0
    %3900 = vmatprep.subr.mxu0 0.0
    %3901 = vmatpush1.xpose.msra.mxu0 0.0
    %3902 = vmatprep.subr.mxu0 0.0
    %3903 = vmatpush1.xpose.msra.mxu0 0.0
    %3904 = vmatprep.subr.mxu0 0.0
    %3905 = vmatpush1.xpose.msra.mxu0 0.0
    %3906 = vmatprep.subr.mxu0 0.0
    %3907 = vmatpush1.xpose.msra.mxu0 0.0
    %3908 = vmatprep.subr.mxu0 0.0
    %3909 = vmatpush1.xpose.msra.mxu0 0.0
    %3910 = vmatprep.subr.mxu0 0.0
    %3911 = vmatpush1.xpose.msra.mxu0 0.0
    %3912 = vmatprep.subr.mxu0 0.0
    %3913 = vmatpush1.xpose.msra.mxu0 0.0
    %3914 = vmatprep.subr.mxu0 0.0
    %3915 = vmatpush1.xpose.msra.mxu0 0.0
    %3916 = vmatprep.subr.mxu0 0.0
    %3917 = vmatpush1.xpose.msra.mxu0 0.0
    %3918 = vmatprep.subr.mxu0 0.0
    %3919 = vmatpush1.xpose.msra.mxu0 0.0
    %3920 = vmatprep.subr.mxu0 0.0
    %3921 = vmatpush1.xpose.msra.mxu0 0.0
    %3922 = vmatprep.subr.mxu0 0.0
    %3923 = vmatpush1.xpose.msra.mxu0 0.0
    %3924 = vmatprep.subr.mxu0 0.0
    %3925 = vmatpush1.xpose.msra.mxu0 0.0
    %3926 = vmatprep.subr.mxu0 0.0
    %3927 = vmatpush1.xpose.msra.mxu0 0.0
    %3928 = vmatprep.subr.mxu0 0.0
    %3929 = vmatpush1.xpose.msra.mxu0 0.0
    %3930 = vmatprep.subr.mxu0 0.0
    %3931 = vmatpush1.xpose.msra.mxu0 0.0
    %3932 = vmatprep.subr.mxu0 0.0
    %3933 = vmatpush1.xpose.msra.mxu0 0.0
    %3934 = vmatprep.subr.mxu0 0.0
    %3935 = vmatpush1.xpose.msra.mxu0 0.0
    %3936 = vmatprep.subr.mxu0 0.0
    %3937 = vmatpush1.xpose.msra.mxu0 0.0
    %3938 = vmatprep.subr.mxu0 0.0
    %3939 = vmatpush1.xpose.msra.mxu0 0.0
    %3940 = vmatprep.subr.mxu0 0.0
    %3941 = vmatpush1.xpose.msra.mxu0 0.0
    %3942 = vmatprep.mubr.f32.mxu0 0.0
    %3943 = vmatmul.mubr.f32.gmra.mrb[0].mxu0 %v3874
    %v3944 = vpop.f32.mrb[0].mxu0
    %v3945 = vadd.f32 0.0, %v3944
    %v3946 = vpop.f32.mrb[0].mxu0
    %3947 = vdwg.mxu0
    %v3948 = vmul.f32 %v3945, 0.5
    %v3949 = vsel %vm221, %v3948, -inf
    %3950 = vmax.xlane.f32.xlu0 %v3949
    %v3951 = vpop.xlane.xlu0 %3950
    %v3952 = vsub.f32 %v3948, %v3951
    %v3953 = vmul.f32 %v3952, 1.442695
    %v3954 = vpow.pop %v3953
    %v3955 = vsel %vm221, %v3954, 0.0
    %3956 = vadd.xlane.f32.xlu0 %v3955
    %v3957 = vpop.xlane.xlu0 %3956
    %v3958 = vrcp.pop %v3957
    %v3959 = vmul.f32 %v3954, %v3958
    %3960 = vrot.lane.b32.xlu0 %v139, 36
    %v3961 = vpop.permute.xlu0 %3960
    %v3964 = vsel %vm221, %v3959, 0
    %3966 = vmatprep.subr.mxu0 0.0
    %3967 = vmatpush1.msra.mxu0 %v3961
    %3968 = vmatprep.subr.mxu0 0.0
    %3969 = vmatpush1.msra.mxu0 0.0
    %3970 = vmatprep.subr.mxu0 0.0
    %3971 = vmatpush1.msra.mxu0 0.0
    %3972 = vmatprep.subr.mxu0 0.0
    %3973 = vmatpush1.msra.mxu0 0.0
    %3974 = vmatprep.subr.mxu0 0.0
    %3975 = vmatpush1.msra.mxu0 0.0
    %3976 = vmatprep.subr.mxu0 0.0
    %3977 = vmatpush1.msra.mxu0 0.0
    %3978 = vmatprep.subr.mxu0 0.0
    %3979 = vmatpush1.msra.mxu0 0.0
    %3980 = vmatprep.subr.mxu0 0.0
    %3981 = vmatpush1.msra.mxu0 0.0
    %3982 = vmatprep.subr.mxu0 0.0
    %3983 = vmatpush1.msra.mxu0 0.0
    %3984 = vmatprep.subr.mxu0 0.0
    %3985 = vmatpush1.msra.mxu0 0.0
    %3986 = vmatprep.subr.mxu0 0.0
    %3987 = vmatpush1.msra.mxu0 0.0
    %3988 = vmatprep.subr.mxu0 0.0
    %3989 = vmatpush1.msra.mxu0 0.0
    %3990 = vmatprep.subr.mxu0 0.0
    %3991 = vmatpush1.msra.mxu0 0.0
    %3992 = vmatprep.subr.mxu0 0.0
    %3993 = vmatpush1.msra.mxu0 0.0
    %3994 = vmatprep.subr.mxu0 0.0
    %3995 = vmatpush1.msra.mxu0 0.0
    %3996 = vmatprep.subr.mxu0 0.0
    %3997 = vmatpush1.msra.mxu0 0.0
    %3998 = vmatprep.subr.mxu0 0.0
    %3999 = vmatpush1.msra.mxu0 0.0
    %4000 = vmatprep.subr.mxu0 0.0
    %4001 = vmatpush1.msra.mxu0 0.0
    %4002 = vmatprep.subr.mxu0 0.0
    %4003 = vmatpush1.msra.mxu0 0.0
    %4004 = vmatprep.subr.mxu0 0.0
    %4005 = vmatpush1.msra.mxu0 0.0
    %4006 = vmatprep.subr.mxu0 0.0
    %4007 = vmatpush1.msra.mxu0 0.0
    %4008 = vmatprep.subr.mxu0 0.0
    %4009 = vmatpush1.msra.mxu0 0.0
    %4010 = vmatprep.subr.mxu0 0.0
    %4011 = vmatpush1.msra.mxu0 0.0
    %4012 = vmatprep.subr.mxu0 0.0
    %4013 = vmatpush1.msra.mxu0 0.0
    %4014 = vmatprep.subr.mxu0 0.0
    %4015 = vmatpush1.msra.mxu0 0.0
    %4016 = vmatprep.subr.mxu0 0.0
    %4017 = vmatpush1.msra.mxu0 0.0
    %4018 = vmatprep.subr.mxu0 0.0
    %4019 = vmatpush1.msra.mxu0 0.0
    %4020 = vmatprep.subr.mxu0 0.0
    %4021 = vmatpush1.msra.mxu0 0.0
    %4022 = vmatprep.subr.mxu0 0.0
    %4023 = vmatpush1.msra.mxu0 0.0
    %4024 = vmatprep.subr.mxu0 0.0
    %4025 = vmatpush1.msra.mxu0 0.0
    %4026 = vmatprep.subr.mxu0 0.0
    %4027 = vmatpush1.msra.mxu0 0.0
    %4028 = vmatprep.subr.mxu0 0.0
    %4029 = vmatpush1.msra.mxu0 0.0
    %4030 = vmatprep.mubr.f32.mxu0 0.0
    %4031 = vmatmul.mubr.f32.gmra.mrb[0].mxu0 %v3964
    %v4032 = vpop.f32.mrb[0].mxu0
    %v4033 = vadd.f32 0.0, %v4032
    %v4034 = vpop.f32.mrb[0].mxu0
    %4035 = vdwg.mxu0
    %v4037 = vsel %vm145, %v4033, 0
    %4039 = vmatprep.subr.mxu0 0.0
    %4040 = vmatpush1.msra.mxu0 %v2029
    %4041 = vmatprep.subr.mxu0 0.0
    %4042 = vmatpush1.msra.mxu0 0.0
    %4043 = vmatprep.subr.mxu0 0.0
    %4044 = vmatpush1.msra.mxu0 0.0
    %4045 = vmatprep.subr.mxu0 0.0
    %4046 = vmatpush1.msra.mxu0 0.0
    %4047 = vmatprep.subr.mxu0 0.0
    %4048 = vmatpush1.msra.mxu0 0.0
    %4049 = vmatprep.subr.mxu0 0.0
    %4050 = vmatpush1.msra.mxu0 0.0
    %4051 = vmatprep.subr.mxu0 0.0
    %4052 = vmatpush1.msra.mxu0 0.0
    %4053 = vmatprep.subr.mxu0 0.0
    %4054 = vmatpush1.msra.mxu0 0.0
    %4055 = vmatprep.subr.mxu0 0.0
    %4056 = vmatpush1.msra.mxu0 0.0
    %4057 = vmatprep.subr.mxu0 0.0
    %4058 = vmatpush1.msra.mxu0 0.0
    %4059 = vmatprep.subr.mxu0 0.0
    %4060 = vmatpush1.msra.mxu0 0.0
    %4061 = vmatprep.subr.mxu0 0.0
    %4062 = vmatpush1.msra.mxu0 0.0
    %4063 = vmatprep.subr.mxu0 0.0
    %4064 = vmatpush1.msra.mxu0 0.0
    %4065 = vmatprep.subr.mxu0 0.0
    %4066 = vmatpush1.msra.mxu0 0.0
    %4067 = vmatprep.subr.mxu0 0.0
    %4068 = vmatpush1.msra.mxu0 0.0
    %4069 = vmatprep.subr.mxu0 0.0
    %4070 = vmatpush1.msra.mxu0 0.0
    %4071 = vmatprep.subr.mxu0 0.0
    %4072 = vmatpush1.msra.mxu0 0.0
    %4073 = vmatprep.subr.mxu0 0.0
    %4074 = vmatpush1.msra.mxu0 0.0
    %4075 = vmatprep.subr.mxu0 0.0
    %4076 = vmatpush1.msra.mxu0 0.0
    %4077 = vmatprep.subr.mxu0 0.0
    %4078 = vmatpush1.msra.mxu0 0.0
    %4079 = vmatprep.subr.mxu0 0.0
    %4080 = vmatpush1.msra.mxu0 0.0
    %4081 = vmatprep.subr.mxu0 0.0
    %4082 = vmatpush1.msra.mxu0 0.0
    %4083 = vmatprep.subr.mxu0 0.0
    %4084 = vmatpush1.msra.mxu0 0.0
    %4085 = vmatprep.subr.mxu0 0.0
    %4086 = vmatpush1.msra.mxu0 0.0
    %4087 = vmatprep.subr.mxu0 0.0
    %4088 = vmatpush1.msra.mxu0 0.0
    %4089 = vmatprep.subr.mxu0 0.0
    %4090 = vmatpush1.msra.mxu0 0.0
    %4091 = vmatprep.subr.mxu0 0.0
    %4092 = vmatpush1.msra.mxu0 0.0
    %4093 = vmatprep.subr.mxu0 0.0
    %4094 = vmatpush1.msra.mxu0 0.0
    %4095 = vmatprep.subr.mxu0 0.0
    %4096 = vmatpush1.msra.mxu0 0.0
    %4097 = vmatprep.subr.mxu0 0.0
    %4098 = vmatpush1.msra.mxu0 0.0
    %4099 = vmatprep.subr.mxu0 0.0
    %4100 = vmatpush1.msra.mxu0 0.0
    %4101 = vmatprep.subr.mxu0 0.0
    %4102 = vmatpush1.msra.mxu0 0.0
    %4103 = vmatprep.mubr.f32.mxu0 0.0
    %4104 = vmatmul.mubr.f32.gmra.mrb[0].mxu0 %v4037
    %v4105 = vpop.f32.mrb[0].mxu0
    %v4106 = vadd.f32 0.0, %v4105
    %v4107 = vpop.f32.mrb[0].mxu0
    %4108 = vdwg.mxu0
    %v4109 = vadd.f32 %v3869, %v4106
    %v4110 = vadd.f32 %v4109, %v2103
    %v4111 = vsel %vm60, %v4110, 0.0
    %v4112 = vrot.slane %v4111, 4
    %v4113 = vadd.f32 %v4111, %v4112
    %v4114 = vrot.slane %v4113, 2
    %v4115 = vadd.f32 %v4113, %v4114
    %v4116 = vrot.slane %v4115, 1
    %v4117 = vadd.f32 %v4115, %v4116
    %v4118 = vmul.f32 %v4117, %v2113
    %v4120 = vsel %vm60, %v4118, 0
    %4122 = vmatprep.subr.mxu0 0.0
    %4123 = vmatpush1.msra.mxu0 %v46
    %4124 = vmatprep.subr.mxu0 0.0
    %4125 = vmatpush1.msra.mxu0 %v48
    %4126 = vmatprep.subr.mxu0 0.0
    %4127 = vmatpush1.msra.mxu0 %v50
    %4128 = vmatprep.subr.mxu0 0.0
    %4129 = vmatpush1.msra.mxu0 %v52
    %4130 = vmatprep.subr.mxu0 0.0
    %4131 = vmatpush1.msra.mxu0 0.0
    %4132 = vmatprep.subr.mxu0 0.0
    %4133 = vmatpush1.msra.mxu0 0.0
    %4134 = vmatprep.subr.mxu0 0.0
    %4135 = vmatpush1.msra.mxu0 0.0
    %4136 = vmatprep.subr.mxu0 0.0
    %4137 = vmatpush1.msra.mxu0 0.0
    %4138 = vmatprep.subr.mxu0 0.0
    %4139 = vmatpush1.msra.mxu0 0.0
    %4140 = vmatprep.subr.mxu0 0.0
    %4141 = vmatpush1.msra.mxu0 0.0
    %4142 = vmatprep.subr.mxu0 0.0
    %4143 = vmatpush1.msra.mxu0 0.0
    %4144 = vmatprep.subr.mxu0 0.0
    %4145 = vmatpush1.msra.mxu0 0.0
    %4146 = vmatprep.subr.mxu0 0.0
    %4147 = vmatpush1.msra.mxu0 0.0
    %4148 = vmatprep.subr.mxu0 0.0
    %4149 = vmatpush1.msra.mxu0 0.0
    %4150 = vmatprep.subr.mxu0 0.0
    %4151 = vmatpush1.msra.mxu0 0.0
    %4152 = vmatprep.subr.mxu0 0.0
    %4153 = vmatpush1.msra.mxu0 0.0
    %4154 = vmatprep.subr.mxu0 0.0
    %4155 = vmatpush1.msra.mxu0 0.0
    %4156 = vmatprep.subr.mxu0 0.0
    %4157 = vmatpush1.msra.mxu0 0.0
    %4158 = vmatprep.subr.mxu0 0.0
    %4159 = vmatpush1.msra.mxu0 0.0
    %4160 = vmatprep.subr.mxu0 0.0
    %4161 = vmatpush1.msra.mxu0 0.0
    %4162 = vmatprep.subr.mxu0 0.0
    %4163 = vmatpush1.msra.mxu0 0.0
    %4164 = vmatprep.subr.mxu0 0.0
    %4165 = vmatpush1.msra.mxu0 0.0
    %4166 = vmatprep.subr.mxu0 0.0
    %4167 = vmatpush1.msra.mxu0 0.0
    %4168 = vmatprep.subr.mxu0 0.0
    %4169 = vmatpush1.msra.mxu0 0.0
    %4170 = vmatprep.subr.mxu0 0.0
    %4171 = vmatpush1.msra.mxu0 0.0
    %4172 = vmatprep.subr.mxu0 0.0
    %4173 = vmatpush1.msra.mxu0 0.0
    %4174 = vmatprep.subr.mxu0 0.0
    %4175 = vmatpush1.msra.mxu0 0.0
    %4176 = vmatprep.subr.mxu0 0.0
    %4177 = vmatpush1.msra.mxu0 0.0
    %4178 = vmatprep.subr.mxu0 0.0
    %4179 = vmatpush1.msra.mxu0 0.0
    %4180 = vmatprep.subr.mxu0 0.0
    %4181 = vmatpush1.msra.mxu0 0.0
    %4182 = vmatprep.subr.mxu0 0.0
    %4183 = vmatpush1.msra.mxu0 0.0
    %4184 = vmatprep.subr.mxu0 0.0
    %4185 = vmatpush1.msra.mxu0 0.0
    %4186 = vmatprep.mubr.f32.mxu0 0.0
    %4187 = vmatmul.mubr.f32.gmra.mrb[0].mxu0 %v4120
    %v4188 = vpop.f32.mrb[0].mxu0
    %v4189 = vadd.f32 %v2118, %v4188
    %v4190 = vpop.f32.mrb[0].mxu0
    %4191 = vdwg.mxu0
    %v4193 = vrot.slane %v4189, 7
    %vm4195 = vcmask 1040384
    %v4196 = vsel %vm4195, %v2190, %v4193
    %vm4197 = vcmask 189440
    %4198 = vst.msk [vmem:[#allocation7] sm:$0x3] %vm4197, %v4196
    // Predicated region
    $region22: #{tpu_custom_call.1} parent=1 // pred_check
      _
    $region23: #{tpu_custom_call.1} parent=1 // pred_check_branch
      %4200 = sbr.rel (0) target = $region25
    $region24: #{tpu_custom_call.1} parent=1 // pred_region
      %s4202 = ssub.s32 32, 32
      %4203 = vsyncadd [#allocation4], %s4202
      %s4205 = sshll.u32 [#allocation7], 4
      %s4206 = int_to_ptr.vmem [resolvable:$true] %s4205
      %4208 = dma.vmem_to_hbm [thread:$0]  %s4206, 32, %s3, [#allocation4]
    $region25: #{tpu_custom_call.1} parent=1 // pred_fallthru
      _
    // Predicated region
    $region26: #{tpu_custom_call.1} parent=1 // pred_check
      _
    $region27: #{tpu_custom_call.1} parent=1 // pred_check_branch
      %4210 = sbr.rel (0) target = $region29
    $region28: #{tpu_custom_call.1} parent=1 // pred_region
      %4211 = dma.done [#allocation4], 32
    $region29: #{tpu_custom_call.1} parent=1 // pred_fallthru
      _
    %4212 = vsyncpa [#allocation3], 1
    %4213 = vsyncpa [#allocation6], 1
    %4214 = vsyncpa [#allocation4], 1

</llo_original>
